<compile_context>
chip_gen: v6e
topology: v6e:2x2x1
jax: 0.10.0
libtpu: 0.0.40
codegen_flags: <defaults>
</compile_context>

<pallas_src>
import jax
import jax.numpy as jnp
from jax import lax
from jax.experimental import pallas as pl
from jax.experimental.pallas import tpu as pltpu

EMB = 32                                   # embedding_size
OUT_DIM = 2145 * 2                         # 4290
LANE = 128
OUT_PAD = ((OUT_DIM + LANE - 1) // LANE) * LANE    # 4352 = 34*128 (lane-dense)
NEG = -1e30                                # masked exp underflows to exactly 0 in f32


def _gat(h_in, adj_bias, w, asrc_row, adst_col, bias, drop):
    """Dense-adjacency GATConv (heads=1) + tanh + dropout, fully vreg/VMEM resident.

    adj_bias : [N, N] additive mask (0.0 for edges incl. self loops, -1e30 otherwise)
    asrc_row : [1, E] source-side attention vector (already a row -> no transpose)
    adst_col : [E, 1] destination-side attention vector (already a column)
    """
    hb = jnp.dot(h_in.astype(jnp.bfloat16), w,
                 preferred_element_type=jnp.float32).astype(jnp.bfloat16)      # [N, E]
    # attention logits on the MXU, each produced directly in its broadcast orientation
    a_dst = jnp.dot(hb, adst_col, preferred_element_type=jnp.float32)          # [N, 1]
    a_src = lax.dot_general(asrc_row, hb,                                      # [1, N]
                            dimension_numbers=(((1,), (1,)), ((), ())),
                            preferred_element_type=jnp.float32)
    e = a_dst + a_src                       # e[i, j] = a_dst_i + a_src_j      [N, N]
    e = jnp.where(e > 0.0, e, 0.2 * e)      # LeakyReLU(negative_slope=0.2)
    e = e + adj_bias                        # additive mask: non-edges -> ~ -1e30
    m = jnp.max(e, axis=-1, keepdims=True)
    p = jnp.exp(e - m)                      # masked entries underflow to exactly 0
    alpha = p * pl.reciprocal(jnp.sum(p, axis=-1, keepdims=True), approx=True)
    out = jnp.dot(alpha.astype(jnp.bfloat16), hb,
                  preferred_element_type=jnp.float32) + bias
    return jnp.tanh(out) * drop             # dropout(p=0.2) keep-mask, pre-scaled 1/0.8


def fused_gnn_kernel(x_ref, adjb_ref, oh_ref, oht_ref, icnt_ref,
                     w1_ref, w2_ref, asrc_ref, adst_ref, vec_ref,
                     d1_ref, d2_ref,
                     wout_hbm, bout_hbm,
                     out_ref,
                     wout_vmem, bout_vmem, dma_sems):
    # Kick off the only HBM-heavy transfer (output Linear weight + bias) immediately;
    # it lands in VMEM while the compute-only GNN stages run, so its latency is hidden.
    cp_w = pltpu.make_async_copy(wout_hbm, wout_vmem, dma_sems.at[0])
    cp_b = pltpu.make_async_copy(bout_hbm, bout_vmem, dma_sems.at[1])
    cp_w.start()
    cp_b.start()

    emb = w1_ref.shape[1]
    n_graphs = oh_ref.shape[0]
    n_nodes = x_ref.shape[0]
    n_per = n_nodes // n_graphs             # graphs are contiguous and equal-sized

    # Shared by both GAT layers.  TODO(synk): for large N, tile the [N, N] attention
    # into per-graph (block-diagonal) row blocks and set vmem_limit_bytes explicitly
    # (v7x has only 64 MiB physical VMEM).
    adj_bias = adjb_ref[...].astype(jnp.float32)

    b1, b2 = vec_ref[0:1, :], vec_ref[1:2, :]
    bn_g, bn_b = vec_ref[2:3, :], vec_ref[3:4, :]
    gn_g, gn_b, gn_ms = vec_ref[4:5, :], vec_ref[5:6, :], vec_ref[6:7, :]

    # ---- GAT layer 1 + tanh + dropout --------------------------------------------
    h = _gat(x_ref[...], adj_bias, w1_ref[...],
             asrc_ref[0:1, :].astype(jnp.bfloat16),
             adst_ref[:, 0:1].astype(jnp.bfloat16),
             b1, d1_ref[...])

    # ---- BatchNorm1d (training-mode batch statistics, biased var, eps=1e-5) -------
    mu = jnp.mean(h, axis=0, keepdims=True)
    var = jnp.mean((h - mu) ** 2, axis=0, keepdims=True)
    h = (h - mu) * lax.rsqrt(var + 1e-5) * bn_g + bn_b

    # ---- GraphNorm: weight * (x - mean_scale*mean_g) / sqrt(var_g + eps) + bias ---
    # statistics path kept in f32 (tiny matmuls) for parity with the f32 reference
    oh, oht, icnt = oh_ref[...], oht_ref[...], icnt_ref[...]
    mean_g = jnp.dot(oh, h, preferred_element_type=jnp.float32) * icnt         # [G, E]
    mean_n = jnp.dot(oht, mean_g, preferred_element_type=jnp.float32)          # [N, E]
    cen = h - mean_n * gn_ms
    var_g = jnp.dot(oh, cen * cen, preferred_element_type=jnp.float32) * icnt  # [G, E]
    inv_std_n = jnp.dot(oht, lax.rsqrt(var_g + 1e-5),
                        preferred_element_type=jnp.float32)                    # [N, E]
    h = gn_g * cen * inv_std_n + gn_b

    # ---- GAT layer 2 + tanh + dropout --------------------------------------------
    h = _gat(h, adj_bias, w2_ref[...],
             asrc_ref[1:2, :].astype(jnp.bfloat16),
             adst_ref[:, 1:2].astype(jnp.bfloat16),
             b2, d2_ref[...])

    # ---- global max / mean pool: one fused readout value, no partial stores -------
    meanp = jnp.dot(oh, h, preferred_element_type=jnp.float32) * icnt          # [G, E]
    # TODO(synk): ragged graphs need a masked segment-max loop; here graphs are padded
    # to a fixed, contiguous node count so a reshape + sublane reduce suffices.
    maxp = jnp.max(h.reshape(n_graphs, n_per, emb), axis=1)                    # [G, E]
    pooled = jnp.concatenate([maxp, meanp], axis=-1).astype(jnp.bfloat16)      # [G, 2E]

    # ---- output Linear: wait on the streamed weight, one lane-dense store ---------
    # TODO(synk): on v7x (2 TensorCores) split this weight-streaming Linear into its
    # own column-tiled pallas_call with dimension_semantics=("parallel",).
    cp_w.wait()
    cp_b.wait()
    out_ref[...] = (jnp.dot(pooled, wout_vmem[...],
                            preferred_element_type=jnp.float32) + bout_vmem[...])


def gnn_mg_fo_forward(params, x, adj_bias, onehot, onehot_t, inv_cnt, drop1, drop2):
    g = onehot.shape[0]

    def full(a):
        return pl.BlockSpec(a.shape, lambda i: (0,) * a.ndim)

    gnn_inputs = (x, adj_bias, onehot, onehot_t, inv_cnt,
                  params["w1"], params["w2"],
                  params["asrc"], params["adst"], params["vecs"],
                  drop1, drop2)

    in_specs = [full(a) for a in gnn_inputs] + [
        pl.BlockSpec(memory_space=pl.ANY),   # w_out: streamed manually inside kernel
        pl.BlockSpec(memory_space=pl.ANY),   # b_out: streamed manually inside kernel
    ]

    out_pad = pl.pallas_call(
        fused_gnn_kernel,
        out_shape=jax.ShapeDtypeStruct((g, OUT_PAD), jnp.float32),
        grid=(1,),
        in_specs=in_specs,
        out_specs=pl.BlockSpec((g, OUT_PAD), lambda i: (0, 0)),
        scratch_shapes=[
            pltpu.VMEM((2 * EMB, OUT_PAD), jnp.bfloat16),   # streamed output weight
            pltpu.VMEM((1, OUT_PAD), jnp.float32),          # streamed output bias
            pltpu.SemaphoreType.DMA((2,)),
        ],
        compiler_params=pltpu.CompilerParams(
            dimension_semantics=("arbitrary",),
        ),
    )(*gnn_inputs, params["w_out"], params["b_out"])
    return out_pad[:, :OUT_DIM]


if __name__ == "__main__":
    key = jax.random.PRNGKey(0)
    G = 2          # graphs in batch
    N_PER = 8      # nodes per graph (contiguous, equal-sized)
    N = G * N_PER  # total nodes
    F_IN = 8       # node feature dim (GATConv(8, emb))

    # ---- synthetic graph data (deterministic) ------------------------------------
    k_x, k_ea, k_p, k_d1, k_d2 = jax.random.split(key, 5)
    x = jax.random.normal(k_x, (N, F_IN), dtype=jnp.float32)

    # bidirectional ring inside each graph
    src, dst = [], []
    for gi in range(G):
        off = gi * N_PER
        for i in range(N_PER):
            j = (i + 1) % N_PER
            src += [off + i, off + j]
            dst += [off + j, off + i]
    edge_index = jnp.array([src, dst], dtype=jnp.int32)           # [2, E]
    edge_attr = jax.random.normal(k_ea, (edge_index.shape[1], 4),
                                  dtype=jnp.float32)              # unused (edge_dim=None)
    batch_index = jnp.repeat(jnp.arange(G, dtype=jnp.int32), N_PER)

    # dense adjacency (adj[i, j] = 1 iff edge j -> i) + self loops,
    # shipped to the kernel as an additive bf16 attention bias
    adj = jnp.zeros((N, N), jnp.float32)
    adj = adj.at[edge_index[1], edge_index[0]].set(1.0)
    adj = adj.at[jnp.arange(N), jnp.arange(N)].set(1.0)
    adj_bias = jnp.where(adj > 0.5, 0.0, NEG).astype(jnp.bfloat16)

    # graph membership one-hot and inverse node counts
    onehot = (batch_index[None, :] == jnp.arange(G)[:, None]).astype(jnp.float32)  # [G, N]
    onehot_t = onehot.T                                                            # [N, G]
    inv_cnt = 1.0 / jnp.sum(onehot, axis=1, keepdims=True)                         # [G, 1]

    # dropout keep-masks (p=0.2, scaled by 1/0.8), host-generated deterministically
    drop1 = jax.random.bernoulli(k_d1, 0.8, (N, EMB)).astype(jnp.float32) / 0.8
    drop2 = jax.random.bernoulli(k_d2, 0.8, (N, EMB)).astype(jnp.float32) / 0.8

    # ---- deterministic parameter init (shapes per module __init__) ---------------
    ks = jax.random.split(k_p, 8)
    asrc1 = jax.random.normal(ks[1], (EMB,), jnp.float32) * 0.3
    adst1 = jax.random.normal(ks[2], (EMB,), jnp.float32) * 0.3
    asrc2 = jax.random.normal(ks[4], (EMB,), jnp.float32) * 0.2
    adst2 = jax.random.normal(ks[5], (EMB,), jnp.float32) * 0.2
    b1 = jnp.zeros((EMB,), jnp.float32)
    b2 = jnp.zeros((EMB,), jnp.float32)
    bn_g = jnp.ones((EMB,), jnp.float32)
    bn_b = jnp.zeros((EMB,), jnp.float32)
    gn_g = jnp.ones((EMB,), jnp.float32)
    gn_b = jnp.zeros((EMB,), jnp.float32)
    gn_ms = jnp.ones((EMB,), jnp.float32)

    w_out_f32 = jax.random.normal(ks[6], (2 * EMB, OUT_DIM), jnp.float32) * 0.05
    b_out_f32 = jax.random.normal(ks[7], (1, OUT_DIM), jnp.float32) * 0.01
    pad = OUT_PAD - OUT_DIM

    params = {
        # initial_conv = GATConv(8, EMB) / conv1 = GATConv(EMB, EMB): lin weights
        "w1": (jax.random.normal(ks[0], (F_IN, EMB), jnp.float32) * 0.3).astype(jnp.bfloat16),
        "w2": (jax.random.normal(ks[3], (EMB, EMB), jnp.float32) * 0.2).astype(jnp.bfloat16),
        # attention vectors packed across layers: rows = source side, cols = dest side
        "asrc": jnp.stack([asrc1, asrc2], axis=0),                 # [2, EMB]
        "adst": jnp.stack([adst1, adst2], axis=1),                 # [EMB, 2]
        # GAT biases + BatchNorm(EMB) + GraphNorm(EMB) vectors packed into one array
        "vecs": jnp.stack([b1, b2, bn_g, bn_b, gn_g, gn_b, gn_ms,
                           jnp.zeros((EMB,), jnp.float32)], axis=0),  # [8, EMB]
        # out = Linear(EMB*2, 2145*2), zero-padded to a lane-dense 128-multiple
        "w_out": jnp.pad(w_out_f32, ((0, 0), (0, pad))).astype(jnp.bfloat16),
        "b_out": jnp.pad(b_out_f32, ((0, 0), (0, pad))),
    }

    fwd = jax.jit(gnn_mg_fo_forward)
    out = fwd(params, x, adj_bias, onehot, onehot_t, inv_cnt, drop1, drop2)
    out = jax.block_until_ready(out)

    assert out.shape == (G, OUT_DIM), out.shape
    assert bool(jnp.all(jnp.isfinite(out)))
    print("KERNEL_OK")
</pallas_src>

<mosaic_0001>
module attributes {stable_mosaic.version = 11 : i64} {
  func.func @fused_gnn_kernel(%arg0: i32, %arg1: memref<16x8xf32, #tpu.memory_space<vmem>>, %arg2: memref<16x16xbf16, #tpu.memory_space<vmem>>, %arg3: memref<2x16xf32, #tpu.memory_space<vmem>>, %arg4: memref<16x2xf32, #tpu.memory_space<vmem>>, %arg5: memref<2x1xf32, #tpu.memory_space<vmem>>, %arg6: memref<8x32xbf16, #tpu.memory_space<vmem>>, %arg7: memref<32x32xbf16, #tpu.memory_space<vmem>>, %arg8: memref<2x32xf32, #tpu.memory_space<vmem>>, %arg9: memref<32x2xf32, #tpu.memory_space<vmem>>, %arg10: memref<8x32xf32, #tpu.memory_space<vmem>>, %arg11: memref<16x32xf32, #tpu.memory_space<vmem>>, %arg12: memref<16x32xf32, #tpu.memory_space<vmem>>, %arg13: memref<64x4352xbf16, #tpu.memory_space<any>>, %arg14: memref<1x4352xf32, #tpu.memory_space<any>>, %arg15: memref<2x4352xf32, #tpu.memory_space<vmem>>, %arg16: memref<64x4352xbf16, #tpu.memory_space<vmem>>, %arg17: memref<1x4352xf32, #tpu.memory_space<vmem>>, %arg18: memref<2x!tpu.dma_semaphore, #tpu.memory_space<semaphore_mem>>) attributes {dimension_semantics = [#tpu.dimension_semantics<arbitrary>], iteration_bounds = array<i64: 1>, scalar_prefetch = 0 : i64, scratch_operands = 3 : i64, tpu.core_type = #tpu.core_type<tc>, window_params = [{pipeline_mode = #tpu.pipeline_mode<synchronous>, transform_indices = @transform_0, window_bounds = array<i64: 16, 8>}, {pipeline_mode = #tpu.pipeline_mode<synchronous>, transform_indices = @transform_1, window_bounds = array<i64: 16, 16>}, {pipeline_mode = #tpu.pipeline_mode<synchronous>, transform_indices = @transform_2, window_bounds = array<i64: 2, 16>}, {pipeline_mode = #tpu.pipeline_mode<synchronous>, transform_indices = @transform_3, window_bounds = array<i64: 16, 2>}, {pipeline_mode = #tpu.pipeline_mode<synchronous>, transform_indices = @transform_4, window_bounds = array<i64: 2, 1>}, {pipeline_mode = #tpu.pipeline_mode<synchronous>, transform_indices = @transform_5, window_bounds = array<i64: 8, 32>}, {pipeline_mode = #tpu.pipeline_mode<synchronous>, transform_indices = @transform_6, window_bounds = array<i64: 32, 32>}, {pipeline_mode = #tpu.pipeline_mode<synchronous>, transform_indices = @transform_7, window_bounds = array<i64: 2, 32>}, {pipeline_mode = #tpu.pipeline_mode<synchronous>, transform_indices = @transform_8, window_bounds = array<i64: 32, 2>}, {pipeline_mode = #tpu.pipeline_mode<synchronous>, transform_indices = @transform_9, window_bounds = array<i64: 8, 32>}, {pipeline_mode = #tpu.pipeline_mode<synchronous>, transform_indices = @transform_10, window_bounds = array<i64: 16, 32>}, {pipeline_mode = #tpu.pipeline_mode<synchronous>, transform_indices = @transform_11, window_bounds = array<i64: 16, 32>}, {}, {}, {pipeline_mode = #tpu.pipeline_mode<synchronous>, transform_indices = @transform_14, window_bounds = array<i64: 2, 4352>}]} {
    %c0_i32 = arith.constant 0 : i32
    %0 = tpu.memref_slice %arg18[%c0_i32] : memref<2x!tpu.dma_semaphore, #tpu.memory_space<semaphore_mem>> -> memref<1x!tpu.dma_semaphore, #tpu.memory_space<semaphore_mem>>
    %1 = tpu.memref_squeeze %0 : memref<1x!tpu.dma_semaphore, #tpu.memory_space<semaphore_mem>> -> memref<!tpu.dma_semaphore, #tpu.memory_space<semaphore_mem>>
    tpu.enqueue_dma source(%arg13 : memref<64x4352xbf16, #tpu.memory_space<any>>) target(%arg16 : memref<64x4352xbf16, #tpu.memory_space<vmem>>) target_semaphore(%1 : memref<!tpu.dma_semaphore, #tpu.memory_space<semaphore_mem>>)
    %c1_i32 = arith.constant 1 : i32
    %2 = tpu.memref_slice %arg18[%c1_i32] : memref<2x!tpu.dma_semaphore, #tpu.memory_space<semaphore_mem>> -> memref<1x!tpu.dma_semaphore, #tpu.memory_space<semaphore_mem>>
    %3 = tpu.memref_squeeze %2 : memref<1x!tpu.dma_semaphore, #tpu.memory_space<semaphore_mem>> -> memref<!tpu.dma_semaphore, #tpu.memory_space<semaphore_mem>>
    tpu.enqueue_dma source(%arg14 : memref<1x4352xf32, #tpu.memory_space<any>>) target(%arg17 : memref<1x4352xf32, #tpu.memory_space<vmem>>) target_semaphore(%3 : memref<!tpu.dma_semaphore, #tpu.memory_space<semaphore_mem>>)
    %c0 = arith.constant 0 : index
    %c0_0 = arith.constant 0 : index
    %4 = vector.load %arg2[%c0, %c0_0] : memref<16x16xbf16, #tpu.memory_space<vmem>>, vector<16x16xbf16>
    %5 = arith.extf %4 : vector<16x16xbf16> to vector<16x16xf32>
    %c0_1 = arith.constant 0 : index
    %c0_2 = arith.constant 0 : index
    %6 = vector.load %arg10[%c0_1, %c0_2] : memref<8x32xf32, #tpu.memory_space<vmem>>, vector<1x32xf32>
    %c1 = arith.constant 1 : index
    %c0_3 = arith.constant 0 : index
    %7 = vector.load %arg10[%c1, %c0_3] : memref<8x32xf32, #tpu.memory_space<vmem>>, vector<1x32xf32>
    %c2 = arith.constant 2 : index
    %c0_4 = arith.constant 0 : index
    %8 = vector.load %arg10[%c2, %c0_4] : memref<8x32xf32, #tpu.memory_space<vmem>>, vector<1x32xf32>
    %c3 = arith.constant 3 : index
    %c0_5 = arith.constant 0 : index
    %9 = vector.load %arg10[%c3, %c0_5] : memref<8x32xf32, #tpu.memory_space<vmem>>, vector<1x32xf32>
    %c4 = arith.constant 4 : index
    %c0_6 = arith.constant 0 : index
    %10 = vector.load %arg10[%c4, %c0_6] : memref<8x32xf32, #tpu.memory_space<vmem>>, vector<1x32xf32>
    %c5 = arith.constant 5 : index
    %c0_7 = arith.constant 0 : index
    %11 = vector.load %arg10[%c5, %c0_7] : memref<8x32xf32, #tpu.memory_space<vmem>>, vector<1x32xf32>
    %c6 = arith.constant 6 : index
    %c0_8 = arith.constant 0 : index
    %12 = vector.load %arg10[%c6, %c0_8] : memref<8x32xf32, #tpu.memory_space<vmem>>, vector<1x32xf32>
    %c0_9 = arith.constant 0 : index
    %c0_10 = arith.constant 0 : index
    %13 = vector.load %arg1[%c0_9, %c0_10] : memref<16x8xf32, #tpu.memory_space<vmem>>, vector<16x8xf32>
    %c0_11 = arith.constant 0 : index
    %c0_12 = arith.constant 0 : index
    %14 = vector.load %arg6[%c0_11, %c0_12] : memref<8x32xbf16, #tpu.memory_space<vmem>>, vector<8x32xbf16>
    %c0_13 = arith.constant 0 : index
    %c0_14 = arith.constant 0 : index
    %15 = vector.load %arg8[%c0_13, %c0_14] : memref<2x32xf32, #tpu.memory_space<vmem>>, vector<1x32xf32>
    %16 = arith.truncf %15 : vector<1x32xf32> to vector<1x32xbf16>
    %c0_15 = arith.constant 0 : index
    %c0_16 = arith.constant 0 : index
    %17 = vector.load %arg9[%c0_15, %c0_16] : memref<32x2xf32, #tpu.memory_space<vmem>>, vector<32x1xf32>
    %18 = arith.truncf %17 : vector<32x1xf32> to vector<32x1xbf16>
    %c0_17 = arith.constant 0 : index
    %c0_18 = arith.constant 0 : index
    %19 = vector.load %arg11[%c0_17, %c0_18] : memref<16x32xf32, #tpu.memory_space<vmem>>, vector<16x32xf32>
    %20 = arith.truncf %13 : vector<16x8xf32> to vector<16x8xbf16>
    %cst = arith.constant dense<0.000000e+00> : vector<16x32xf32>
    %21 = tpu.matmul %20, %14, %cst {dimension_numbers = #tpu.dot_dimension_numbers<[1], [0], [0], [1], [0, 0, 1, 1], [], []>} : vector<16x8xbf16>, vector<8x32xbf16>, vector<16x32xf32> -> vector<16x32xf32>
    %22 = arith.truncf %21 : vector<16x32xf32> to vector<16x32xbf16>
    %cst_19 = arith.constant dense<0.000000e+00> : vector<16x1xf32>
    %23 = tpu.matmul %22, %18, %cst_19 {dimension_numbers = #tpu.dot_dimension_numbers<[1], [0], [0], [1], [0, 0, 1, 1], [], []>} : vector<16x32xbf16>, vector<32x1xbf16>, vector<16x1xf32> -> vector<16x1xf32>
    %cst_20 = arith.constant dense<0.000000e+00> : vector<1x16xf32>
    %24 = tpu.matmul %16, %22, %cst_20 {dimension_numbers = #tpu.dot_dimension_numbers<[1], [1], [0], [0], [0, 0, 1, 0], [], []>} : vector<1x32xbf16>, vector<16x32xbf16>, vector<1x16xf32> -> vector<1x16xf32>
    %25 = vector.broadcast %23 : vector<16x1xf32> to vector<16x16xf32>
    %26 = vector.broadcast %24 : vector<1x16xf32> to vector<16x16xf32>
    %27 = arith.addf %25, %26 : vector<16x16xf32>
    %cst_21 = arith.constant 0.000000e+00 : f32
    %28 = vector.broadcast %cst_21 : f32 to vector<16x16xf32>
    %29 = arith.cmpf ogt, %27, %28 : vector<16x16xf32>
    %cst_22 = arith.constant 2.000000e-01 : f32
    %30 = vector.broadcast %cst_22 : f32 to vector<16x16xf32>
    %31 = arith.mulf %30, %27 : vector<16x16xf32>
    %32 = arith.select %29, %27, %31 : vector<16x16xi1>, vector<16x16xf32>
    %33 = arith.addf %32, %5 : vector<16x16xf32>
    %cst_23 = arith.constant dense<0xFF800000> : vector<16xf32>
    %34 = vector.multi_reduction <maximumf>, %33, %cst_23 [1] : vector<16x16xf32> to vector<16xf32>
    %35 = vector.shape_cast %34 : vector<16xf32> to vector<16x1xf32>
    %36 = vector.broadcast %35 : vector<16x1xf32> to vector<16x16xf32>
    %37 = arith.subf %33, %36 : vector<16x16xf32>
    %38 = math.exp %37 : vector<16x16xf32>
    %cst_24 = arith.constant dense<0.000000e+00> : vector<16xf32>
    %39 = vector.multi_reduction <add>, %38, %cst_24 [1] : vector<16x16xf32> to vector<16xf32>
    %40 = vector.shape_cast %39 : vector<16xf32> to vector<16x1xf32>
    %41 = tpu.reciprocal %40 {approx = true} : vector<16x1xf32> -> vector<16x1xf32>
    %42 = vector.broadcast %41 : vector<16x1xf32> to vector<16x16xf32>
    %43 = arith.mulf %38, %42 : vector<16x16xf32>
    %44 = arith.truncf %43 : vector<16x16xf32> to vector<16x16xbf16>
    %cst_25 = arith.constant dense<0.000000e+00> : vector<16x32xf32>
    %45 = tpu.matmul %44, %22, %cst_25 {dimension_numbers = #tpu.dot_dimension_numbers<[1], [0], [0], [1], [0, 0, 1, 1], [], []>} : vector<16x16xbf16>, vector<16x32xbf16>, vector<16x32xf32> -> vector<16x32xf32>
    %46 = vector.broadcast %6 : vector<1x32xf32> to vector<16x32xf32>
    %47 = arith.addf %45, %46 : vector<16x32xf32>
    %48 = math.tanh %47 : vector<16x32xf32>
    %49 = arith.mulf %48, %19 : vector<16x32xf32>
    %cst_26 = arith.constant dense<0.000000e+00> : vector<32xf32>
    %50 = vector.multi_reduction <add>, %49, %cst_26 [0] : vector<16x32xf32> to vector<32xf32>
    %51 = vector.shape_cast %50 : vector<32xf32> to vector<1x32xf32>
    %cst_27 = arith.constant 1.600000e+01 : f32
    %52 = vector.broadcast %cst_27 : f32 to vector<1x32xf32>
    %53 = arith.divf %51, %52 : vector<1x32xf32>
    %54 = vector.broadcast %53 : vector<1x32xf32> to vector<16x32xf32>
    %55 = arith.subf %49, %54 : vector<16x32xf32>
    %56 = arith.mulf %55, %55 : vector<16x32xf32>
    %cst_28 = arith.constant dense<0.000000e+00> : vector<32xf32>
    %57 = vector.multi_reduction <add>, %56, %cst_28 [0] : vector<16x32xf32> to vector<32xf32>
    %58 = vector.shape_cast %57 : vector<32xf32> to vector<1x32xf32>
    %cst_29 = arith.constant 1.600000e+01 : f32
    %59 = vector.broadcast %cst_29 : f32 to vector<1x32xf32>
    %60 = arith.divf %58, %59 : vector<1x32xf32>
    %61 = vector.broadcast %53 : vector<1x32xf32> to vector<16x32xf32>
    %62 = arith.subf %49, %61 : vector<16x32xf32>
    %cst_30 = arith.constant 9.99999974E-6 : f32
    %63 = vector.broadcast %cst_30 : f32 to vector<1x32xf32>
    %64 = arith.addf %60, %63 : vector<1x32xf32>
    %65 = math.rsqrt %64 : vector<1x32xf32>
    %66 = vector.broadcast %65 : vector<1x32xf32> to vector<16x32xf32>
    %67 = arith.mulf %62, %66 : vector<16x32xf32>
    %68 = vector.broadcast %8 : vector<1x32xf32> to vector<16x32xf32>
    %69 = arith.mulf %67, %68 : vector<16x32xf32>
    %70 = vector.broadcast %9 : vector<1x32xf32> to vector<16x32xf32>
    %71 = arith.addf %69, %70 : vector<16x32xf32>
    %c0_31 = arith.constant 0 : index
    %c0_32 = arith.constant 0 : index
    %72 = vector.load %arg3[%c0_31, %c0_32] : memref<2x16xf32, #tpu.memory_space<vmem>>, vector<2x16xf32>
    %c0_33 = arith.constant 0 : index
    %c0_34 = arith.constant 0 : index
    %73 = vector.load %arg4[%c0_33, %c0_34] : memref<16x2xf32, #tpu.memory_space<vmem>>, vector<16x2xf32>
    %c0_35 = arith.constant 0 : index
    %c0_36 = arith.constant 0 : index
    %74 = vector.load %arg5[%c0_35, %c0_36] : memref<2x1xf32, #tpu.memory_space<vmem>>, vector<2x1xf32>
    %cst_37 = arith.constant dense<0.000000e+00> : vector<2x32xf32>
    %75 = tpu.matmul %72, %71, %cst_37 {dimension_numbers = #tpu.dot_dimension_numbers<[1], [0], [0], [1], [0, 0, 1, 1], [], []>} : vector<2x16xf32>, vector<16x32xf32>, vector<2x32xf32> -> vector<2x32xf32>
    %76 = vector.broadcast %74 : vector<2x1xf32> to vector<2x32xf32>
    %77 = arith.mulf %75, %76 : vector<2x32xf32>
    %cst_38 = arith.constant dense<0.000000e+00> : vector<16x32xf32>
    %78 = tpu.matmul %73, %77, %cst_38 {dimension_numbers = #tpu.dot_dimension_numbers<[1], [0], [0], [1], [0, 0, 1, 1], [], []>} : vector<16x2xf32>, vector<2x32xf32>, vector<16x32xf32> -> vector<16x32xf32>
    %79 = vector.broadcast %12 : vector<1x32xf32> to vector<16x32xf32>
    %80 = arith.mulf %78, %79 : vector<16x32xf32>
    %81 = arith.subf %71, %80 : vector<16x32xf32>
    %82 = arith.mulf %81, %81 : vector<16x32xf32>
    %cst_39 = arith.constant dense<0.000000e+00> : vector<2x32xf32>
    %83 = tpu.matmul %72, %82, %cst_39 {dimension_numbers = #tpu.dot_dimension_numbers<[1], [0], [0], [1], [0, 0, 1, 1], [], []>} : vector<2x16xf32>, vector<16x32xf32>, vector<2x32xf32> -> vector<2x32xf32>
    %84 = vector.broadcast %74 : vector<2x1xf32> to vector<2x32xf32>
    %85 = arith.mulf %83, %84 : vector<2x32xf32>
    %cst_40 = arith.constant 9.99999974E-6 : f32
    %86 = vector.broadcast %cst_40 : f32 to vector<2x32xf32>
    %87 = arith.addf %85, %86 : vector<2x32xf32>
    %88 = math.rsqrt %87 : vector<2x32xf32>
    %cst_41 = arith.constant dense<0.000000e+00> : vector<16x32xf32>
    %89 = tpu.matmul %73, %88, %cst_41 {dimension_numbers = #tpu.dot_dimension_numbers<[1], [0], [0], [1], [0, 0, 1, 1], [], []>} : vector<16x2xf32>, vector<2x32xf32>, vector<16x32xf32> -> vector<16x32xf32>
    %90 = vector.broadcast %10 : vector<1x32xf32> to vector<16x32xf32>
    %91 = arith.mulf %90, %81 : vector<16x32xf32>
    %92 = arith.mulf %91, %89 : vector<16x32xf32>
    %93 = vector.broadcast %11 : vector<1x32xf32> to vector<16x32xf32>
    %94 = arith.addf %92, %93 : vector<16x32xf32>
    %c0_42 = arith.constant 0 : index
    %c0_43 = arith.constant 0 : index
    %95 = vector.load %arg7[%c0_42, %c0_43] : memref<32x32xbf16, #tpu.memory_space<vmem>>, vector<32x32xbf16>
    %c1_44 = arith.constant 1 : index
    %c0_45 = arith.constant 0 : index
    %96 = vector.load %arg8[%c1_44, %c0_45] : memref<2x32xf32, #tpu.memory_space<vmem>>, vector<1x32xf32>
    %97 = arith.truncf %96 : vector<1x32xf32> to vector<1x32xbf16>
    %c0_46 = arith.constant 0 : index
    %c1_47 = arith.constant 1 : index
    %98 = vector.load %arg9[%c0_46, %c1_47] : memref<32x2xf32, #tpu.memory_space<vmem>>, vector<32x1xf32>
    %99 = arith.truncf %98 : vector<32x1xf32> to vector<32x1xbf16>
    %c0_48 = arith.constant 0 : index
    %c0_49 = arith.constant 0 : index
    %100 = vector.load %arg12[%c0_48, %c0_49] : memref<16x32xf32, #tpu.memory_space<vmem>>, vector<16x32xf32>
    %101 = arith.truncf %94 : vector<16x32xf32> to vector<16x32xbf16>
    %cst_50 = arith.constant dense<0.000000e+00> : vector<16x32xf32>
    %102 = tpu.matmul %101, %95, %cst_50 {dimension_numbers = #tpu.dot_dimension_numbers<[1], [0], [0], [1], [0, 0, 1, 1], [], []>} : vector<16x32xbf16>, vector<32x32xbf16>, vector<16x32xf32> -> vector<16x32xf32>
    %103 = arith.truncf %102 : vector<16x32xf32> to vector<16x32xbf16>
    %cst_51 = arith.constant dense<0.000000e+00> : vector<16x1xf32>
    %104 = tpu.matmul %103, %99, %cst_51 {dimension_numbers = #tpu.dot_dimension_numbers<[1], [0], [0], [1], [0, 0, 1, 1], [], []>} : vector<16x32xbf16>, vector<32x1xbf16>, vector<16x1xf32> -> vector<16x1xf32>
    %cst_52 = arith.constant dense<0.000000e+00> : vector<1x16xf32>
    %105 = tpu.matmul %97, %103, %cst_52 {dimension_numbers = #tpu.dot_dimension_numbers<[1], [1], [0], [0], [0, 0, 1, 0], [], []>} : vector<1x32xbf16>, vector<16x32xbf16>, vector<1x16xf32> -> vector<1x16xf32>
    %106 = vector.broadcast %104 : vector<16x1xf32> to vector<16x16xf32>
    %107 = vector.broadcast %105 : vector<1x16xf32> to vector<16x16xf32>
    %108 = arith.addf %106, %107 : vector<16x16xf32>
    %cst_53 = arith.constant 0.000000e+00 : f32
    %109 = vector.broadcast %cst_53 : f32 to vector<16x16xf32>
    %110 = arith.cmpf ogt, %108, %109 : vector<16x16xf32>
    %cst_54 = arith.constant 2.000000e-01 : f32
    %111 = vector.broadcast %cst_54 : f32 to vector<16x16xf32>
    %112 = arith.mulf %111, %108 : vector<16x16xf32>
    %113 = arith.select %110, %108, %112 : vector<16x16xi1>, vector<16x16xf32>
    %114 = arith.addf %113, %5 : vector<16x16xf32>
    %cst_55 = arith.constant dense<0xFF800000> : vector<16xf32>
    %115 = vector.multi_reduction <maximumf>, %114, %cst_55 [1] : vector<16x16xf32> to vector<16xf32>
    %116 = vector.shape_cast %115 : vector<16xf32> to vector<16x1xf32>
    %117 = vector.broadcast %116 : vector<16x1xf32> to vector<16x16xf32>
    %118 = arith.subf %114, %117 : vector<16x16xf32>
    %119 = math.exp %118 : vector<16x16xf32>
    %cst_56 = arith.constant dense<0.000000e+00> : vector<16xf32>
    %120 = vector.multi_reduction <add>, %119, %cst_56 [1] : vector<16x16xf32> to vector<16xf32>
    %121 = vector.shape_cast %120 : vector<16xf32> to vector<16x1xf32>
    %122 = tpu.reciprocal %121 {approx = true} : vector<16x1xf32> -> vector<16x1xf32>
    %123 = vector.broadcast %122 : vector<16x1xf32> to vector<16x16xf32>
    %124 = arith.mulf %119, %123 : vector<16x16xf32>
    %125 = arith.truncf %124 : vector<16x16xf32> to vector<16x16xbf16>
    %cst_57 = arith.constant dense<0.000000e+00> : vector<16x32xf32>
    %126 = tpu.matmul %125, %103, %cst_57 {dimension_numbers = #tpu.dot_dimension_numbers<[1], [0], [0], [1], [0, 0, 1, 1], [], []>} : vector<16x16xbf16>, vector<16x32xbf16>, vector<16x32xf32> -> vector<16x32xf32>
    %127 = vector.broadcast %7 : vector<1x32xf32> to vector<16x32xf32>
    %128 = arith.addf %126, %127 : vector<16x32xf32>
    %129 = math.tanh %128 : vector<16x32xf32>
    %130 = arith.mulf %129, %100 : vector<16x32xf32>
    %cst_58 = arith.constant dense<0.000000e+00> : vector<2x32xf32>
    %131 = tpu.matmul %72, %130, %cst_58 {dimension_numbers = #tpu.dot_dimension_numbers<[1], [0], [0], [1], [0, 0, 1, 1], [], []>} : vector<2x16xf32>, vector<16x32xf32>, vector<2x32xf32> -> vector<2x32xf32>
    %132 = vector.broadcast %74 : vector<2x1xf32> to vector<2x32xf32>
    %133 = arith.mulf %131, %132 : vector<2x32xf32>
    %134 = vector.shape_cast %130 : vector<16x32xf32> to vector<2x8x32xf32>
    %cst_59 = arith.constant dense<0xFF800000> : vector<2x32xf32>
    %135 = vector.multi_reduction <maximumf>, %134, %cst_59 [1] : vector<2x8x32xf32> to vector<2x32xf32>
    %136 = tpu.concatenate %135, %133 in 1 : vector<2x32xf32>, vector<2x32xf32> -> vector<2x64xf32>
    %137 = arith.truncf %136 : vector<2x64xf32> to vector<2x64xbf16>
    %c0_i32_60 = arith.constant 0 : i32
    %138 = tpu.memref_slice %arg18[%c0_i32_60] : memref<2x!tpu.dma_semaphore, #tpu.memory_space<semaphore_mem>> -> memref<1x!tpu.dma_semaphore, #tpu.memory_space<semaphore_mem>>
    %139 = tpu.memref_squeeze %138 : memref<1x!tpu.dma_semaphore, #tpu.memory_space<semaphore_mem>> -> memref<!tpu.dma_semaphore, #tpu.memory_space<semaphore_mem>>
    tpu.wait_dma2 semaphore(%139 : memref<!tpu.dma_semaphore, #tpu.memory_space<semaphore_mem>>) src(%arg13 : memref<64x4352xbf16, #tpu.memory_space<any>>) dst(%arg16 : memref<64x4352xbf16, #tpu.memory_space<vmem>>)
    %c1_i32_61 = arith.constant 1 : i32
    %140 = tpu.memref_slice %arg18[%c1_i32_61] : memref<2x!tpu.dma_semaphore, #tpu.memory_space<semaphore_mem>> -> memref<1x!tpu.dma_semaphore, #tpu.memory_space<semaphore_mem>>
    %141 = tpu.memref_squeeze %140 : memref<1x!tpu.dma_semaphore, #tpu.memory_space<semaphore_mem>> -> memref<!tpu.dma_semaphore, #tpu.memory_space<semaphore_mem>>
    tpu.wait_dma2 semaphore(%141 : memref<!tpu.dma_semaphore, #tpu.memory_space<semaphore_mem>>) src(%arg14 : memref<1x4352xf32, #tpu.memory_space<any>>) dst(%arg17 : memref<1x4352xf32, #tpu.memory_space<vmem>>)
    %c0_62 = arith.constant 0 : index
    %c0_63 = arith.constant 0 : index
    %142 = vector.load %arg16[%c0_62, %c0_63] : memref<64x4352xbf16, #tpu.memory_space<vmem>>, vector<64x4352xbf16>
    %cst_64 = arith.constant dense<0.000000e+00> : vector<2x4352xf32>
    %143 = tpu.matmul %137, %142, %cst_64 {dimension_numbers = #tpu.dot_dimension_numbers<[1], [0], [0], [1], [0, 0, 1, 1], [], []>} : vector<2x64xbf16>, vector<64x4352xbf16>, vector<2x4352xf32> -> vector<2x4352xf32>
    %c0_65 = arith.constant 0 : index
    %c0_66 = arith.constant 0 : index
    %144 = vector.load %arg17[%c0_65, %c0_66] : memref<1x4352xf32, #tpu.memory_space<vmem>>, vector<1x4352xf32>
    %145 = vector.broadcast %144 : vector<1x4352xf32> to vector<2x4352xf32>
    %146 = arith.addf %143, %145 : vector<2x4352xf32>
    %c0_67 = arith.constant 0 : index
    %c0_68 = arith.constant 0 : index
    %147 = vector.load %arg15[%c0_67, %c0_68] : memref<2x4352xf32, #tpu.memory_space<vmem>>, vector<2x4352xf32>
    tpu.vector_store %arg15[%c0_67, %c0_68], %146 {strides = array<i32>} : memref<2x4352xf32, #tpu.memory_space<vmem>>, vector<2x4352xf32>,
    return
  }
  func.func @transform_0(%arg0: i32) -> (i32, i32) {
    %c0_i32 = arith.constant 0 : i32
    %c0_i32_0 = arith.constant 0 : i32
    %c0_i32_1 = arith.constant 0 : i32
    return %c0_i32, %c0_i32_0 : i32, i32
  }
  func.func @transform_1(%arg0: i32) -> (i32, i32) {
    %c0_i32 = arith.constant 0 : i32
    %c0_i32_0 = arith.constant 0 : i32
    %c0_i32_1 = arith.constant 0 : i32
    return %c0_i32, %c0_i32_0 : i32, i32
  }
  func.func @transform_2(%arg0: i32) -> (i32, i32) {
    %c0_i32 = arith.constant 0 : i32
    %c0_i32_0 = arith.constant 0 : i32
    %c0_i32_1 = arith.constant 0 : i32
    return %c0_i32, %c0_i32_0 : i32, i32
  }
  func.func @transform_3(%arg0: i32) -> (i32, i32) {
    %c0_i32 = arith.constant 0 : i32
    %c0_i32_0 = arith.constant 0 : i32
    %c0_i32_1 = arith.constant 0 : i32
    return %c0_i32, %c0_i32_0 : i32, i32
  }
  func.func @transform_4(%arg0: i32) -> (i32, i32) {
    %c0_i32 = arith.constant 0 : i32
    %c0_i32_0 = arith.constant 0 : i32
    %c0_i32_1 = arith.constant 0 : i32
    return %c0_i32, %c0_i32_0 : i32, i32
  }
  func.func @transform_5(%arg0: i32) -> (i32, i32) {
    %c0_i32 = arith.constant 0 : i32
    %c0_i32_0 = arith.constant 0 : i32
    %c0_i32_1 = arith.constant 0 : i32
    return %c0_i32, %c0_i32_0 : i32, i32
  }
  func.func @transform_6(%arg0: i32) -> (i32, i32) {
    %c0_i32 = arith.constant 0 : i32
    %c0_i32_0 = arith.constant 0 : i32
    %c0_i32_1 = arith.constant 0 : i32
    return %c0_i32, %c0_i32_0 : i32, i32
  }
  func.func @transform_7(%arg0: i32) -> (i32, i32) {
    %c0_i32 = arith.constant 0 : i32
    %c0_i32_0 = arith.constant 0 : i32
    %c0_i32_1 = arith.constant 0 : i32
    return %c0_i32, %c0_i32_0 : i32, i32
  }
  func.func @transform_8(%arg0: i32) -> (i32, i32) {
    %c0_i32 = arith.constant 0 : i32
    %c0_i32_0 = arith.constant 0 : i32
    %c0_i32_1 = arith.constant 0 : i32
    return %c0_i32, %c0_i32_0 : i32, i32
  }
  func.func @transform_9(%arg0: i32) -> (i32, i32) {
    %c0_i32 = arith.constant 0 : i32
    %c0_i32_0 = arith.constant 0 : i32
    %c0_i32_1 = arith.constant 0 : i32
    return %c0_i32, %c0_i32_0 : i32, i32
  }
  func.func @transform_10(%arg0: i32) -> (i32, i32) {
    %c0_i32 = arith.constant 0 : i32
    %c0_i32_0 = arith.constant 0 : i32
    %c0_i32_1 = arith.constant 0 : i32
    return %c0_i32, %c0_i32_0 : i32, i32
  }
  func.func @transform_11(%arg0: i32) -> (i32, i32) {
    %c0_i32 = arith.constant 0 : i32
    %c0_i32_0 = arith.constant 0 : i32
    %c0_i32_1 = arith.constant 0 : i32
    return %c0_i32, %c0_i32_0 : i32, i32
  }
  func.func @transform_14(%arg0: i32) -> (i32, i32) {
    %c0_i32 = arith.constant 0 : i32
    %c0_i32_0 = arith.constant 0 : i32
    %c0_i32_1 = arith.constant 0 : i32
    return %c0_i32, %c0_i32_0 : i32, i32
  }
}

</mosaic_0001>

<llo_original>
// kernel: gnn_mg_fo_forward.1
$region0: #{gnn_mg_fo_forward.1}
  #allocation0 [shape = 'u32[]', space=smem, size = 0x4, offset = 0x4, fixed_abs, tag = 'smem constant byte address 0x4 - core index']
  #allocation1 [shape = 'u32[144,128]{1,0:T(1,128)}', space=vmem, size = 0x12000, scoped, tag = 'internal scratch']
  #allocation2 [shape = 'bf16[64,4352]{1,0:T(8,128)(2,1)}', space=vmem, size = 0x88000, scoped, tag = 'scratch operand']
  #allocation3 [shape = 'f32[1,4352]{1,0:T(1,128)}', space=vmem, size = 0x4400, scoped, tag = 'scratch operand']
  #allocation4 [shape = 's32[2]{0}', space=sflag, size = 0x8, scoped, tag = 'scratch operand']
  #allocation14 [shape = 's32[]', space=sflag, size = 0x4, offset = 0, fixed_abs, tag = 'sflag constant byte address 0x0 - dummy sync flag']
  #allocation15 [shape = 's32[]', space=sflag, size = 0x4, offset = 0, fixed_abs, tag = 'sflag constant byte address 0x0 - dummy sync flag']
  #allocation16 [shape = 'u32[]', space=smem, size = 0x4, offset = 0x44, fixed_abs, tag = 'smem constant byte address 0x44 - assertion arg 0']
  #allocation17 [shape = 'u32[]', space=smem, size = 0x4, offset = 0x48, fixed_abs, tag = 'smem constant byte address 0x48 - assertion arg 1']
  #allocation18 [shape = 's32[]', space=sflag, size = 0x4, offset = 0, fixed_abs, tag = 'sflag constant byte address 0x0 - dummy sync flag']
  %s0 = inlined_call_operand.vmem [shape: f32[16,8], index: 0, kind: input, shape index: {}]
  %s1 = inlined_call_operand.hbm [shape: bf16[16,16], index: 1, kind: input, shape index: {}]
  %s2 = inlined_call_operand.vmem [shape: f32[2,16], index: 2, kind: input, shape index: {}]
  %s3 = inlined_call_operand.vmem [shape: f32[16,2], index: 3, kind: input, shape index: {}]
  %s4 = inlined_call_operand.vmem [shape: f32[2,1], index: 4, kind: input, shape index: {}]
  %s5 = inlined_call_operand.hbm [shape: bf16[8,32], index: 5, kind: input, shape index: {}]
  %s6 = inlined_call_operand.vmem [shape: bf16[32,32], index: 6, kind: input, shape index: {}]
  %s7 = inlined_call_operand.hbm [shape: f32[2,32], index: 7, kind: input, shape index: {}]
  %s8 = inlined_call_operand.vmem [shape: f32[32,2], index: 8, kind: input, shape index: {}]
  %s9 = inlined_call_operand.hbm [shape: f32[8,32], index: 9, kind: input, shape index: {}]
  %s10 = inlined_call_operand.vmem [shape: f32[16,32], index: 10, kind: input, shape index: {}]
  %s11 = inlined_call_operand.vmem [shape: f32[16,32], index: 11, kind: input, shape index: {}]
  %s12 = inlined_call_operand.hbm [shape: bf16[64,4352], index: 12, kind: input, shape index: {}]
  %s13 = inlined_call_operand.vmem [shape: f32[1,4352], index: 13, kind: input, shape index: {}]
  %s14 = inlined_call_operand.hbm [shape: f32[2,4352], index: 14, kind: output, shape index: {}]
  %s15 = sld [smem:[#allocation0]]
  $region115: #{gnn_mg_fo_forward.1} parent=0
    _
  %s17 = ssub.s32 1, %s15
  %s18 = scalar_select 0, %s17, %s15
  $region1: #{gnn_mg_fo_forward.1} parent=0
    #allocation5 [shape = 'u8[4096]{0}', space=vmem, size = 0x1000, scoped, tag = 'input window, operand 1, single buffered']
    #allocation6 [shape = 's32[1]{0}', space=sflag, size = 0x4, scoped, tag = 'scoped memory for gnn_mg_fo_forward.1']
    #allocation7 [shape = 's32[1]{0}', space=sflag, size = 0x4, scoped, tag = 'scoped memory for gnn_mg_fo_forward.1']
    #allocation8 [shape = 'u8[2048]{0}', space=vmem, size = 0x800, scoped, tag = 'input window, operand 5, single buffered']
    #allocation9 [shape = 's32[1]{0}', space=sflag, size = 0x4, scoped, tag = 'scoped memory for gnn_mg_fo_forward.1']
    #allocation10 [shape = 'u8[1024]{0}', space=vmem, size = 0x400, scoped, tag = 'input window, operand 7, single buffered']
    #allocation11 [shape = 'u8[4096]{0}', space=vmem, size = 0x1000, scoped, tag = 'input window, operand 9, single buffered']
    #allocation12 [shape = 's32[1]{0}', space=sflag, size = 0x4, scoped, tag = 'scoped memory for gnn_mg_fo_forward.1']
    #allocation13 [shape = 'u8[34816]{0}', space=vmem, size = 0x8800, scoped, tag = 'output window, operand 0, single buffered']
    %19 = vsyncpa [#allocation6], 0
    %20 = vsyncpa [#allocation9], 0
    %21 = vsyncpa [#allocation12], 0
    %22 = vsyncpa [#allocation7], 0
    // Predicated region
    $region2: #{gnn_mg_fo_forward.1} parent=1 // pred_check
      _
    $region3: #{gnn_mg_fo_forward.1} parent=1 // pred_check_branch
      %24 = sbr.rel (0) target = $region5
    $region4: #{gnn_mg_fo_forward.1} parent=1 // pred_region
      _
    $region5: #{gnn_mg_fo_forward.1} parent=1 // pred_fallthru
      _
    // Predicated region
    $region6: #{gnn_mg_fo_forward.1} parent=1 // pred_check
      _
    $region7: #{gnn_mg_fo_forward.1} parent=1 // pred_check_branch
      %26 = sbr.rel (0) target = $region9
    $region8: #{gnn_mg_fo_forward.1} parent=1 // pred_region
      %s28 = ssub.s32 128, 128
      %29 = vsyncadd [#allocation6], %s28
      %s30 = sshll.u32 [#allocation5], 4
      %s31 = int_to_ptr.vmem [resolvable:$true] %s30
      %36 = dma.hbm_to_vmem [thread:$0]  %s1, 128, %s31, [#allocation6], 64, 64, 4
    $region9: #{gnn_mg_fo_forward.1} parent=1 // pred_fallthru
      _
    // Predicated region
    $region10: #{gnn_mg_fo_forward.1} parent=1 // pred_check
      _
    $region11: #{gnn_mg_fo_forward.1} parent=1 // pred_check_branch
      %38 = sbr.rel (0) target = $region13
    $region12: #{gnn_mg_fo_forward.1} parent=1 // pred_region
      _
    $region13: #{gnn_mg_fo_forward.1} parent=1 // pred_fallthru
      _
    // Predicated region
    $region14: #{gnn_mg_fo_forward.1} parent=1 // pred_check
      _
    $region15: #{gnn_mg_fo_forward.1} parent=1 // pred_check_branch
      %40 = sbr.rel (0) target = $region17
    $region16: #{gnn_mg_fo_forward.1} parent=1 // pred_region
      _
    $region17: #{gnn_mg_fo_forward.1} parent=1 // pred_fallthru
      _
    // Predicated region
    $region18: #{gnn_mg_fo_forward.1} parent=1 // pred_check
      _
    $region19: #{gnn_mg_fo_forward.1} parent=1 // pred_check_branch
      %42 = sbr.rel (0) target = $region21
    $region20: #{gnn_mg_fo_forward.1} parent=1 // pred_region
      _
    $region21: #{gnn_mg_fo_forward.1} parent=1 // pred_fallthru
      _
    // Predicated region
    $region22: #{gnn_mg_fo_forward.1} parent=1 // pred_check
      _
    $region23: #{gnn_mg_fo_forward.1} parent=1 // pred_check_branch
      %44 = sbr.rel (0) target = $region25
    $region24: #{gnn_mg_fo_forward.1} parent=1 // pred_region
      %s46 = ssub.s32 64, 64
      %47 = vsyncadd [#allocation9], %s46
      %s49 = sshll.u32 [#allocation8], 4
      %s50 = int_to_ptr.vmem [resolvable:$true] %s49
      %52 = dma.hbm_to_vmem [thread:$0]  %s5, 64, %s50, [#allocation9]
    $region25: #{gnn_mg_fo_forward.1} parent=1 // pred_fallthru
      _
    // Predicated region
    $region26: #{gnn_mg_fo_forward.1} parent=1 // pred_check
      _
    $region27: #{gnn_mg_fo_forward.1} parent=1 // pred_check_branch
      %54 = sbr.rel (0) target = $region29
    $region28: #{gnn_mg_fo_forward.1} parent=1 // pred_region
      _
    $region29: #{gnn_mg_fo_forward.1} parent=1 // pred_fallthru
      _
    // Predicated region
    $region30: #{gnn_mg_fo_forward.1} parent=1 // pred_check
      _
    $region31: #{gnn_mg_fo_forward.1} parent=1 // pred_check_branch
      %56 = sbr.rel (0) target = $region33
    $region32: #{gnn_mg_fo_forward.1} parent=1 // pred_region
      %s58 = ssub.s32 32, 32
      %59 = vsyncadd [#allocation9], %s58
      %s61 = sshll.u32 [#allocation10], 4
      %s62 = int_to_ptr.vmem [resolvable:$true] %s61
      %64 = dma.hbm_to_vmem [thread:$0]  %s7, 32, %s62, [#allocation9]
    $region33: #{gnn_mg_fo_forward.1} parent=1 // pred_fallthru
      _
    // Predicated region
    $region34: #{gnn_mg_fo_forward.1} parent=1 // pred_check
      _
    $region35: #{gnn_mg_fo_forward.1} parent=1 // pred_check_branch
      %66 = sbr.rel (0) target = $region37
    $region36: #{gnn_mg_fo_forward.1} parent=1 // pred_region
      _
    $region37: #{gnn_mg_fo_forward.1} parent=1 // pred_fallthru
      _
    // Predicated region
    $region38: #{gnn_mg_fo_forward.1} parent=1 // pred_check
      _
    $region39: #{gnn_mg_fo_forward.1} parent=1 // pred_check_branch
      %68 = sbr.rel (0) target = $region41
    $region40: #{gnn_mg_fo_forward.1} parent=1 // pred_region
      %s70 = ssub.s32 128, 128
      %71 = vsyncadd [#allocation12], %s70
      %s73 = sshll.u32 [#allocation11], 4
      %s74 = int_to_ptr.vmem [resolvable:$true] %s73
      %76 = dma.hbm_to_vmem [thread:$0]  %s9, 128, %s74, [#allocation12]
    $region41: #{gnn_mg_fo_forward.1} parent=1 // pred_fallthru
      _
    // Predicated region
    $region42: #{gnn_mg_fo_forward.1} parent=1 // pred_check
      _
    $region43: #{gnn_mg_fo_forward.1} parent=1 // pred_check_branch
      %78 = sbr.rel (0) target = $region45
    $region44: #{gnn_mg_fo_forward.1} parent=1 // pred_region
      _
    $region45: #{gnn_mg_fo_forward.1} parent=1 // pred_fallthru
      _
    // Predicated region
    $region46: #{gnn_mg_fo_forward.1} parent=1 // pred_check
      _
    $region47: #{gnn_mg_fo_forward.1} parent=1 // pred_check_branch
      %80 = sbr.rel (0) target = $region49
    $region48: #{gnn_mg_fo_forward.1} parent=1 // pred_region
      _
    $region49: #{gnn_mg_fo_forward.1} parent=1 // pred_fallthru
      _
    // Predicated region
    $region50: #{gnn_mg_fo_forward.1} parent=1 // pred_check
      _
    $region51: #{gnn_mg_fo_forward.1} parent=1 // pred_check_branch
      %82 = sbr.rel (0) target = $region53
    $region52: #{gnn_mg_fo_forward.1} parent=1 // pred_region
      %83 = dma.done [#allocation6], 128
    $region53: #{gnn_mg_fo_forward.1} parent=1 // pred_fallthru
      _
    // Predicated region
    $region54: #{gnn_mg_fo_forward.1} parent=1 // pred_check
      _
    $region55: #{gnn_mg_fo_forward.1} parent=1 // pred_check_branch
      %85 = sbr.rel (0) target = $region57
    $region56: #{gnn_mg_fo_forward.1} parent=1 // pred_region
      %86 = dma.done [#allocation9], 64
    $region57: #{gnn_mg_fo_forward.1} parent=1 // pred_fallthru
      _
    // Predicated region
    $region58: #{gnn_mg_fo_forward.1} parent=1 // pred_check
      _
    $region59: #{gnn_mg_fo_forward.1} parent=1 // pred_check_branch
      %88 = sbr.rel (0) target = $region61
    $region60: #{gnn_mg_fo_forward.1} parent=1 // pred_region
      %89 = dma.done [#allocation9], 32
    $region61: #{gnn_mg_fo_forward.1} parent=1 // pred_fallthru
      _
    // Predicated region
    $region62: #{gnn_mg_fo_forward.1} parent=1 // pred_check
      _
    $region63: #{gnn_mg_fo_forward.1} parent=1 // pred_check_branch
      %91 = sbr.rel (0) target = $region65
    $region64: #{gnn_mg_fo_forward.1} parent=1 // pred_region
      %92 = dma.done [#allocation12], 128
    $region65: #{gnn_mg_fo_forward.1} parent=1 // pred_fallthru
      _
    // Predicated region
    $region66: #{gnn_mg_fo_forward.1} parent=1 // pred_check
      _
    $region67: #{gnn_mg_fo_forward.1} parent=1 // pred_check_branch
      %95 = sbr.rel target = $region69
    $region68: #{gnn_mg_fo_forward.1} parent=1 // pred_region
      %96 = sst [smem:[#allocation16]] [#allocation15]
      %97 = sst [smem:[#allocation17]] [#allocation14]
    $region69: #{gnn_mg_fo_forward.1} parent=1 // pred_fallthru
      _
    %99 = shalt.err (0)
    %s101 = sshll.u32 [#allocation2], 4
    %s102 = int_to_ptr.vmem [resolvable:$true] %s101
    %104 = dma.hbm_to_vmem [thread:$0]  %s12, 17408, %s102, [#allocation4]
    %s105 = scalar_lea.sflag [#allocation4], 1
    %p107 = scmp.lt.u32.totalorder 34, 8
    %p108 = pneg %p107
    // Predicated region
    $region70: #{gnn_mg_fo_forward.1} parent=1 // pred_check
      _
    $region71: #{gnn_mg_fo_forward.1} parent=1 // pred_check_branch
      %110 = sbr.rel (%p107) target = $region73
    $region72: #{gnn_mg_fo_forward.1} parent=1 // pred_region
      %s126 = sand.u32 34, 7
      %p127 = scmp.eq.s32.totalorder %s126, 0
      %p128 = pneg %p127
      // Predicated region
      $region85: #{gnn_mg_fo_forward.1} parent=72 // pred_check
        _
      $region86: #{gnn_mg_fo_forward.1} parent=72 // pred_check_branch
        %130 = sbr.rel (%p127) target = $region88
      $region87: #{gnn_mg_fo_forward.1} parent=72 // pred_region
        %s131 = sand.u32 34, 7
        %s132 = ssub.s32 34, %s131
        %s133 = scalar_lea.vmem %s13, %s132
        %s134 = ssub.s32 34, %s131
        %s135 = scalar_lea.vmem [#allocation3], %s134
        loop: start=0, step=1, limit=1
        $region89: #{gnn_mg_fo_forward.1} parent=87 // loop_pre_header
          _
        $region90: #{gnn_mg_fo_forward.1} parent=87 // loop_header
          %s137 = sphi 0, %s141
          %p138 = scmp.ge.s32.totalorder %s137, 1
          %s142 = sphi %s13, %s13
          %s143 = sphi [#allocation3], [#allocation3]
        $region91: #{gnn_mg_fo_forward.1} parent=87 // loop_header_branch
          %140 = sbr.rel (%p138) target = $region95
        $region92: #{gnn_mg_fo_forward.1} parent=87 // loop_body
          %v144 = vld [vmem:[%s142] sm:$0xff]
          %145 = vst [vmem:[%s143] sm:$0xff] %v144
          %v146 = vld [vmem:[%s142 + $0x8] sm:$0xff]
          %147 = vst [vmem:[%s143 + $0x8] sm:$0xff] %v146
          %v148 = vld [vmem:[%s142 + $0x10] sm:$0xff]
          %149 = vst [vmem:[%s143 + $0x10] sm:$0xff] %v148
          %v150 = vld [vmem:[%s142 + $0x18] sm:$0xff]
          %151 = vst [vmem:[%s143 + $0x18] sm:$0xff] %v150
        $region93: #{gnn_mg_fo_forward.1} parent=87 // loop_footer
          %s141 = sadd.s32 1, %s137
        $region94: #{gnn_mg_fo_forward.1} parent=87 // loop_footer_branch
          %136 = sbr.rel target = $region90
        $region95: #{gnn_mg_fo_forward.1} parent=87 // loop_exit
          _
        %s152 = sshll.u32 1, %s131
        %s153 = ssub.s32 %s152, 1
        loop: start=0, step=1, limit=1
        $region96: #{gnn_mg_fo_forward.1} parent=87 // loop_pre_header
          _
        $region97: #{gnn_mg_fo_forward.1} parent=87 // loop_header
          %s155 = sphi 0, %s159
          %p156 = scmp.ge.s32.totalorder %s155, 1
          %s160 = sphi %s133, %s133
          %s161 = sphi %s135, %s135
        $region98: #{gnn_mg_fo_forward.1} parent=87 // loop_header_branch
          %158 = sbr.rel (%p156) target = $region102
        $region99: #{gnn_mg_fo_forward.1} parent=87 // loop_body
          %v162 = vld [vmem:[%s160] sm:%s153]
          %163 = vst [vmem:[%s161] sm:%s153] %v162
        $region100: #{gnn_mg_fo_forward.1} parent=87 // loop_footer
          %s159 = sadd.s32 1, %s155
        $region101: #{gnn_mg_fo_forward.1} parent=87 // loop_footer_branch
          %154 = sbr.rel target = $region97
        $region102: #{gnn_mg_fo_forward.1} parent=87 // loop_exit
          _
      $region88: #{gnn_mg_fo_forward.1} parent=72 // pred_fallthru
        _
    $region73: #{gnn_mg_fo_forward.1} parent=1 // pred_fallthru
      _
    // Predicated region
    $region74: #{gnn_mg_fo_forward.1} parent=1 // pred_check
      %p111 = pneg %p107
    $region75: #{gnn_mg_fo_forward.1} parent=1 // pred_check_branch
      %113 = sbr.rel (%p111) target = $region77
    $region76: #{gnn_mg_fo_forward.1} parent=1 // pred_region
      %s114 = sshll.u32 1, 34
      %s115 = ssub.s32 %s114, 1
      loop: start=0, step=1, limit=1
      $region78: #{gnn_mg_fo_forward.1} parent=76 // loop_pre_header
        _
      $region79: #{gnn_mg_fo_forward.1} parent=76 // loop_header
        %s117 = sphi 0, %s121
        %p118 = scmp.ge.s32.totalorder %s117, 1
        %s122 = sphi %s13, %s13
        %s123 = sphi [#allocation3], [#allocation3]
      $region80: #{gnn_mg_fo_forward.1} parent=76 // loop_header_branch
        %120 = sbr.rel (%p118) target = $region84
      $region81: #{gnn_mg_fo_forward.1} parent=76 // loop_body
        %v124 = vld [vmem:[%s122] sm:%s115]
        %125 = vst [vmem:[%s123] sm:%s115] %v124
      $region82: #{gnn_mg_fo_forward.1} parent=76 // loop_footer
        %s121 = sadd.s32 1, %s117
      $region83: #{gnn_mg_fo_forward.1} parent=76 // loop_footer_branch
        %116 = sbr.rel target = $region79
      $region84: #{gnn_mg_fo_forward.1} parent=76 // loop_exit
        _
    $region77: #{gnn_mg_fo_forward.1} parent=1 // pred_fallthru
      _
    // Predicated region
    $region103: #{gnn_mg_fo_forward.1} parent=1 // pred_check
      _
    $region104: #{gnn_mg_fo_forward.1} parent=1 // pred_check_branch
      %166 = sbr.rel (0) target = $region106
    $region105: #{gnn_mg_fo_forward.1} parent=1 // pred_region
      %167 = vsyncadd %s105, 544
    $region106: #{gnn_mg_fo_forward.1} parent=1 // pred_fallthru
      _
    %v168 = vld [vmem:[#allocation5] sm:$0xf]
    %v169 = vld [vmem:[#allocation5 + $0x4] sm:$0xf]
    %v170 = vunpack.c.l.bf16 %v168
    %v171 = vunpack.c.l.bf16 %v169
    %v172 = vld [vmem:[#allocation11] sm:$0x1]
    %v173 = vld [vmem:[#allocation11 + $0x1] sm:$0x1]
    %v174 = vld [vmem:[#allocation11 + $0x2] sm:$0x1]
    %v175 = vld [vmem:[#allocation11 + $0x3] sm:$0x1]
    %v176 = vld [vmem:[#allocation11 + $0x4] sm:$0x1]
    %v177 = vld [vmem:[#allocation11 + $0x5] sm:$0x1]
    %v178 = vld [vmem:[#allocation11 + $0x6] sm:$0x1]
    %v179 = vld [vmem:[%s0] sm:$0xff]
    %v180 = vld [vmem:[%s0 + $0x8] sm:$0xff]
    %v181 = vld [vmem:[#allocation8] sm:$0xf]
    %v182 = vld [vmem:[#allocation10] sm:$0x1]
    %v183 = vpack.c.bf16 %v182, %v182
    %v184 = vld [vmem:[%s8] sm:$0xff]
    %v185 = vld [vmem:[%s8 + $0x8] sm:$0xff]
    %v186 = vld [vmem:[%s8 + $0x10] sm:$0xff]
    %v187 = vld [vmem:[%s8 + $0x18] sm:$0xff]
    %v188 = vpack.c.bf16 %v185, %v184
    %v189 = vpack.c.bf16 %v187, %v186
    %v190 = vld [vmem:[%s10] sm:$0xff]
    %v191 = vld [vmem:[%s10 + $0x8] sm:$0xff]
    %v192 = vpack.c.bf16 %v180, %v179
    %vm193 = vcmask 64512
    %v195 = vsel %vm193, %v192, 0
    %vm197 = vcmask 1043456
    %v199 = vsel %vm197, %v181, 0
    %201 = vmatprep.subr.bf16.mxu0 0
    %202 = vmatpush1.bf16.msra.mxu0 0
    %203 = vmatprep.subr.bf16.mxu0 0
    %204 = vmatpush1.bf16.msra.mxu0 0
    %205 = vmatprep.subr.bf16.mxu0 0
    %206 = vmatpush1.bf16.msra.mxu0 0
    %207 = vmatprep.subr.bf16.mxu0 0
    %208 = vmatpush1.bf16.msra.mxu0 0
    %209 = vmatprep.subr.bf16.mxu0 0
    %210 = vmatpush1.bf16.msra.mxu0 0
    %211 = vmatprep.subr.bf16.mxu0 0
    %212 = vmatpush1.bf16.msra.mxu0 0
    %213 = vmatprep.subr.bf16.mxu0 0
    %214 = vmatpush1.bf16.msra.mxu0 0
    %215 = vmatprep.subr.bf16.mxu0 0
    %216 = vmatpush1.bf16.msra.mxu0 %v199
    %217 = vmatprep.subr.bf16.mxu0 0
    %218 = vmatpush2.bf16.msra.mxu0 0
    %219 = vmatprep.subr.bf16.mxu0 0
    %220 = vmatpush2.bf16.msra.mxu0 0
    %221 = vmatprep.subr.bf16.mxu0 0
    %222 = vmatpush2.bf16.msra.mxu0 0
    %223 = vmatprep.subr.bf16.mxu0 0
    %224 = vmatpush2.bf16.msra.mxu0 0
    %225 = vmatprep.subr.bf16.mxu0 0
    %226 = vmatpush2.bf16.msra.mxu0 0
    %227 = vmatprep.subr.bf16.mxu0 0
    %228 = vmatpush2.bf16.msra.mxu0 0
    %229 = vmatprep.subr.bf16.mxu0 0
    %230 = vmatpush2.bf16.msra.mxu0 0
    %231 = vmatprep.subr.bf16.mxu0 0
    %232 = vmatpush2.bf16.msra.mxu0 0
    %233 = vmatprep.mubr.bf16.mxu0 0
    %234 = vmatmul.mubr.bf16.gmra.mxu0 %v195
    %v235 = vpop.f32.mrf.mxu0
    %v236 = vadd.f32 0.0, %v235
    %v237 = vpop.f32.mrf.mxu0
    %v238 = vpop.f32.mrf.mxu0
    %v239 = vadd.f32 0.0, %v238
    %v240 = vpop.f32.mrf.mxu0
    %241 = vdwg.mxu0
    %v242 = vpack.c.bf16 %v239, %v236
    %vm243 = vcmask 261120
    %v245 = vsel %vm243, %v242, 0
    %247 = vmatprep.subr.bf16.mxu0 0
    %248 = vmatpush1.bf16.msra.mxu0 0
    %249 = vmatprep.subr.bf16.mxu0 0
    %250 = vmatpush1.bf16.msra.mxu0 0
    %251 = vmatprep.subr.bf16.mxu0 0
    %252 = vmatpush1.bf16.msra.mxu0 0
    %253 = vmatprep.subr.bf16.mxu0 0
    %254 = vmatpush1.bf16.msra.mxu0 0
    %255 = vmatprep.subr.bf16.mxu0 0
    %256 = vmatpush1.bf16.msra.mxu0 0
    %257 = vmatprep.subr.bf16.mxu0 0
    %258 = vmatpush1.bf16.msra.mxu0 0
    %259 = vmatprep.subr.bf16.mxu0 0
    %260 = vmatpush1.bf16.msra.mxu0 %v189
    %261 = vmatprep.subr.bf16.mxu0 0
    %262 = vmatpush1.bf16.msra.mxu0 %v188
    %263 = vmatprep.subr.bf16.mxu0 0
    %264 = vmatpush2.bf16.msra.mxu0 0
    %265 = vmatprep.subr.bf16.mxu0 0
    %266 = vmatpush2.bf16.msra.mxu0 0
    %267 = vmatprep.subr.bf16.mxu0 0
    %268 = vmatpush2.bf16.msra.mxu0 0
    %269 = vmatprep.subr.bf16.mxu0 0
    %270 = vmatpush2.bf16.msra.mxu0 0
    %271 = vmatprep.subr.bf16.mxu0 0
    %272 = vmatpush2.bf16.msra.mxu0 0
    %273 = vmatprep.subr.bf16.mxu0 0
    %274 = vmatpush2.bf16.msra.mxu0 0
    %275 = vmatprep.subr.bf16.mxu0 0
    %276 = vmatpush2.bf16.msra.mxu0 0
    %277 = vmatprep.subr.bf16.mxu0 0
    %278 = vmatpush2.bf16.msra.mxu0 0
    %279 = vmatprep.mubr.bf16.mxu0 0
    %280 = vmatmul.mubr.bf16.gmra.mxu0 %v245
    %v281 = vpop.f32.mrf.mxu0
    %v282 = vadd.f32 0.0, %v281
    %v283 = vpop.f32.mrf.mxu0
    %v284 = vpop.f32.mrf.mxu0
    %v285 = vadd.f32 0.0, %v284
    %v286 = vpop.f32.mrf.mxu0
    %287 = vdwg.mxu0
    %v289 = vsel %vm243, %v183, 0
    %291 = vmatprep.subr.bf16.mxu0 0
    %292 = vmatpush1.bf16.xpose.msra.mxu0 0
    %293 = vmatprep.subr.bf16.mxu0 0
    %294 = vmatpush1.bf16.xpose.msra.mxu0 0
    %295 = vmatprep.subr.bf16.mxu0 0
    %296 = vmatpush1.bf16.xpose.msra.mxu0 0
    %297 = vmatprep.subr.bf16.mxu0 0
    %298 = vmatpush1.bf16.xpose.msra.mxu0 0
    %299 = vmatprep.subr.bf16.mxu0 0
    %300 = vmatpush1.bf16.xpose.msra.mxu0 0
    %301 = vmatprep.subr.bf16.mxu0 0
    %302 = vmatpush1.bf16.xpose.msra.mxu0 0
    %303 = vmatprep.subr.bf16.mxu0 0
    %304 = vmatpush1.bf16.xpose.msra.mxu0 0
    %305 = vmatprep.subr.bf16.mxu0 0
    %306 = vmatpush1.bf16.xpose.msra.mxu0 %v245
    %307 = vmatprep.subr.bf16.mxu0 0
    %308 = vmatpush2.bf16.xpose.msra.mxu0 0
    %309 = vmatprep.subr.bf16.mxu0 0
    %310 = vmatpush2.bf16.xpose.msra.mxu0 0
    %311 = vmatprep.subr.bf16.mxu0 0
    %312 = vmatpush2.bf16.xpose.msra.mxu0 0
    %313 = vmatprep.subr.bf16.mxu0 0
    %314 = vmatpush2.bf16.xpose.msra.mxu0 0
    %315 = vmatprep.subr.bf16.mxu0 0
    %316 = vmatpush2.bf16.xpose.msra.mxu0 0
    %317 = vmatprep.subr.bf16.mxu0 0
    %318 = vmatpush2.bf16.xpose.msra.mxu0 0
    %319 = vmatprep.subr.bf16.mxu0 0
    %320 = vmatpush2.bf16.xpose.msra.mxu0 0
    %321 = vmatprep.subr.bf16.mxu0 0
    %322 = vmatpush2.bf16.xpose.msra.mxu0 0
    %323 = vmatprep.mubr.bf16.mxu0 0
    %324 = vmatmul.mubr.bf16.gmra.mxu0 %v289
    %v325 = vpop.f32.mrf.mxu0
    %v326 = vadd.f32 0.0, %v325
    %v327 = vpop.f32.mrf.mxu0
    %v328 = vpop.f32.mrf.mxu0
    %v329 = vpop.f32.mrf.mxu0
    %330 = vdwg.mxu0
    %332 = vset.pattern.permute.xlu0 0
    %333 = vperm.xlu0 %332, %v282
    %v334 = vpop.permute.xlu0 %333
    %337 = vset.pattern.permute.xlu0 0
    %338 = vperm.xlu0 %337, %v285
    %v339 = vpop.permute.xlu0 %338
    %v341 = vlaneseq
    %v342 = vshrl.u32 %v341, 7
    %v343 = vsub.s32 0, %v342
    %v344 = vrot.slane %v326, %v343
    %v345 = vadd.f32 %v334, %v344
    %v346 = vadd.f32 %v339, %v344
    %vm347 = vcmp.gt.f32.partialorder %v345, 0.0
    %vm348 = vcmp.gt.f32.partialorder %v346, 0.0
    %v349 = vmul.f32 %v345, 0.2
    %v350 = vmul.f32 %v346, 0.2
    %v351 = vsel %vm347, %v345, %v349
    %v352 = vsel %vm348, %v346, %v350
    %v353 = vadd.f32 %v351, %v170
    %v354 = vadd.f32 %v352, %v171
    %vm355 = vcmask 130048
    %v356 = vsel %vm355, %v353, -inf
    %357 = vmax.xlane.f32.xlu0 %v356
    %v358 = vpop.xlane.xlu0 %357
    %v359 = vsel %vm355, %v354, -inf
    %360 = vmax.xlane.f32.xlu0 %v359
    %v361 = vpop.xlane.xlu0 %360
    %v362 = vsub.f32 %v353, %v358
    %v363 = vsub.f32 %v354, %v361
    %v364 = vmul.f32 %v362, 1.442695
    %v365 = vpow.pop %v364
    %v366 = vmul.f32 %v363, 1.442695
    %v367 = vpow.pop %v366
    %v368 = vsel %vm355, %v365, 0.0
    %369 = vadd.xlane.f32.xlu0 %v368
    %v370 = vpop.xlane.xlu0 %369
    %v371 = vsel %vm355, %v367, 0.0
    %372 = vadd.xlane.f32.xlu0 %v371
    %v373 = vpop.xlane.xlu0 %372
    %v374 = vrcp.pop %v370
    %v375 = vrcp.pop %v373
    %v376 = vmul.f32 %v365, %v374
    %v377 = vmul.f32 %v367, %v375
    %v378 = vpack.c.bf16 %v377, %v376
    %v379 = vlaneseq
    %v380 = vshrl.u32 %v379, 7
    %v381 = vsub.s32 0, %v380
    %v382 = vrot.slane %v172, %v381
    %v384 = vsel %vm355, %v378, 0
    %386 = vmatprep.subr.bf16.mxu0 0
    %387 = vmatpush1.bf16.msra.mxu0 0
    %388 = vmatprep.subr.bf16.mxu0 0
    %389 = vmatpush1.bf16.msra.mxu0 0
    %390 = vmatprep.subr.bf16.mxu0 0
    %391 = vmatpush1.bf16.msra.mxu0 0
    %392 = vmatprep.subr.bf16.mxu0 0
    %393 = vmatpush1.bf16.msra.mxu0 0
    %394 = vmatprep.subr.bf16.mxu0 0
    %395 = vmatpush1.bf16.msra.mxu0 0
    %396 = vmatprep.subr.bf16.mxu0 0
    %397 = vmatpush1.bf16.msra.mxu0 0
    %398 = vmatprep.subr.bf16.mxu0 0
    %399 = vmatpush1.bf16.msra.mxu0 0
    %400 = vmatprep.subr.bf16.mxu0 0
    %401 = vmatpush1.bf16.msra.mxu0 %v242
    %402 = vmatprep.subr.bf16.mxu0 0
    %403 = vmatpush2.bf16.msra.mxu0 0
    %404 = vmatprep.subr.bf16.mxu0 0
    %405 = vmatpush2.bf16.msra.mxu0 0
    %406 = vmatprep.subr.bf16.mxu0 0
    %407 = vmatpush2.bf16.msra.mxu0 0
    %408 = vmatprep.subr.bf16.mxu0 0
    %409 = vmatpush2.bf16.msra.mxu0 0
    %410 = vmatprep.subr.bf16.mxu0 0
    %411 = vmatpush2.bf16.msra.mxu0 0
    %412 = vmatprep.subr.bf16.mxu0 0
    %413 = vmatpush2.bf16.msra.mxu0 0
    %414 = vmatprep.subr.bf16.mxu0 0
    %415 = vmatpush2.bf16.msra.mxu0 0
    %416 = vmatprep.subr.bf16.mxu0 0
    %417 = vmatpush2.bf16.msra.mxu0 0
    %418 = vmatprep.mubr.bf16.mxu0 0
    %419 = vmatmul.mubr.bf16.gmra.mxu0 %v384
    %v420 = vpop.f32.mrf.mxu0
    %v421 = vadd.f32 %v382, %v420
    %v422 = vpop.f32.mrf.mxu0
    %v423 = vpop.f32.mrf.mxu0
    %v424 = vadd.f32 %v382, %v423
    %v425 = vpop.f32.mrf.mxu0
    %426 = vdwg.mxu0
    %v427 = vtanh.pop %v421
    %v428 = vtanh.pop %v424
    %v429 = vmul.f32 %v427, %v190
    %v430 = vmul.f32 %v428, %v191
    %v431 = vsel %vm243, %v429, 0.0
    %v432 = vsel %vm243, %v430, 0.0
    %v433 = vadd.f32 %v431, %v432
    %v434 = vrot.slane %v433, 4
    %v435 = vadd.f32 %v433, %v434
    %v436 = vrot.slane %v435, 2
    %v437 = vadd.f32 %v435, %v436
    %v438 = vrot.slane %v437, 1
    %v439 = vadd.f32 %v437, %v438
    %v440 = vrcp.pop 16.0
    %v441 = vmul.f32 %v439, %v440
    %v442 = vsub.f32 %v429, %v441
    %v443 = vsub.f32 %v430, %v441
    %v444 = vmul.f32 %v442, %v442
    %v445 = vmul.f32 %v443, %v443
    %v446 = vsel %vm243, %v444, 0.0
    %v447 = vsel %vm243, %v445, 0.0
    %v448 = vadd.f32 %v446, %v447
    %v449 = vrot.slane %v448, 4
    %v450 = vadd.f32 %v448, %v449
    %v451 = vrot.slane %v450, 2
    %v452 = vadd.f32 %v450, %v451
    %v453 = vrot.slane %v452, 1
    %v454 = vadd.f32 %v452, %v453
    %v455 = vmul.f32 %v454, %v440
    %v456 = vadd.f32 %v455, 1e-05
    %v457 = vrsqrt.pop %v456
    %v458 = vmul.f32 %v442, %v457
    %v459 = vmul.f32 %v443, %v457
    %v460 = vlaneseq
    %v461 = vshrl.u32 %v460, 7
    %v462 = vsub.s32 0, %v461
    %v463 = vrot.slane %v174, %v462
    %v464 = vmul.f32 %v458, %v463
    %v465 = vmul.f32 %v459, %v463
    %v466 = vlaneseq
    %v467 = vshrl.u32 %v466, 7
    %v468 = vsub.s32 0, %v467
    %v469 = vrot.slane %v175, %v468
    %v470 = vadd.f32 %v464, %v469
    %v471 = vadd.f32 %v465, %v469
    %v472 = vld [vmem:[%s2] sm:$0x3]
    %v473 = vld [vmem:[%s3] sm:$0xff]
    %v474 = vld [vmem:[%s3 + $0x8] sm:$0xff]
    %v475 = vld [vmem:[%s4] sm:$0x3]
    %v477 = vsel %vm355, %v472, 0
    %479 = vmatprep.subr.mxu0 0.0
    %480 = vmatpush1.msra.mxu0 0.0
    %481 = vmatprep.subr.mxu0 0.0
    %482 = vmatpush1.msra.mxu0 0.0
    %483 = vmatprep.subr.mxu0 0.0
    %484 = vmatpush1.msra.mxu0 0.0
    %485 = vmatprep.subr.mxu0 0.0
    %486 = vmatpush1.msra.mxu0 0.0
    %487 = vmatprep.subr.mxu0 0.0
    %488 = vmatpush1.msra.mxu0 0.0
    %489 = vmatprep.subr.mxu0 0.0
    %490 = vmatpush1.msra.mxu0 0.0
    %491 = vmatprep.subr.mxu0 0.0
    %492 = vmatpush1.msra.mxu0 0.0
    %493 = vmatprep.subr.mxu0 0.0
    %494 = vmatpush1.msra.mxu0 0.0
    %495 = vmatprep.subr.mxu0 0.0
    %496 = vmatpush1.msra.mxu0 0.0
    %497 = vmatprep.subr.mxu0 0.0
    %498 = vmatpush1.msra.mxu0 0.0
    %499 = vmatprep.subr.mxu0 0.0
    %500 = vmatpush1.msra.mxu0 0.0
    %501 = vmatprep.subr.mxu0 0.0
    %502 = vmatpush1.msra.mxu0 0.0
    %503 = vmatprep.subr.mxu0 0.0
    %504 = vmatpush1.msra.mxu0 0.0
    %505 = vmatprep.subr.mxu0 0.0
    %506 = vmatpush1.msra.mxu0 0.0
    %507 = vmatprep.subr.mxu0 0.0
    %508 = vmatpush1.msra.mxu0 %v471
    %509 = vmatprep.subr.mxu0 0.0
    %510 = vmatpush1.msra.mxu0 %v470
    %511 = vmatprep.subr.mxu0 0.0
    %512 = vmatpush2.msra.mxu0 0.0
    %513 = vmatprep.subr.mxu0 0.0
    %514 = vmatpush2.msra.mxu0 0.0
    %515 = vmatprep.subr.mxu0 0.0
    %516 = vmatpush2.msra.mxu0 0.0
    %517 = vmatprep.subr.mxu0 0.0
    %518 = vmatpush2.msra.mxu0 0.0
    %519 = vmatprep.subr.mxu0 0.0
    %520 = vmatpush2.msra.mxu0 0.0
    %521 = vmatprep.subr.mxu0 0.0
    %522 = vmatpush2.msra.mxu0 0.0
    %523 = vmatprep.subr.mxu0 0.0
    %524 = vmatpush2.msra.mxu0 0.0
    %525 = vmatprep.subr.mxu0 0.0
    %526 = vmatpush2.msra.mxu0 0.0
    %527 = vmatprep.subr.mxu0 0.0
    %528 = vmatpush2.msra.mxu0 0.0
    %529 = vmatprep.subr.mxu0 0.0
    %530 = vmatpush2.msra.mxu0 0.0
    %531 = vmatprep.subr.mxu0 0.0
    %532 = vmatpush2.msra.mxu0 0.0
    %533 = vmatprep.subr.mxu0 0.0
    %534 = vmatpush2.msra.mxu0 0.0
    %535 = vmatprep.subr.mxu0 0.0
    %536 = vmatpush2.msra.mxu0 0.0
    %537 = vmatprep.subr.mxu0 0.0
    %538 = vmatpush2.msra.mxu0 0.0
    %539 = vmatprep.subr.mxu0 0.0
    %540 = vmatpush2.msra.mxu0 0.0
    %541 = vmatprep.subr.mxu0 0.0
    %542 = vmatpush2.msra.mxu0 0.0
    %543 = vmatprep.mubr.f32.mxu0 0.0
    %544 = vmatmul.mubr.f32.gmra.mxu0 %v477
    %v545 = vpop.f32.mrf.mxu0
    %v546 = vadd.f32 0.0, %v545
    %v547 = vpop.f32.mrf.mxu0
    %548 = vdwg.mxu0
    %550 = vset.pattern.permute.xlu0 0
    %551 = vperm.xlu0 %550, %v475
    %v552 = vpop.permute.xlu0 %551
    %v554 = vmul.f32 %v546, %v552
    %vm555 = vcmask 15360
    %v557 = vsel %vm555, %v473, 0
    %v560 = vsel %vm555, %v474, 0
    %vm562 = vcmask 1041408
    %v564 = vsel %vm562, %v554, 0
    %566 = vmatprep.subr.mxu0 0.0
    %567 = vmatpush1.msra.mxu0 0.0
    %568 = vmatprep.subr.mxu0 0.0
    %569 = vmatpush1.msra.mxu0 0.0
    %570 = vmatprep.subr.mxu0 0.0
    %571 = vmatpush1.msra.mxu0 0.0
    %572 = vmatprep.subr.mxu0 0.0
    %573 = vmatpush1.msra.mxu0 0.0
    %574 = vmatprep.subr.mxu0 0.0
    %575 = vmatpush1.msra.mxu0 0.0
    %576 = vmatprep.subr.mxu0 0.0
    %577 = vmatpush1.msra.mxu0 0.0
    %578 = vmatprep.subr.mxu0 0.0
    %579 = vmatpush1.msra.mxu0 0.0
    %580 = vmatprep.subr.mxu0 0.0
    %581 = vmatpush1.msra.mxu0 0.0
    %582 = vmatprep.subr.mxu0 0.0
    %583 = vmatpush1.msra.mxu0 0.0
    %584 = vmatprep.subr.mxu0 0.0
    %585 = vmatpush1.msra.mxu0 0.0
    %586 = vmatprep.subr.mxu0 0.0
    %587 = vmatpush1.msra.mxu0 0.0
    %588 = vmatprep.subr.mxu0 0.0
    %589 = vmatpush1.msra.mxu0 0.0
    %590 = vmatprep.subr.mxu0 0.0
    %591 = vmatpush1.msra.mxu0 0.0
    %592 = vmatprep.subr.mxu0 0.0
    %593 = vmatpush1.msra.mxu0 0.0
    %594 = vmatprep.subr.mxu0 0.0
    %595 = vmatpush1.msra.mxu0 0.0
    %596 = vmatprep.subr.mxu0 0.0
    %597 = vmatpush1.msra.mxu0 %v564
    %598 = vmatprep.subr.mxu0 0.0
    %599 = vmatpush2.msra.mxu0 0.0
    %600 = vmatprep.subr.mxu0 0.0
    %601 = vmatpush2.msra.mxu0 0.0
    %602 = vmatprep.subr.mxu0 0.0
    %603 = vmatpush2.msra.mxu0 0.0
    %604 = vmatprep.subr.mxu0 0.0
    %605 = vmatpush2.msra.mxu0 0.0
    %606 = vmatprep.subr.mxu0 0.0
    %607 = vmatpush2.msra.mxu0 0.0
    %608 = vmatprep.subr.mxu0 0.0
    %609 = vmatpush2.msra.mxu0 0.0
    %610 = vmatprep.subr.mxu0 0.0
    %611 = vmatpush2.msra.mxu0 0.0
    %612 = vmatprep.subr.mxu0 0.0
    %613 = vmatpush2.msra.mxu0 0.0
    %614 = vmatprep.subr.mxu0 0.0
    %615 = vmatpush2.msra.mxu0 0.0
    %616 = vmatprep.subr.mxu0 0.0
    %617 = vmatpush2.msra.mxu0 0.0
    %618 = vmatprep.subr.mxu0 0.0
    %619 = vmatpush2.msra.mxu0 0.0
    %620 = vmatprep.subr.mxu0 0.0
    %621 = vmatpush2.msra.mxu0 0.0
    %622 = vmatprep.subr.mxu0 0.0
    %623 = vmatpush2.msra.mxu0 0.0
    %624 = vmatprep.subr.mxu0 0.0
    %625 = vmatpush2.msra.mxu0 0.0
    %626 = vmatprep.subr.mxu0 0.0
    %627 = vmatpush2.msra.mxu0 0.0
    %628 = vmatprep.subr.mxu0 0.0
    %629 = vmatpush2.msra.mxu0 0.0
    %630 = vmatprep.mubr.f32.mxu0 0.0
    %631 = vmatmul.mubr.f32.gmra.mxu0 %v557
    %v632 = vpop.f32.mrf.mxu0
    %v633 = vadd.f32 0.0, %v632
    %v634 = vpop.f32.mrf.mxu0
    %635 = vmatprep.mubr.f32.mxu0 0.0
    %636 = vmatmul.mubr.f32.gmra.mxu0 %v560
    %v637 = vpop.f32.mrf.mxu0
    %v638 = vadd.f32 0.0, %v637
    %v639 = vpop.f32.mrf.mxu0
    %640 = vdwg.mxu0
    %v641 = vlaneseq
    %v642 = vshrl.u32 %v641, 7
    %v643 = vsub.s32 0, %v642
    %v644 = vrot.slane %v178, %v643
    %v645 = vmul.f32 %v633, %v644
    %v646 = vmul.f32 %v638, %v644
    %v647 = vsub.f32 %v470, %v645
    %v648 = vsub.f32 %v471, %v646
    %v649 = vmul.f32 %v647, %v647
    %v650 = vmul.f32 %v648, %v648
    %651 = vmatprep.subr.mxu0 0.0
    %652 = vmatpush1.msra.mxu0 0.0
    %653 = vmatprep.subr.mxu0 0.0
    %654 = vmatpush1.msra.mxu0 0.0
    %655 = vmatprep.subr.mxu0 0.0
    %656 = vmatpush1.msra.mxu0 0.0
    %657 = vmatprep.subr.mxu0 0.0
    %658 = vmatpush1.msra.mxu0 0.0
    %659 = vmatprep.subr.mxu0 0.0
    %660 = vmatpush1.msra.mxu0 0.0
    %661 = vmatprep.subr.mxu0 0.0
    %662 = vmatpush1.msra.mxu0 0.0
    %663 = vmatprep.subr.mxu0 0.0
    %664 = vmatpush1.msra.mxu0 0.0
    %665 = vmatprep.subr.mxu0 0.0
    %666 = vmatpush1.msra.mxu0 0.0
    %667 = vmatprep.subr.mxu0 0.0
    %668 = vmatpush1.msra.mxu0 0.0
    %669 = vmatprep.subr.mxu0 0.0
    %670 = vmatpush1.msra.mxu0 0.0
    %671 = vmatprep.subr.mxu0 0.0
    %672 = vmatpush1.msra.mxu0 0.0
    %673 = vmatprep.subr.mxu0 0.0
    %674 = vmatpush1.msra.mxu0 0.0
    %675 = vmatprep.subr.mxu0 0.0
    %676 = vmatpush1.msra.mxu0 0.0
    %677 = vmatprep.subr.mxu0 0.0
    %678 = vmatpush1.msra.mxu0 0.0
    %679 = vmatprep.subr.mxu0 0.0
    %680 = vmatpush1.msra.mxu0 %v650
    %681 = vmatprep.subr.mxu0 0.0
    %682 = vmatpush1.msra.mxu0 %v649
    %683 = vmatprep.subr.mxu0 0.0
    %684 = vmatpush2.msra.mxu0 0.0
    %685 = vmatprep.subr.mxu0 0.0
    %686 = vmatpush2.msra.mxu0 0.0
    %687 = vmatprep.subr.mxu0 0.0
    %688 = vmatpush2.msra.mxu0 0.0
    %689 = vmatprep.subr.mxu0 0.0
    %690 = vmatpush2.msra.mxu0 0.0
    %691 = vmatprep.subr.mxu0 0.0
    %692 = vmatpush2.msra.mxu0 0.0
    %693 = vmatprep.subr.mxu0 0.0
    %694 = vmatpush2.msra.mxu0 0.0
    %695 = vmatprep.subr.mxu0 0.0
    %696 = vmatpush2.msra.mxu0 0.0
    %697 = vmatprep.subr.mxu0 0.0
    %698 = vmatpush2.msra.mxu0 0.0
    %699 = vmatprep.subr.mxu0 0.0
    %700 = vmatpush2.msra.mxu0 0.0
    %701 = vmatprep.subr.mxu0 0.0
    %702 = vmatpush2.msra.mxu0 0.0
    %703 = vmatprep.subr.mxu0 0.0
    %704 = vmatpush2.msra.mxu0 0.0
    %705 = vmatprep.subr.mxu0 0.0
    %706 = vmatpush2.msra.mxu0 0.0
    %707 = vmatprep.subr.mxu0 0.0
    %708 = vmatpush2.msra.mxu0 0.0
    %709 = vmatprep.subr.mxu0 0.0
    %710 = vmatpush2.msra.mxu0 0.0
    %711 = vmatprep.subr.mxu0 0.0
    %712 = vmatpush2.msra.mxu0 0.0
    %713 = vmatprep.subr.mxu0 0.0
    %714 = vmatpush2.msra.mxu0 0.0
    %715 = vmatprep.mubr.f32.mxu0 0.0
    %716 = vmatmul.mubr.f32.gmra.mxu0 %v477
    %v717 = vpop.f32.mrf.mxu0
    %v718 = vadd.f32 0.0, %v717
    %v719 = vpop.f32.mrf.mxu0
    %720 = vdwg.mxu0
    %v721 = vmul.f32 %v718, %v552
    %v722 = vadd.f32 %v721, 1e-05
    %v723 = vrsqrt.pop %v722
    %v725 = vsel %vm562, %v723, 0
    %727 = vmatprep.subr.mxu0 0.0
    %728 = vmatpush1.msra.mxu0 0.0
    %729 = vmatprep.subr.mxu0 0.0
    %730 = vmatpush1.msra.mxu0 0.0
    %731 = vmatprep.subr.mxu0 0.0
    %732 = vmatpush1.msra.mxu0 0.0
    %733 = vmatprep.subr.mxu0 0.0
    %734 = vmatpush1.msra.mxu0 0.0
    %735 = vmatprep.subr.mxu0 0.0
    %736 = vmatpush1.msra.mxu0 0.0
    %737 = vmatprep.subr.mxu0 0.0
    %738 = vmatpush1.msra.mxu0 0.0
    %739 = vmatprep.subr.mxu0 0.0
    %740 = vmatpush1.msra.mxu0 0.0
    %741 = vmatprep.subr.mxu0 0.0
    %742 = vmatpush1.msra.mxu0 0.0
    %743 = vmatprep.subr.mxu0 0.0
    %744 = vmatpush1.msra.mxu0 0.0
    %745 = vmatprep.subr.mxu0 0.0
    %746 = vmatpush1.msra.mxu0 0.0
    %747 = vmatprep.subr.mxu0 0.0
    %748 = vmatpush1.msra.mxu0 0.0
    %749 = vmatprep.subr.mxu0 0.0
    %750 = vmatpush1.msra.mxu0 0.0
    %751 = vmatprep.subr.mxu0 0.0
    %752 = vmatpush1.msra.mxu0 0.0
    %753 = vmatprep.subr.mxu0 0.0
    %754 = vmatpush1.msra.mxu0 0.0
    %755 = vmatprep.subr.mxu0 0.0
    %756 = vmatpush1.msra.mxu0 0.0
    %757 = vmatprep.subr.mxu0 0.0
    %758 = vmatpush1.msra.mxu0 %v725
    %759 = vmatprep.subr.mxu0 0.0
    %760 = vmatpush2.msra.mxu0 0.0
    %761 = vmatprep.subr.mxu0 0.0
    %762 = vmatpush2.msra.mxu0 0.0
    %763 = vmatprep.subr.mxu0 0.0
    %764 = vmatpush2.msra.mxu0 0.0
    %765 = vmatprep.subr.mxu0 0.0
    %766 = vmatpush2.msra.mxu0 0.0
    %767 = vmatprep.subr.mxu0 0.0
    %768 = vmatpush2.msra.mxu0 0.0
    %769 = vmatprep.subr.mxu0 0.0
    %770 = vmatpush2.msra.mxu0 0.0
    %771 = vmatprep.subr.mxu0 0.0
    %772 = vmatpush2.msra.mxu0 0.0
    %773 = vmatprep.subr.mxu0 0.0
    %774 = vmatpush2.msra.mxu0 0.0
    %775 = vmatprep.subr.mxu0 0.0
    %776 = vmatpush2.msra.mxu0 0.0
    %777 = vmatprep.subr.mxu0 0.0
    %778 = vmatpush2.msra.mxu0 0.0
    %779 = vmatprep.subr.mxu0 0.0
    %780 = vmatpush2.msra.mxu0 0.0
    %781 = vmatprep.subr.mxu0 0.0
    %782 = vmatpush2.msra.mxu0 0.0
    %783 = vmatprep.subr.mxu0 0.0
    %784 = vmatpush2.msra.mxu0 0.0
    %785 = vmatprep.subr.mxu0 0.0
    %786 = vmatpush2.msra.mxu0 0.0
    %787 = vmatprep.subr.mxu0 0.0
    %788 = vmatpush2.msra.mxu0 0.0
    %789 = vmatprep.subr.mxu0 0.0
    %790 = vmatpush2.msra.mxu0 0.0
    %791 = vmatprep.mubr.f32.mxu0 0.0
    %792 = vmatmul.mubr.f32.gmra.mxu0 %v557
    %v793 = vpop.f32.mrf.mxu0
    %v794 = vadd.f32 0.0, %v793
    %v795 = vpop.f32.mrf.mxu0
    %796 = vmatprep.mubr.f32.mxu0 0.0
    %797 = vmatmul.mubr.f32.gmra.mxu0 %v560
    %v798 = vpop.f32.mrf.mxu0
    %v799 = vadd.f32 0.0, %v798
    %v800 = vpop.f32.mrf.mxu0
    %801 = vdwg.mxu0
    %v802 = vlaneseq
    %v803 = vshrl.u32 %v802, 7
    %v804 = vsub.s32 0, %v803
    %v805 = vrot.slane %v176, %v804
    %v806 = vmul.f32 %v805, %v647
    %v807 = vmul.f32 %v805, %v648
    %v808 = vmul.f32 %v806, %v794
    %v809 = vmul.f32 %v807, %v799
    %v810 = vlaneseq
    %v811 = vshrl.u32 %v810, 7
    %v812 = vsub.s32 0, %v811
    %v813 = vrot.slane %v177, %v812
    %v814 = vadd.f32 %v808, %v813
    %v815 = vadd.f32 %v809, %v813
    %v816 = vld [vmem:[%s6] sm:$0xf]
    %v817 = vld [vmem:[%s6 + $0x4] sm:$0xf]
    %v818 = vld [vmem:[%s6 + $0x8] sm:$0xf]
    %v819 = vld [vmem:[%s6 + $0xc] sm:$0xf]
    %v820 = vld [vmem:[#allocation10 + $0x1] sm:$0x1]
    %v821 = vpack.c.bf16 %v820, %v820
    %v822 = vld [vmem:[%s11] sm:$0xff]
    %v823 = vld [vmem:[%s11 + $0x8] sm:$0xff]
    %v824 = vpack.c.bf16 %v815, %v814
    %v829 = vunpack.c.l.b16 %v816
    %v830 = vunpack.c.l.b16 %v817
    %v831 = vunpack.c.l.b16 %v818
    %v832 = vunpack.c.l.b16 %v819
    %v833 = vpack.c.b16 %v830, %v829
    %v834 = vpack.c.b16 %v832, %v831
    %v838 = vsel %vm243, %v824, 0
    %840 = vmatprep.subr.bf16.mxu0 0
    %841 = vmatpush1.bf16.msra.mxu0 0
    %842 = vmatprep.subr.bf16.mxu0 0
    %843 = vmatpush1.bf16.msra.mxu0 0
    %844 = vmatprep.subr.bf16.mxu0 0
    %845 = vmatpush1.bf16.msra.mxu0 0
    %846 = vmatprep.subr.bf16.mxu0 0
    %847 = vmatpush1.bf16.msra.mxu0 0
    %848 = vmatprep.subr.bf16.mxu0 0
    %849 = vmatpush1.bf16.msra.mxu0 0
    %850 = vmatprep.subr.bf16.mxu0 0
    %851 = vmatpush1.bf16.msra.mxu0 0
    %852 = vmatprep.subr.bf16.mxu0 0
    %853 = vmatpush1.bf16.msra.mxu0 %v834
    %854 = vmatprep.subr.bf16.mxu0 0
    %855 = vmatpush1.bf16.msra.mxu0 %v833
    %856 = vmatprep.subr.bf16.mxu0 0
    %857 = vmatpush2.bf16.msra.mxu0 0
    %858 = vmatprep.subr.bf16.mxu0 0
    %859 = vmatpush2.bf16.msra.mxu0 0
    %860 = vmatprep.subr.bf16.mxu0 0
    %861 = vmatpush2.bf16.msra.mxu0 0
    %862 = vmatprep.subr.bf16.mxu0 0
    %863 = vmatpush2.bf16.msra.mxu0 0
    %864 = vmatprep.subr.bf16.mxu0 0
    %865 = vmatpush2.bf16.msra.mxu0 0
    %866 = vmatprep.subr.bf16.mxu0 0
    %867 = vmatpush2.bf16.msra.mxu0 0
    %868 = vmatprep.subr.bf16.mxu0 0
    %869 = vmatpush2.bf16.msra.mxu0 0
    %870 = vmatprep.subr.bf16.mxu0 0
    %871 = vmatpush2.bf16.msra.mxu0 0
    %872 = vmatprep.mubr.bf16.mxu0 0
    %873 = vmatmul.mubr.bf16.gmra.mxu0 %v838
    %v874 = vpop.f32.mrf.mxu0
    %v875 = vadd.f32 0.0, %v874
    %v876 = vpop.f32.mrf.mxu0
    %v877 = vpop.f32.mrf.mxu0
    %v878 = vadd.f32 0.0, %v877
    %v879 = vpop.f32.mrf.mxu0
    %880 = vdwg.mxu0
    %v881 = vpack.c.bf16 %v878, %v875
    %884 = vrot.lane.b32.xlu0 %v188, 127
    %v885 = vpop.permute.xlu0 %884
    %886 = vrot.lane.b32.xlu0 %v189, 127
    %v887 = vpop.permute.xlu0 %886
    %v891 = vsel %vm243, %v881, 0
    %893 = vmatprep.subr.bf16.mxu0 0
    %894 = vmatpush1.bf16.msra.mxu0 0
    %895 = vmatprep.subr.bf16.mxu0 0
    %896 = vmatpush1.bf16.msra.mxu0 0
    %897 = vmatprep.subr.bf16.mxu0 0
    %898 = vmatpush1.bf16.msra.mxu0 0
    %899 = vmatprep.subr.bf16.mxu0 0
    %900 = vmatpush1.bf16.msra.mxu0 0
    %901 = vmatprep.subr.bf16.mxu0 0
    %902 = vmatpush1.bf16.msra.mxu0 0
    %903 = vmatprep.subr.bf16.mxu0 0
    %904 = vmatpush1.bf16.msra.mxu0 0
    %905 = vmatprep.subr.bf16.mxu0 0
    %906 = vmatpush1.bf16.msra.mxu0 %v887
    %907 = vmatprep.subr.bf16.mxu0 0
    %908 = vmatpush1.bf16.msra.mxu0 %v885
    %909 = vmatprep.subr.bf16.mxu0 0
    %910 = vmatpush2.bf16.msra.mxu0 0
    %911 = vmatprep.subr.bf16.mxu0 0
    %912 = vmatpush2.bf16.msra.mxu0 0
    %913 = vmatprep.subr.bf16.mxu0 0
    %914 = vmatpush2.bf16.msra.mxu0 0
    %915 = vmatprep.subr.bf16.mxu0 0
    %916 = vmatpush2.bf16.msra.mxu0 0
    %917 = vmatprep.subr.bf16.mxu0 0
    %918 = vmatpush2.bf16.msra.mxu0 0
    %919 = vmatprep.subr.bf16.mxu0 0
    %920 = vmatpush2.bf16.msra.mxu0 0
    %921 = vmatprep.subr.bf16.mxu0 0
    %922 = vmatpush2.bf16.msra.mxu0 0
    %923 = vmatprep.subr.bf16.mxu0 0
    %924 = vmatpush2.bf16.msra.mxu0 0
    %925 = vmatprep.mubr.bf16.mxu0 0
    %926 = vmatmul.mubr.bf16.gmra.mxu0 %v891
    %v927 = vpop.f32.mrf.mxu0
    %v928 = vadd.f32 0.0, %v927
    %v929 = vpop.f32.mrf.mxu0
    %v930 = vpop.f32.mrf.mxu0
    %v931 = vadd.f32 0.0, %v930
    %v932 = vpop.f32.mrf.mxu0
    %933 = vdwg.mxu0
    %v935 = vsel %vm243, %v821, 0
    %937 = vmatprep.subr.bf16.mxu0 0
    %938 = vmatpush1.bf16.xpose.msra.mxu0 0
    %939 = vmatprep.subr.bf16.mxu0 0
    %940 = vmatpush1.bf16.xpose.msra.mxu0 0
    %941 = vmatprep.subr.bf16.mxu0 0
    %942 = vmatpush1.bf16.xpose.msra.mxu0 0
    %943 = vmatprep.subr.bf16.mxu0 0
    %944 = vmatpush1.bf16.xpose.msra.mxu0 0
    %945 = vmatprep.subr.bf16.mxu0 0
    %946 = vmatpush1.bf16.xpose.msra.mxu0 0
    %947 = vmatprep.subr.bf16.mxu0 0
    %948 = vmatpush1.bf16.xpose.msra.mxu0 0
    %949 = vmatprep.subr.bf16.mxu0 0
    %950 = vmatpush1.bf16.xpose.msra.mxu0 0
    %951 = vmatprep.subr.bf16.mxu0 0
    %952 = vmatpush1.bf16.xpose.msra.mxu0 %v891
    %953 = vmatprep.subr.bf16.mxu0 0
    %954 = vmatpush2.bf16.xpose.msra.mxu0 0
    %955 = vmatprep.subr.bf16.mxu0 0
    %956 = vmatpush2.bf16.xpose.msra.mxu0 0
    %957 = vmatprep.subr.bf16.mxu0 0
    %958 = vmatpush2.bf16.xpose.msra.mxu0 0
    %959 = vmatprep.subr.bf16.mxu0 0
    %960 = vmatpush2.bf16.xpose.msra.mxu0 0
    %961 = vmatprep.subr.bf16.mxu0 0
    %962 = vmatpush2.bf16.xpose.msra.mxu0 0
    %963 = vmatprep.subr.bf16.mxu0 0
    %964 = vmatpush2.bf16.xpose.msra.mxu0 0
    %965 = vmatprep.subr.bf16.mxu0 0
    %966 = vmatpush2.bf16.xpose.msra.mxu0 0
    %967 = vmatprep.subr.bf16.mxu0 0
    %968 = vmatpush2.bf16.xpose.msra.mxu0 0
    %969 = vmatprep.mubr.bf16.mxu0 0
    %970 = vmatmul.mubr.bf16.gmra.mxu0 %v935
    %v971 = vpop.f32.mrf.mxu0
    %v972 = vadd.f32 0.0, %v971
    %v973 = vpop.f32.mrf.mxu0
    %v974 = vpop.f32.mrf.mxu0
    %v975 = vpop.f32.mrf.mxu0
    %976 = vdwg.mxu0
    %978 = vset.pattern.permute.xlu0 0
    %979 = vperm.xlu0 %978, %v928
    %v980 = vpop.permute.xlu0 %979
    %983 = vset.pattern.permute.xlu0 0
    %984 = vperm.xlu0 %983, %v931
    %v985 = vpop.permute.xlu0 %984
    %v987 = vlaneseq
    %v988 = vshrl.u32 %v987, 7
    %v989 = vsub.s32 0, %v988
    %v990 = vrot.slane %v972, %v989
    %v991 = vadd.f32 %v980, %v990
    %v992 = vadd.f32 %v985, %v990
    %vm993 = vcmp.gt.f32.partialorder %v991, 0.0
    %vm994 = vcmp.gt.f32.partialorder %v992, 0.0
    %v995 = vmul.f32 %v991, 0.2
    %v996 = vmul.f32 %v992, 0.2
    %v997 = vsel %vm993, %v991, %v995
    %v998 = vsel %vm994, %v992, %v996
    %v999 = vadd.f32 %v997, %v170
    %v1000 = vadd.f32 %v998, %v171
    %v1001 = vsel %vm355, %v999, -inf
    %1002 = vmax.xlane.f32.xlu0 %v1001
    %v1003 = vpop.xlane.xlu0 %1002
    %v1004 = vsel %vm355, %v1000, -inf
    %1005 = vmax.xlane.f32.xlu0 %v1004
    %v1006 = vpop.xlane.xlu0 %1005
    %v1007 = vsub.f32 %v999, %v1003
    %v1008 = vsub.f32 %v1000, %v1006
    %v1009 = vmul.f32 %v1007, 1.442695
    %v1010 = vpow.pop %v1009
    %v1011 = vmul.f32 %v1008, 1.442695
    %v1012 = vpow.pop %v1011
    %v1013 = vsel %vm355, %v1010, 0.0
    %1014 = vadd.xlane.f32.xlu0 %v1013
    %v1015 = vpop.xlane.xlu0 %1014
    %v1016 = vsel %vm355, %v1012, 0.0
    %1017 = vadd.xlane.f32.xlu0 %v1016
    %v1018 = vpop.xlane.xlu0 %1017
    %v1019 = vrcp.pop %v1015
    %v1020 = vrcp.pop %v1018
    %v1021 = vmul.f32 %v1010, %v1019
    %v1022 = vmul.f32 %v1012, %v1020
    %v1023 = vpack.c.bf16 %v1022, %v1021
    %v1024 = vlaneseq
    %v1025 = vshrl.u32 %v1024, 7
    %v1026 = vsub.s32 0, %v1025
    %v1027 = vrot.slane %v173, %v1026
    %v1029 = vsel %vm355, %v1023, 0
    %1031 = vmatprep.subr.bf16.mxu0 0
    %1032 = vmatpush1.bf16.msra.mxu0 0
    %1033 = vmatprep.subr.bf16.mxu0 0
    %1034 = vmatpush1.bf16.msra.mxu0 0
    %1035 = vmatprep.subr.bf16.mxu0 0
    %1036 = vmatpush1.bf16.msra.mxu0 0
    %1037 = vmatprep.subr.bf16.mxu0 0
    %1038 = vmatpush1.bf16.msra.mxu0 0
    %1039 = vmatprep.subr.bf16.mxu0 0
    %1040 = vmatpush1.bf16.msra.mxu0 0
    %1041 = vmatprep.subr.bf16.mxu0 0
    %1042 = vmatpush1.bf16.msra.mxu0 0
    %1043 = vmatprep.subr.bf16.mxu0 0
    %1044 = vmatpush1.bf16.msra.mxu0 0
    %1045 = vmatprep.subr.bf16.mxu0 0
    %1046 = vmatpush1.bf16.msra.mxu0 %v881
    %1047 = vmatprep.subr.bf16.mxu0 0
    %1048 = vmatpush2.bf16.msra.mxu0 0
    %1049 = vmatprep.subr.bf16.mxu0 0
    %1050 = vmatpush2.bf16.msra.mxu0 0
    %1051 = vmatprep.subr.bf16.mxu0 0
    %1052 = vmatpush2.bf16.msra.mxu0 0
    %1053 = vmatprep.subr.bf16.mxu0 0
    %1054 = vmatpush2.bf16.msra.mxu0 0
    %1055 = vmatprep.subr.bf16.mxu0 0
    %1056 = vmatpush2.bf16.msra.mxu0 0
    %1057 = vmatprep.subr.bf16.mxu0 0
    %1058 = vmatpush2.bf16.msra.mxu0 0
    %1059 = vmatprep.subr.bf16.mxu0 0
    %1060 = vmatpush2.bf16.msra.mxu0 0
    %1061 = vmatprep.subr.bf16.mxu0 0
    %1062 = vmatpush2.bf16.msra.mxu0 0
    %1063 = vmatprep.mubr.bf16.mxu0 0
    %1064 = vmatmul.mubr.bf16.gmra.mxu0 %v1029
    %v1065 = vpop.f32.mrf.mxu0
    %v1066 = vadd.f32 %v1027, %v1065
    %v1067 = vpop.f32.mrf.mxu0
    %v1068 = vpop.f32.mrf.mxu0
    %v1069 = vadd.f32 %v1027, %v1068
    %v1070 = vpop.f32.mrf.mxu0
    %1071 = vdwg.mxu0
    %v1072 = vtanh.pop %v1066
    %v1073 = vtanh.pop %v1069
    %v1074 = vmul.f32 %v1072, %v822
    %v1075 = vmul.f32 %v1073, %v823
    %1076 = vmatprep.subr.mxu0 0.0
    %1077 = vmatpush1.msra.mxu0 0.0
    %1078 = vmatprep.subr.mxu0 0.0
    %1079 = vmatpush1.msra.mxu0 0.0
    %1080 = vmatprep.subr.mxu0 0.0
    %1081 = vmatpush1.msra.mxu0 0.0
    %1082 = vmatprep.subr.mxu0 0.0
    %1083 = vmatpush1.msra.mxu0 0.0
    %1084 = vmatprep.subr.mxu0 0.0
    %1085 = vmatpush1.msra.mxu0 0.0
    %1086 = vmatprep.subr.mxu0 0.0
    %1087 = vmatpush1.msra.mxu0 0.0
    %1088 = vmatprep.subr.mxu0 0.0
    %1089 = vmatpush1.msra.mxu0 0.0
    %1090 = vmatprep.subr.mxu0 0.0
    %1091 = vmatpush1.msra.mxu0 0.0
    %1092 = vmatprep.subr.mxu0 0.0
    %1093 = vmatpush1.msra.mxu0 0.0
    %1094 = vmatprep.subr.mxu0 0.0
    %1095 = vmatpush1.msra.mxu0 0.0
    %1096 = vmatprep.subr.mxu0 0.0
    %1097 = vmatpush1.msra.mxu0 0.0
    %1098 = vmatprep.subr.mxu0 0.0
    %1099 = vmatpush1.msra.mxu0 0.0
    %1100 = vmatprep.subr.mxu0 0.0
    %1101 = vmatpush1.msra.mxu0 0.0
    %1102 = vmatprep.subr.mxu0 0.0
    %1103 = vmatpush1.msra.mxu0 0.0
    %1104 = vmatprep.subr.mxu0 0.0
    %1105 = vmatpush1.msra.mxu0 %v1075
    %1106 = vmatprep.subr.mxu0 0.0
    %1107 = vmatpush1.msra.mxu0 %v1074
    %1108 = vmatprep.subr.mxu0 0.0
    %1109 = vmatpush2.msra.mxu0 0.0
    %1110 = vmatprep.subr.mxu0 0.0
    %1111 = vmatpush2.msra.mxu0 0.0
    %1112 = vmatprep.subr.mxu0 0.0
    %1113 = vmatpush2.msra.mxu0 0.0
    %1114 = vmatprep.subr.mxu0 0.0
    %1115 = vmatpush2.msra.mxu0 0.0
    %1116 = vmatprep.subr.mxu0 0.0
    %1117 = vmatpush2.msra.mxu0 0.0
    %1118 = vmatprep.subr.mxu0 0.0
    %1119 = vmatpush2.msra.mxu0 0.0
    %1120 = vmatprep.subr.mxu0 0.0
    %1121 = vmatpush2.msra.mxu0 0.0
    %1122 = vmatprep.subr.mxu0 0.0
    %1123 = vmatpush2.msra.mxu0 0.0
    %1124 = vmatprep.subr.mxu0 0.0
    %1125 = vmatpush2.msra.mxu0 0.0
    %1126 = vmatprep.subr.mxu0 0.0
    %1127 = vmatpush2.msra.mxu0 0.0
    %1128 = vmatprep.subr.mxu0 0.0
    %1129 = vmatpush2.msra.mxu0 0.0
    %1130 = vmatprep.subr.mxu0 0.0
    %1131 = vmatpush2.msra.mxu0 0.0
    %1132 = vmatprep.subr.mxu0 0.0
    %1133 = vmatpush2.msra.mxu0 0.0
    %1134 = vmatprep.subr.mxu0 0.0
    %1135 = vmatpush2.msra.mxu0 0.0
    %1136 = vmatprep.subr.mxu0 0.0
    %1137 = vmatpush2.msra.mxu0 0.0
    %1138 = vmatprep.subr.mxu0 0.0
    %1139 = vmatpush2.msra.mxu0 0.0
    %1140 = vmatprep.mubr.f32.mxu0 0.0
    %1141 = vmatmul.mubr.f32.gmra.mxu0 %v477
    %v1142 = vpop.f32.mrf.mxu0
    %v1143 = vadd.f32 0.0, %v1142
    %v1144 = vpop.f32.mrf.mxu0
    %1145 = vdwg.mxu0
    %v1146 = vmul.f32 %v1143, %v552
    %v1147 = vsel %vm243, %v1074, -inf
    %v1148 = vrot.slane %v1147, 4
    %v1149 = vmax.f32 %v1147, %v1148
    %v1150 = vrot.slane %v1149, 2
    %v1151 = vmax.f32 %v1149, %v1150
    %v1152 = vrot.slane %v1151, 1
    %v1153 = vmax.f32 %v1151, %v1152
    %v1154 = vsel %vm243, %v1075, -inf
    %v1155 = vrot.slane %v1154, 4
    %v1156 = vmax.f32 %v1154, %v1155
    %v1157 = vrot.slane %v1156, 2
    %v1158 = vmax.f32 %v1156, %v1157
    %v1159 = vrot.slane %v1158, 1
    %v1160 = vmax.f32 %v1158, %v1159
    %vm1163 = vcmask 1041409
    %v1164 = vsel %vm1163, %v1160, %v1153
    %1167 = vrot.lane.b32.xlu0 %v1146, 32
    %v1168 = vpop.permute.xlu0 %1167
    %v1170 = vsel %vm243, %v1164, %v1168
    %v1171 = vpack.c.bf16 %v1170, %v1170
    %s1172 = smul.u32 4, 8
    %s1173 = smul.u32 %s1172, 34
    %s1174 = sshll.u32 %s1173, 4
    %1175 = dma.done [#allocation4], %s1174
    %s1176 = smul.u32 1, 34
    %s1177 = sshll.u32 %s1176, 4
    %1178 = dma.done %s105, %s1177
    %v1179 = vld [vmem:[#allocation2] sm:$0xff]
    %v1180 = vld [vmem:[#allocation2 + $0x8] sm:$0xff]
    %v1181 = vld [vmem:[#allocation2 + $0x10] sm:$0xff]
    %v1182 = vld [vmem:[#allocation2 + $0x18] sm:$0xff]
    %v1183 = vld [vmem:[#allocation2 + $0x20] sm:$0xff]
    %v1184 = vld [vmem:[#allocation2 + $0x28] sm:$0xff]
    %v1185 = vld [vmem:[#allocation2 + $0x30] sm:$0xff]
    %v1186 = vld [vmem:[#allocation2 + $0x38] sm:$0xff]
    %v1187 = vld [vmem:[#allocation2 + $0x40] sm:$0xff]
    %v1188 = vld [vmem:[#allocation2 + $0x48] sm:$0xff]
    %v1189 = vld [vmem:[#allocation2 + $0x50] sm:$0xff]
    %v1190 = vld [vmem:[#allocation2 + $0x58] sm:$0xff]
    %v1191 = vld [vmem:[#allocation2 + $0x60] sm:$0xff]
    %v1192 = vld [vmem:[#allocation2 + $0x68] sm:$0xff]
    %v1193 = vld [vmem:[#allocation2 + $0x70] sm:$0xff]
    %v1194 = vld [vmem:[#allocation2 + $0x78] sm:$0xff]
    %v1195 = vld [vmem:[#allocation2 + $0x80] sm:$0xff]
    %v1196 = vld [vmem:[#allocation2 + $0x88] sm:$0xff]
    %v1197 = vld [vmem:[#allocation2 + $0x90] sm:$0xff]
    %v1198 = vld [vmem:[#allocation2 + $0x98] sm:$0xff]
    %v1199 = vld [vmem:[#allocation2 + $0xa0] sm:$0xff]
    %v1200 = vld [vmem:[#allocation2 + $0xa8] sm:$0xff]
    %v1201 = vld [vmem:[#allocation2 + $0xb0] sm:$0xff]
    %v1202 = vld [vmem:[#allocation2 + $0xb8] sm:$0xff]
    %v1203 = vld [vmem:[#allocation2 + $0xc0] sm:$0xff]
    %v1204 = vld [vmem:[#allocation2 + $0xc8] sm:$0xff]
    %v1205 = vld [vmem:[#allocation2 + $0xd0] sm:$0xff]
    %v1206 = vld [vmem:[#allocation2 + $0xd8] sm:$0xff]
    %v1207 = vld [vmem:[#allocation2 + $0xe0] sm:$0xff]
    %v1208 = vld [vmem:[#allocation2 + $0xe8] sm:$0xff]
    %v1209 = vld [vmem:[#allocation2 + $0xf0] sm:$0xff]
    %v1210 = vld [vmem:[#allocation2 + $0xf8] sm:$0xff]
    %v1211 = vld [vmem:[#allocation2 + $0x100] sm:$0xff]
    %v1212 = vld [vmem:[#allocation2 + $0x108] sm:$0xff]
    %v1213 = vld [vmem:[#allocation2 + $0x110] sm:$0xff]
    %v1214 = vld [vmem:[#allocation2 + $0x118] sm:$0xff]
    %v1215 = vld [vmem:[#allocation2 + $0x120] sm:$0xff]
    %v1216 = vld [vmem:[#allocation2 + $0x128] sm:$0xff]
    %v1217 = vld [vmem:[#allocation2 + $0x130] sm:$0xff]
    %v1218 = vld [vmem:[#allocation2 + $0x138] sm:$0xff]
    %v1219 = vld [vmem:[#allocation2 + $0x140] sm:$0xff]
    %v1220 = vld [vmem:[#allocation2 + $0x148] sm:$0xff]
    %v1221 = vld [vmem:[#allocation2 + $0x150] sm:$0xff]
    %v1222 = vld [vmem:[#allocation2 + $0x158] sm:$0xff]
    %v1223 = vld [vmem:[#allocation2 + $0x160] sm:$0xff]
    %v1224 = vld [vmem:[#allocation2 + $0x168] sm:$0xff]
    %v1225 = vld [vmem:[#allocation2 + $0x170] sm:$0xff]
    %v1226 = vld [vmem:[#allocation2 + $0x178] sm:$0xff]
    %v1227 = vld [vmem:[#allocation2 + $0x180] sm:$0xff]
    %v1228 = vld [vmem:[#allocation2 + $0x188] sm:$0xff]
    %v1229 = vld [vmem:[#allocation2 + $0x190] sm:$0xff]
    %v1230 = vld [vmem:[#allocation2 + $0x198] sm:$0xff]
    %v1231 = vld [vmem:[#allocation2 + $0x1a0] sm:$0xff]
    %v1232 = vld [vmem:[#allocation2 + $0x1a8] sm:$0xff]
    %v1233 = vld [vmem:[#allocation2 + $0x1b0] sm:$0xff]
    %v1234 = vld [vmem:[#allocation2 + $0x1b8] sm:$0xff]
    %v1235 = vld [vmem:[#allocation2 + $0x1c0] sm:$0xff]
    %v1236 = vld [vmem:[#allocation2 + $0x1c8] sm:$0xff]
    %v1237 = vld [vmem:[#allocation2 + $0x1d0] sm:$0xff]
    %v1238 = vld [vmem:[#allocation2 + $0x1d8] sm:$0xff]
    %v1239 = vld [vmem:[#allocation2 + $0x1e0] sm:$0xff]
    %v1240 = vld [vmem:[#allocation2 + $0x1e8] sm:$0xff]
    %v1241 = vld [vmem:[#allocation2 + $0x1f0] sm:$0xff]
    %v1242 = vld [vmem:[#allocation2 + $0x1f8] sm:$0xff]
    %v1243 = vld [vmem:[#allocation2 + $0x200] sm:$0xff]
    %v1244 = vld [vmem:[#allocation2 + $0x208] sm:$0xff]
    %v1245 = vld [vmem:[#allocation2 + $0x210] sm:$0xff]
    %v1246 = vld [vmem:[#allocation2 + $0x218] sm:$0xff]
    %v1247 = vld [vmem:[#allocation2 + $0x220] sm:$0xff]
    %v1248 = vld [vmem:[#allocation2 + $0x228] sm:$0xff]
    %v1249 = vld [vmem:[#allocation2 + $0x230] sm:$0xff]
    %v1250 = vld [vmem:[#allocation2 + $0x238] sm:$0xff]
    %v1251 = vld [vmem:[#allocation2 + $0x240] sm:$0xff]
    %v1252 = vld [vmem:[#allocation2 + $0x248] sm:$0xff]
    %v1253 = vld [vmem:[#allocation2 + $0x250] sm:$0xff]
    %v1254 = vld [vmem:[#allocation2 + $0x258] sm:$0xff]
    %v1255 = vld [vmem:[#allocation2 + $0x260] sm:$0xff]
    %v1256 = vld [vmem:[#allocation2 + $0x268] sm:$0xff]
    %v1257 = vld [vmem:[#allocation2 + $0x270] sm:$0xff]
    %v1258 = vld [vmem:[#allocation2 + $0x278] sm:$0xff]
    %v1259 = vld [vmem:[#allocation2 + $0x280] sm:$0xff]
    %v1260 = vld [vmem:[#allocation2 + $0x288] sm:$0xff]
    %v1261 = vld [vmem:[#allocation2 + $0x290] sm:$0xff]
    %v1262 = vld [vmem:[#allocation2 + $0x298] sm:$0xff]
    %v1263 = vld [vmem:[#allocation2 + $0x2a0] sm:$0xff]
    %v1264 = vld [vmem:[#allocation2 + $0x2a8] sm:$0xff]
    %v1265 = vld [vmem:[#allocation2 + $0x2b0] sm:$0xff]
    %v1266 = vld [vmem:[#allocation2 + $0x2b8] sm:$0xff]
    %v1267 = vld [vmem:[#allocation2 + $0x2c0] sm:$0xff]
    %v1268 = vld [vmem:[#allocation2 + $0x2c8] sm:$0xff]
    %v1269 = vld [vmem:[#allocation2 + $0x2d0] sm:$0xff]
    %v1270 = vld [vmem:[#allocation2 + $0x2d8] sm:$0xff]
    %v1271 = vld [vmem:[#allocation2 + $0x2e0] sm:$0xff]
    %v1272 = vld [vmem:[#allocation2 + $0x2e8] sm:$0xff]
    %v1273 = vld [vmem:[#allocation2 + $0x2f0] sm:$0xff]
    %v1274 = vld [vmem:[#allocation2 + $0x2f8] sm:$0xff]
    %v1275 = vld [vmem:[#allocation2 + $0x300] sm:$0xff]
    %v1276 = vld [vmem:[#allocation2 + $0x308] sm:$0xff]
    %v1277 = vld [vmem:[#allocation2 + $0x310] sm:$0xff]
    %v1278 = vld [vmem:[#allocation2 + $0x318] sm:$0xff]
    %v1279 = vld [vmem:[#allocation2 + $0x320] sm:$0xff]
    %v1280 = vld [vmem:[#allocation2 + $0x328] sm:$0xff]
    %v1281 = vld [vmem:[#allocation2 + $0x330] sm:$0xff]
    %v1282 = vld [vmem:[#allocation2 + $0x338] sm:$0xff]
    %v1283 = vld [vmem:[#allocation2 + $0x340] sm:$0xff]
    %v1284 = vld [vmem:[#allocation2 + $0x348] sm:$0xff]
    %v1285 = vld [vmem:[#allocation2 + $0x350] sm:$0xff]
    %v1286 = vld [vmem:[#allocation2 + $0x358] sm:$0xff]
    %v1287 = vld [vmem:[#allocation2 + $0x360] sm:$0xff]
    %v1288 = vld [vmem:[#allocation2 + $0x368] sm:$0xff]
    %v1289 = vld [vmem:[#allocation2 + $0x370] sm:$0xff]
    %v1290 = vld [vmem:[#allocation2 + $0x378] sm:$0xff]
    %v1291 = vld [vmem:[#allocation2 + $0x380] sm:$0xff]
    %v1292 = vld [vmem:[#allocation2 + $0x388] sm:$0xff]
    %v1293 = vld [vmem:[#allocation2 + $0x390] sm:$0xff]
    %v1294 = vld [vmem:[#allocation2 + $0x398] sm:$0xff]
    %v1295 = vld [vmem:[#allocation2 + $0x3a0] sm:$0xff]
    %v1296 = vld [vmem:[#allocation2 + $0x3a8] sm:$0xff]
    %v1297 = vld [vmem:[#allocation2 + $0x3b0] sm:$0xff]
    %v1298 = vld [vmem:[#allocation2 + $0x3b8] sm:$0xff]
    %v1299 = vld [vmem:[#allocation2 + $0x3c0] sm:$0xff]
    %v1300 = vld [vmem:[#allocation2 + $0x3c8] sm:$0xff]
    %v1301 = vld [vmem:[#allocation2 + $0x3d0] sm:$0xff]
    %v1302 = vld [vmem:[#allocation2 + $0x3d8] sm:$0xff]
    %v1303 = vld [vmem:[#allocation2 + $0x3e0] sm:$0xff]
    %v1304 = vld [vmem:[#allocation2 + $0x3e8] sm:$0xff]
    %v1305 = vld [vmem:[#allocation2 + $0x3f0] sm:$0xff]
    %v1306 = vld [vmem:[#allocation2 + $0x3f8] sm:$0xff]
    %v1307 = vld [vmem:[#allocation2 + $0x400] sm:$0xff]
    %v1308 = vld [vmem:[#allocation2 + $0x408] sm:$0xff]
    %v1309 = vld [vmem:[#allocation2 + $0x410] sm:$0xff]
    %v1310 = vld [vmem:[#allocation2 + $0x418] sm:$0xff]
    %v1311 = vld [vmem:[#allocation2 + $0x420] sm:$0xff]
    %v1312 = vld [vmem:[#allocation2 + $0x428] sm:$0xff]
    %v1313 = vld [vmem:[#allocation2 + $0x430] sm:$0xff]
    %v1314 = vld [vmem:[#allocation2 + $0x438] sm:$0xff]
    %v1315 = vld [vmem:[#allocation3] sm:$0xff]
    %v1316 = vld [vmem:[#allocation3 + $0x8] sm:$0xff]
    %v1317 = vld [vmem:[#allocation3 + $0x10] sm:$0xff]
    %v1318 = vld [vmem:[#allocation3 + $0x18] sm:$0xff]
    %v1319 = vld [vmem:[#allocation3 + $0x20] sm:$0x3]
    %v1325 = vlaneseq
    %v1326 = vshrl.u32 %v1325, 7
    %v1327 = vsub.s32 0, %v1326
    %v1328 = vrot.slane %v1315, %v1327
    %v1329 = vlaneseq
    %v1330 = vshrl.u32 %v1329, 7
    %v1331 = vsub.s32 1, %v1330
    %v1332 = vrot.slane %v1315, %v1331
    %v1333 = vlaneseq
    %v1334 = vshrl.u32 %v1333, 7
    %v1335 = vsub.s32 2, %v1334
    %v1336 = vrot.slane %v1315, %v1335
    %v1337 = vlaneseq
    %v1338 = vshrl.u32 %v1337, 7
    %v1339 = vsub.s32 3, %v1338
    %v1340 = vrot.slane %v1315, %v1339
    %v1341 = vlaneseq
    %v1342 = vshrl.u32 %v1341, 7
    %v1343 = vsub.s32 4, %v1342
    %v1344 = vrot.slane %v1315, %v1343
    %v1345 = vlaneseq
    %v1346 = vshrl.u32 %v1345, 7
    %v1347 = vsub.s32 5, %v1346
    %v1348 = vrot.slane %v1315, %v1347
    %v1349 = vlaneseq
    %v1350 = vshrl.u32 %v1349, 7
    %v1351 = vsub.s32 6, %v1350
    %v1352 = vrot.slane %v1315, %v1351
    %v1353 = vlaneseq
    %v1354 = vshrl.u32 %v1353, 7
    %v1355 = vsub.s32 7, %v1354
    %v1356 = vrot.slane %v1315, %v1355
    %v1357 = vlaneseq
    %v1358 = vshrl.u32 %v1357, 7
    %v1359 = vsub.s32 0, %v1358
    %v1360 = vrot.slane %v1316, %v1359
    %v1361 = vlaneseq
    %v1362 = vshrl.u32 %v1361, 7
    %v1363 = vsub.s32 1, %v1362
    %v1364 = vrot.slane %v1316, %v1363
    %v1365 = vlaneseq
    %v1366 = vshrl.u32 %v1365, 7
    %v1367 = vsub.s32 2, %v1366
    %v1368 = vrot.slane %v1316, %v1367
    %v1369 = vlaneseq
    %v1370 = vshrl.u32 %v1369, 7
    %v1371 = vsub.s32 3, %v1370
    %v1372 = vrot.slane %v1316, %v1371
    %v1373 = vlaneseq
    %v1374 = vshrl.u32 %v1373, 7
    %v1375 = vsub.s32 4, %v1374
    %v1376 = vrot.slane %v1316, %v1375
    %v1377 = vlaneseq
    %v1378 = vshrl.u32 %v1377, 7
    %v1379 = vsub.s32 5, %v1378
    %v1380 = vrot.slane %v1316, %v1379
    %v1381 = vlaneseq
    %v1382 = vshrl.u32 %v1381, 7
    %v1383 = vsub.s32 6, %v1382
    %v1384 = vrot.slane %v1316, %v1383
    %v1385 = vlaneseq
    %v1386 = vshrl.u32 %v1385, 7
    %v1387 = vsub.s32 7, %v1386
    %v1388 = vrot.slane %v1316, %v1387
    %v1389 = vlaneseq
    %v1390 = vshrl.u32 %v1389, 7
    %v1391 = vsub.s32 0, %v1390
    %v1392 = vrot.slane %v1317, %v1391
    %v1393 = vlaneseq
    %v1394 = vshrl.u32 %v1393, 7
    %v1395 = vsub.s32 1, %v1394
    %v1396 = vrot.slane %v1317, %v1395
    %v1397 = vlaneseq
    %v1398 = vshrl.u32 %v1397, 7
    %v1399 = vsub.s32 2, %v1398
    %v1400 = vrot.slane %v1317, %v1399
    %v1401 = vlaneseq
    %v1402 = vshrl.u32 %v1401, 7
    %v1403 = vsub.s32 3, %v1402
    %v1404 = vrot.slane %v1317, %v1403
    %v1405 = vlaneseq
    %v1406 = vshrl.u32 %v1405, 7
    %v1407 = vsub.s32 4, %v1406
    %v1408 = vrot.slane %v1317, %v1407
    %v1409 = vlaneseq
    %v1410 = vshrl.u32 %v1409, 7
    %v1411 = vsub.s32 5, %v1410
    %v1412 = vrot.slane %v1317, %v1411
    %v1413 = vlaneseq
    %v1414 = vshrl.u32 %v1413, 7
    %v1415 = vsub.s32 6, %v1414
    %v1416 = vrot.slane %v1317, %v1415
    %v1417 = vlaneseq
    %v1418 = vshrl.u32 %v1417, 7
    %v1419 = vsub.s32 7, %v1418
    %v1420 = vrot.slane %v1317, %v1419
    %v1421 = vlaneseq
    %v1422 = vshrl.u32 %v1421, 7
    %v1423 = vsub.s32 0, %v1422
    %v1424 = vrot.slane %v1318, %v1423
    %v1425 = vlaneseq
    %v1426 = vshrl.u32 %v1425, 7
    %v1427 = vsub.s32 1, %v1426
    %v1428 = vrot.slane %v1318, %v1427
    %v1429 = vlaneseq
    %v1430 = vshrl.u32 %v1429, 7
    %v1431 = vsub.s32 2, %v1430
    %v1432 = vrot.slane %v1318, %v1431
    %v1433 = vlaneseq
    %v1434 = vshrl.u32 %v1433, 7
    %v1435 = vsub.s32 3, %v1434
    %v1436 = vrot.slane %v1318, %v1435
    %v1437 = vlaneseq
    %v1438 = vshrl.u32 %v1437, 7
    %v1439 = vsub.s32 4, %v1438
    %v1440 = vrot.slane %v1318, %v1439
    %v1441 = vlaneseq
    %v1442 = vshrl.u32 %v1441, 7
    %v1443 = vsub.s32 5, %v1442
    %v1444 = vrot.slane %v1318, %v1443
    %v1445 = vlaneseq
    %v1446 = vshrl.u32 %v1445, 7
    %v1447 = vsub.s32 6, %v1446
    %v1448 = vrot.slane %v1318, %v1447
    %v1449 = vlaneseq
    %v1450 = vshrl.u32 %v1449, 7
    %v1451 = vsub.s32 7, %v1450
    %v1452 = vrot.slane %v1318, %v1451
    %v1453 = vlaneseq
    %v1454 = vshrl.u32 %v1453, 7
    %v1455 = vsub.s32 0, %v1454
    %v1456 = vrot.slane %v1319, %v1455
    %v1457 = vlaneseq
    %v1458 = vshrl.u32 %v1457, 7
    %v1459 = vsub.s32 1, %v1458
    %v1460 = vrot.slane %v1319, %v1459
    %v1631 = vunpack.c.l.b16 %v1179
    %v1632 = vunpack.c.h.b16 %v1179
    %v1633 = vunpack.c.l.b16 %v1180
    %v1634 = vunpack.c.h.b16 %v1180
    %v1635 = vunpack.c.l.b16 %v1181
    %v1636 = vunpack.c.h.b16 %v1181
    %v1637 = vunpack.c.l.b16 %v1182
    %v1638 = vunpack.c.h.b16 %v1182
    %v1639 = vunpack.c.l.b16 %v1183
    %v1640 = vunpack.c.h.b16 %v1183
    %v1641 = vunpack.c.l.b16 %v1184
    %v1642 = vunpack.c.h.b16 %v1184
    %v1643 = vunpack.c.l.b16 %v1185
    %v1644 = vunpack.c.h.b16 %v1185
    %v1645 = vunpack.c.l.b16 %v1186
    %v1646 = vunpack.c.h.b16 %v1186
    %v1647 = vunpack.c.l.b16 %v1187
    %v1648 = vunpack.c.h.b16 %v1187
    %v1649 = vunpack.c.l.b16 %v1188
    %v1650 = vunpack.c.h.b16 %v1188
    %v1651 = vunpack.c.l.b16 %v1189
    %v1652 = vunpack.c.h.b16 %v1189
    %v1653 = vunpack.c.l.b16 %v1190
    %v1654 = vunpack.c.h.b16 %v1190
    %v1655 = vunpack.c.l.b16 %v1191
    %v1656 = vunpack.c.h.b16 %v1191
    %v1657 = vunpack.c.l.b16 %v1192
    %v1658 = vunpack.c.h.b16 %v1192
    %v1659 = vunpack.c.l.b16 %v1193
    %v1660 = vunpack.c.h.b16 %v1193
    %v1661 = vunpack.c.l.b16 %v1194
    %v1662 = vunpack.c.h.b16 %v1194
    %v1663 = vunpack.c.l.b16 %v1195
    %v1664 = vunpack.c.h.b16 %v1195
    %v1665 = vunpack.c.l.b16 %v1196
    %v1666 = vunpack.c.h.b16 %v1196
    %v1667 = vunpack.c.l.b16 %v1197
    %v1668 = vunpack.c.h.b16 %v1197
    %v1669 = vunpack.c.l.b16 %v1198
    %v1670 = vunpack.c.h.b16 %v1198
    %v1671 = vunpack.c.l.b16 %v1199
    %v1672 = vunpack.c.h.b16 %v1199
    %v1673 = vunpack.c.l.b16 %v1200
    %v1674 = vunpack.c.h.b16 %v1200
    %v1675 = vunpack.c.l.b16 %v1201
    %v1676 = vunpack.c.h.b16 %v1201
    %v1677 = vunpack.c.l.b16 %v1202
    %v1678 = vunpack.c.h.b16 %v1202
    %v1679 = vunpack.c.l.b16 %v1203
    %v1680 = vunpack.c.h.b16 %v1203
    %v1681 = vunpack.c.l.b16 %v1204
    %v1682 = vunpack.c.h.b16 %v1204
    %v1683 = vunpack.c.l.b16 %v1205
    %v1684 = vunpack.c.h.b16 %v1205
    %v1685 = vunpack.c.l.b16 %v1206
    %v1686 = vunpack.c.h.b16 %v1206
    %v1687 = vunpack.c.l.b16 %v1207
    %v1688 = vunpack.c.h.b16 %v1207
    %v1689 = vunpack.c.l.b16 %v1208
    %v1690 = vunpack.c.h.b16 %v1208
    %v1691 = vunpack.c.l.b16 %v1209
    %v1692 = vunpack.c.h.b16 %v1209
    %v1693 = vunpack.c.l.b16 %v1210
    %v1694 = vunpack.c.h.b16 %v1210
    %v1695 = vunpack.c.l.b16 %v1211
    %v1696 = vunpack.c.h.b16 %v1211
    %v1697 = vunpack.c.l.b16 %v1212
    %v1698 = vunpack.c.h.b16 %v1212
    %v1699 = vunpack.c.l.b16 %v1213
    %v1700 = vunpack.c.h.b16 %v1213
    %v1701 = vunpack.c.l.b16 %v1214
    %v1702 = vunpack.c.h.b16 %v1214
    %v1703 = vunpack.c.l.b16 %v1215
    %v1704 = vunpack.c.h.b16 %v1215
    %v1705 = vunpack.c.l.b16 %v1216
    %v1706 = vunpack.c.h.b16 %v1216
    %v1707 = vunpack.c.l.b16 %v1217
    %v1708 = vunpack.c.h.b16 %v1217
    %v1709 = vunpack.c.l.b16 %v1218
    %v1710 = vunpack.c.h.b16 %v1218
    %v1711 = vunpack.c.l.b16 %v1219
    %v1712 = vunpack.c.h.b16 %v1219
    %v1713 = vunpack.c.l.b16 %v1220
    %v1714 = vunpack.c.h.b16 %v1220
    %v1715 = vunpack.c.l.b16 %v1221
    %v1716 = vunpack.c.h.b16 %v1221
    %v1717 = vunpack.c.l.b16 %v1222
    %v1718 = vunpack.c.h.b16 %v1222
    %v1719 = vunpack.c.l.b16 %v1223
    %v1720 = vunpack.c.h.b16 %v1223
    %v1721 = vunpack.c.l.b16 %v1224
    %v1722 = vunpack.c.h.b16 %v1224
    %v1723 = vunpack.c.l.b16 %v1225
    %v1724 = vunpack.c.h.b16 %v1225
    %v1725 = vunpack.c.l.b16 %v1226
    %v1726 = vunpack.c.h.b16 %v1226
    %v1727 = vunpack.c.l.b16 %v1227
    %v1728 = vunpack.c.h.b16 %v1227
    %v1729 = vunpack.c.l.b16 %v1228
    %v1730 = vunpack.c.h.b16 %v1228
    %v1731 = vunpack.c.l.b16 %v1229
    %v1732 = vunpack.c.h.b16 %v1229
    %v1733 = vunpack.c.l.b16 %v1230
    %v1734 = vunpack.c.h.b16 %v1230
    %v1735 = vunpack.c.l.b16 %v1231
    %v1736 = vunpack.c.h.b16 %v1231
    %v1737 = vunpack.c.l.b16 %v1232
    %v1738 = vunpack.c.h.b16 %v1232
    %v1739 = vunpack.c.l.b16 %v1233
    %v1740 = vunpack.c.h.b16 %v1233
    %v1741 = vunpack.c.l.b16 %v1234
    %v1742 = vunpack.c.h.b16 %v1234
    %v1743 = vunpack.c.l.b16 %v1235
    %v1744 = vunpack.c.h.b16 %v1235
    %v1745 = vunpack.c.l.b16 %v1236
    %v1746 = vunpack.c.h.b16 %v1236
    %v1747 = vunpack.c.l.b16 %v1237
    %v1748 = vunpack.c.h.b16 %v1237
    %v1749 = vunpack.c.l.b16 %v1238
    %v1750 = vunpack.c.h.b16 %v1238
    %v1751 = vunpack.c.l.b16 %v1239
    %v1752 = vunpack.c.h.b16 %v1239
    %v1753 = vunpack.c.l.b16 %v1240
    %v1754 = vunpack.c.h.b16 %v1240
    %v1755 = vunpack.c.l.b16 %v1241
    %v1756 = vunpack.c.h.b16 %v1241
    %v1757 = vunpack.c.l.b16 %v1242
    %v1758 = vunpack.c.h.b16 %v1242
    %v1759 = vunpack.c.l.b16 %v1243
    %v1760 = vunpack.c.h.b16 %v1243
    %v1761 = vunpack.c.l.b16 %v1244
    %v1762 = vunpack.c.h.b16 %v1244
    %v1763 = vunpack.c.l.b16 %v1245
    %v1764 = vunpack.c.h.b16 %v1245
    %v1765 = vunpack.c.l.b16 %v1246
    %v1766 = vunpack.c.h.b16 %v1246
    %v1767 = vunpack.c.l.b16 %v1247
    %v1768 = vunpack.c.h.b16 %v1247
    %v1769 = vunpack.c.l.b16 %v1248
    %v1770 = vunpack.c.h.b16 %v1248
    %v1771 = vunpack.c.l.b16 %v1249
    %v1772 = vunpack.c.h.b16 %v1249
    %v1773 = vunpack.c.l.b16 %v1250
    %v1774 = vunpack.c.h.b16 %v1250
    %v1775 = vunpack.c.l.b16 %v1251
    %v1776 = vunpack.c.h.b16 %v1251
    %v1777 = vunpack.c.l.b16 %v1252
    %v1778 = vunpack.c.h.b16 %v1252
    %v1779 = vunpack.c.l.b16 %v1253
    %v1780 = vunpack.c.h.b16 %v1253
    %v1781 = vunpack.c.l.b16 %v1254
    %v1782 = vunpack.c.h.b16 %v1254
    %v1783 = vunpack.c.l.b16 %v1255
    %v1784 = vunpack.c.h.b16 %v1255
    %v1785 = vunpack.c.l.b16 %v1256
    %v1786 = vunpack.c.h.b16 %v1256
    %v1787 = vunpack.c.l.b16 %v1257
    %v1788 = vunpack.c.h.b16 %v1257
    %v1789 = vunpack.c.l.b16 %v1258
    %v1790 = vunpack.c.h.b16 %v1258
    %v1791 = vunpack.c.l.b16 %v1259
    %v1792 = vunpack.c.h.b16 %v1259
    %v1793 = vunpack.c.l.b16 %v1260
    %v1794 = vunpack.c.h.b16 %v1260
    %v1795 = vunpack.c.l.b16 %v1261
    %v1796 = vunpack.c.h.b16 %v1261
    %v1797 = vunpack.c.l.b16 %v1262
    %v1798 = vunpack.c.h.b16 %v1262
    %v1799 = vunpack.c.l.b16 %v1263
    %v1800 = vunpack.c.h.b16 %v1263
    %v1801 = vunpack.c.l.b16 %v1264
    %v1802 = vunpack.c.h.b16 %v1264
    %v1803 = vunpack.c.l.b16 %v1265
    %v1804 = vunpack.c.h.b16 %v1265
    %v1805 = vunpack.c.l.b16 %v1266
    %v1806 = vunpack.c.h.b16 %v1266
    %v1807 = vunpack.c.l.b16 %v1267
    %v1808 = vunpack.c.h.b16 %v1267
    %v1809 = vunpack.c.l.b16 %v1268
    %v1810 = vunpack.c.h.b16 %v1268
    %v1811 = vunpack.c.l.b16 %v1269
    %v1812 = vunpack.c.h.b16 %v1269
    %v1813 = vunpack.c.l.b16 %v1270
    %v1814 = vunpack.c.h.b16 %v1270
    %v1815 = vunpack.c.l.b16 %v1271
    %v1816 = vunpack.c.h.b16 %v1271
    %v1817 = vunpack.c.l.b16 %v1272
    %v1818 = vunpack.c.h.b16 %v1272
    %v1819 = vunpack.c.l.b16 %v1273
    %v1820 = vunpack.c.h.b16 %v1273
    %v1821 = vunpack.c.l.b16 %v1274
    %v1822 = vunpack.c.h.b16 %v1274
    %v1823 = vunpack.c.l.b16 %v1275
    %v1824 = vunpack.c.h.b16 %v1275
    %v1825 = vunpack.c.l.b16 %v1276
    %v1826 = vunpack.c.h.b16 %v1276
    %v1827 = vunpack.c.l.b16 %v1277
    %v1828 = vunpack.c.h.b16 %v1277
    %v1829 = vunpack.c.l.b16 %v1278
    %v1830 = vunpack.c.h.b16 %v1278
    %v1831 = vunpack.c.l.b16 %v1279
    %v1832 = vunpack.c.h.b16 %v1279
    %v1833 = vunpack.c.l.b16 %v1280
    %v1834 = vunpack.c.h.b16 %v1280
    %v1835 = vunpack.c.l.b16 %v1281
    %v1836 = vunpack.c.h.b16 %v1281
    %v1837 = vunpack.c.l.b16 %v1282
    %v1838 = vunpack.c.h.b16 %v1282
    %v1839 = vunpack.c.l.b16 %v1283
    %v1840 = vunpack.c.h.b16 %v1283
    %v1841 = vunpack.c.l.b16 %v1284
    %v1842 = vunpack.c.h.b16 %v1284
    %v1843 = vunpack.c.l.b16 %v1285
    %v1844 = vunpack.c.h.b16 %v1285
    %v1845 = vunpack.c.l.b16 %v1286
    %v1846 = vunpack.c.h.b16 %v1286
    %v1847 = vunpack.c.l.b16 %v1287
    %v1848 = vunpack.c.h.b16 %v1287
    %v1849 = vunpack.c.l.b16 %v1288
    %v1850 = vunpack.c.h.b16 %v1288
    %v1851 = vunpack.c.l.b16 %v1289
    %v1852 = vunpack.c.h.b16 %v1289
    %v1853 = vunpack.c.l.b16 %v1290
    %v1854 = vunpack.c.h.b16 %v1290
    %v1855 = vunpack.c.l.b16 %v1291
    %v1856 = vunpack.c.h.b16 %v1291
    %v1857 = vunpack.c.l.b16 %v1292
    %v1858 = vunpack.c.h.b16 %v1292
    %v1859 = vunpack.c.l.b16 %v1293
    %v1860 = vunpack.c.h.b16 %v1293
    %v1861 = vunpack.c.l.b16 %v1294
    %v1862 = vunpack.c.h.b16 %v1294
    %v1863 = vunpack.c.l.b16 %v1295
    %v1864 = vunpack.c.h.b16 %v1295
    %v1865 = vunpack.c.l.b16 %v1296
    %v1866 = vunpack.c.h.b16 %v1296
    %v1867 = vunpack.c.l.b16 %v1297
    %v1868 = vunpack.c.h.b16 %v1297
    %v1869 = vunpack.c.l.b16 %v1298
    %v1870 = vunpack.c.h.b16 %v1298
    %v1871 = vunpack.c.l.b16 %v1299
    %v1872 = vunpack.c.h.b16 %v1299
    %v1873 = vunpack.c.l.b16 %v1300
    %v1874 = vunpack.c.h.b16 %v1300
    %v1875 = vunpack.c.l.b16 %v1301
    %v1876 = vunpack.c.h.b16 %v1301
    %v1877 = vunpack.c.l.b16 %v1302
    %v1878 = vunpack.c.h.b16 %v1302
    %v1879 = vunpack.c.l.b16 %v1303
    %v1880 = vunpack.c.h.b16 %v1303
    %v1881 = vunpack.c.l.b16 %v1304
    %v1882 = vunpack.c.h.b16 %v1304
    %v1883 = vunpack.c.l.b16 %v1305
    %v1884 = vunpack.c.h.b16 %v1305
    %v1885 = vunpack.c.l.b16 %v1306
    %v1886 = vunpack.c.h.b16 %v1306
    %v1887 = vunpack.c.l.b16 %v1307
    %v1888 = vunpack.c.h.b16 %v1307
    %v1889 = vunpack.c.l.b16 %v1308
    %v1890 = vunpack.c.h.b16 %v1308
    %v1891 = vunpack.c.l.b16 %v1309
    %v1892 = vunpack.c.h.b16 %v1309
    %v1893 = vunpack.c.l.b16 %v1310
    %v1894 = vunpack.c.h.b16 %v1310
    %v1895 = vunpack.c.l.b16 %v1311
    %v1896 = vunpack.c.h.b16 %v1311
    %v1897 = vunpack.c.l.b16 %v1312
    %v1898 = vunpack.c.h.b16 %v1312
    %v1899 = vunpack.c.l.b16 %v1313
    %v1900 = vunpack.c.h.b16 %v1313
    %v1901 = vunpack.c.l.b16 %v1314
    %v1902 = vunpack.c.h.b16 %v1314
    %v1903 = vpack.c.b16 %v1665, %v1631
    %v1904 = vpack.c.b16 %v1666, %v1632
    %v1905 = vpack.c.b16 %v1667, %v1633
    %v1906 = vpack.c.b16 %v1668, %v1634
    %v1907 = vpack.c.b16 %v1669, %v1635
    %v1908 = vpack.c.b16 %v1670, %v1636
    %v1909 = vpack.c.b16 %v1671, %v1637
    %v1910 = vpack.c.b16 %v1672, %v1638
    %v1911 = vpack.c.b16 %v1673, %v1639
    %v1912 = vpack.c.b16 %v1674, %v1640
    %v1913 = vpack.c.b16 %v1675, %v1641
    %v1914 = vpack.c.b16 %v1676, %v1642
    %v1915 = vpack.c.b16 %v1677, %v1643
    %v1916 = vpack.c.b16 %v1678, %v1644
    %v1917 = vpack.c.b16 %v1679, %v1645
    %v1918 = vpack.c.b16 %v1680, %v1646
    %v1919 = vpack.c.b16 %v1681, %v1647
    %v1920 = vpack.c.b16 %v1682, %v1648
    %v1921 = vpack.c.b16 %v1683, %v1649
    %v1922 = vpack.c.b16 %v1684, %v1650
    %v1923 = vpack.c.b16 %v1685, %v1651
    %v1924 = vpack.c.b16 %v1686, %v1652
    %v1925 = vpack.c.b16 %v1687, %v1653
    %v1926 = vpack.c.b16 %v1688, %v1654
    %v1927 = vpack.c.b16 %v1689, %v1655
    %v1928 = vpack.c.b16 %v1690, %v1656
    %v1929 = vpack.c.b16 %v1691, %v1657
    %v1930 = vpack.c.b16 %v1692, %v1658
    %v1931 = vpack.c.b16 %v1693, %v1659
    %v1932 = vpack.c.b16 %v1694, %v1660
    %v1933 = vpack.c.b16 %v1695, %v1661
    %v1934 = vpack.c.b16 %v1696, %v1662
    %v1935 = vpack.c.b16 %v1697, %v1663
    %v1936 = vpack.c.b16 %v1698, %v1664
    %v1937 = vpack.c.b16 %v1733, %v1699
    %v1938 = vpack.c.b16 %v1734, %v1700
    %v1939 = vpack.c.b16 %v1735, %v1701
    %v1940 = vpack.c.b16 %v1736, %v1702
    %v1941 = vpack.c.b16 %v1737, %v1703
    %v1942 = vpack.c.b16 %v1738, %v1704
    %v1943 = vpack.c.b16 %v1739, %v1705
    %v1944 = vpack.c.b16 %v1740, %v1706
    %v1945 = vpack.c.b16 %v1741, %v1707
    %v1946 = vpack.c.b16 %v1742, %v1708
    %v1947 = vpack.c.b16 %v1743, %v1709
    %v1948 = vpack.c.b16 %v1744, %v1710
    %v1949 = vpack.c.b16 %v1745, %v1711
    %v1950 = vpack.c.b16 %v1746, %v1712
    %v1951 = vpack.c.b16 %v1747, %v1713
    %v1952 = vpack.c.b16 %v1748, %v1714
    %v1953 = vpack.c.b16 %v1749, %v1715
    %v1954 = vpack.c.b16 %v1750, %v1716
    %v1955 = vpack.c.b16 %v1751, %v1717
    %v1956 = vpack.c.b16 %v1752, %v1718
    %v1957 = vpack.c.b16 %v1753, %v1719
    %v1958 = vpack.c.b16 %v1754, %v1720
    %v1959 = vpack.c.b16 %v1755, %v1721
    %v1960 = vpack.c.b16 %v1756, %v1722
    %v1961 = vpack.c.b16 %v1757, %v1723
    %v1962 = vpack.c.b16 %v1758, %v1724
    %v1963 = vpack.c.b16 %v1759, %v1725
    %v1964 = vpack.c.b16 %v1760, %v1726
    %v1965 = vpack.c.b16 %v1761, %v1727
    %v1966 = vpack.c.b16 %v1762, %v1728
    %v1967 = vpack.c.b16 %v1763, %v1729
    %v1968 = vpack.c.b16 %v1764, %v1730
    %v1969 = vpack.c.b16 %v1765, %v1731
    %v1970 = vpack.c.b16 %v1766, %v1732
    %v1971 = vpack.c.b16 %v1801, %v1767
    %v1972 = vpack.c.b16 %v1802, %v1768
    %v1973 = vpack.c.b16 %v1803, %v1769
    %v1974 = vpack.c.b16 %v1804, %v1770
    %v1975 = vpack.c.b16 %v1805, %v1771
    %v1976 = vpack.c.b16 %v1806, %v1772
    %v1977 = vpack.c.b16 %v1807, %v1773
    %v1978 = vpack.c.b16 %v1808, %v1774
    %v1979 = vpack.c.b16 %v1809, %v1775
    %v1980 = vpack.c.b16 %v1810, %v1776
    %v1981 = vpack.c.b16 %v1811, %v1777
    %v1982 = vpack.c.b16 %v1812, %v1778
    %v1983 = vpack.c.b16 %v1813, %v1779
    %v1984 = vpack.c.b16 %v1814, %v1780
    %v1985 = vpack.c.b16 %v1815, %v1781
    %v1986 = vpack.c.b16 %v1816, %v1782
    %v1987 = vpack.c.b16 %v1817, %v1783
    %v1988 = vpack.c.b16 %v1818, %v1784
    %v1989 = vpack.c.b16 %v1819, %v1785
    %v1990 = vpack.c.b16 %v1820, %v1786
    %v1991 = vpack.c.b16 %v1821, %v1787
    %v1992 = vpack.c.b16 %v1822, %v1788
    %v1993 = vpack.c.b16 %v1823, %v1789
    %v1994 = vpack.c.b16 %v1824, %v1790
    %v1995 = vpack.c.b16 %v1825, %v1791
    %v1996 = vpack.c.b16 %v1826, %v1792
    %v1997 = vpack.c.b16 %v1827, %v1793
    %v1998 = vpack.c.b16 %v1828, %v1794
    %v1999 = vpack.c.b16 %v1829, %v1795
    %v2000 = vpack.c.b16 %v1830, %v1796
    %v2001 = vpack.c.b16 %v1831, %v1797
    %v2002 = vpack.c.b16 %v1832, %v1798
    %v2003 = vpack.c.b16 %v1833, %v1799
    %v2004 = vpack.c.b16 %v1834, %v1800
    %v2005 = vpack.c.b16 %v1869, %v1835
    %v2006 = vpack.c.b16 %v1870, %v1836
    %v2007 = vpack.c.b16 %v1871, %v1837
    %v2008 = vpack.c.b16 %v1872, %v1838
    %v2009 = vpack.c.b16 %v1873, %v1839
    %v2010 = vpack.c.b16 %v1874, %v1840
    %v2011 = vpack.c.b16 %v1875, %v1841
    %v2012 = vpack.c.b16 %v1876, %v1842
    %v2013 = vpack.c.b16 %v1877, %v1843
    %v2014 = vpack.c.b16 %v1878, %v1844
    %v2015 = vpack.c.b16 %v1879, %v1845
    %v2016 = vpack.c.b16 %v1880, %v1846
    %v2017 = vpack.c.b16 %v1881, %v1847
    %v2018 = vpack.c.b16 %v1882, %v1848
    %v2019 = vpack.c.b16 %v1883, %v1849
    %v2020 = vpack.c.b16 %v1884, %v1850
    %v2021 = vpack.c.b16 %v1885, %v1851
    %v2022 = vpack.c.b16 %v1886, %v1852
    %v2023 = vpack.c.b16 %v1887, %v1853
    %v2024 = vpack.c.b16 %v1888, %v1854
    %v2025 = vpack.c.b16 %v1889, %v1855
    %v2026 = vpack.c.b16 %v1890, %v1856
    %v2027 = vpack.c.b16 %v1891, %v1857
    %v2028 = vpack.c.b16 %v1892, %v1858
    %v2029 = vpack.c.b16 %v1893, %v1859
    %v2030 = vpack.c.b16 %v1894, %v1860
    %v2031 = vpack.c.b16 %v1895, %v1861
    %v2032 = vpack.c.b16 %v1896, %v1862
    %v2033 = vpack.c.b16 %v1897, %v1863
    %v2034 = vpack.c.b16 %v1898, %v1864
    %v2035 = vpack.c.b16 %v1899, %v1865
    %v2036 = vpack.c.b16 %v1900, %v1866
    %v2037 = vpack.c.b16 %v1901, %v1867
    %v2038 = vpack.c.b16 %v1902, %v1868
    %vm2175 = vcmask 523264
    %v2177 = vsel %vm2175, %v1171, 0
    %2179 = vmatprep.subr.bf16.mxu0 0
    %2180 = vmatpush1.bf16.msra.mxu0 0
    %2181 = vmatprep.subr.bf16.mxu0 0
    %2182 = vmatpush1.bf16.msra.mxu0 0
    %2183 = vmatprep.subr.bf16.mxu0 0
    %2184 = vmatpush1.bf16.msra.mxu0 0
    %2185 = vmatprep.subr.bf16.mxu0 0
    %2186 = vmatpush1.bf16.msra.mxu0 0
    %2187 = vmatprep.subr.bf16.mxu0 %v2006
    %2188 = vmatpush1.bf16.msra.mxu0 %v2005
    %2189 = vmatprep.subr.bf16.mxu0 %v1972
    %2190 = vmatpush1.bf16.msra.mxu0 %v1971
    %2191 = vmatprep.subr.bf16.mxu0 %v1938
    %2192 = vmatpush1.bf16.msra.mxu0 %v1937
    %2193 = vmatprep.subr.bf16.mxu0 %v1904
    %2194 = vmatpush1.bf16.msra.mxu0 %v1903
    %2195 = vmatprep.subr.bf16.mxu0 0
    %2196 = vmatpush2.bf16.msra.mxu0 0
    %2197 = vmatprep.subr.bf16.mxu0 0
    %2198 = vmatpush2.bf16.msra.mxu0 0
    %2199 = vmatprep.subr.bf16.mxu0 0
    %2200 = vmatpush2.bf16.msra.mxu0 0
    %2201 = vmatprep.subr.bf16.mxu0 0
    %2202 = vmatpush2.bf16.msra.mxu0 0
    %2203 = vmatprep.subr.bf16.mxu0 0
    %2204 = vmatpush2.bf16.msra.mxu0 0
    %2205 = vmatprep.subr.bf16.mxu0 0
    %2206 = vmatpush2.bf16.msra.mxu0 0
    %2207 = vmatprep.subr.bf16.mxu0 0
    %2208 = vmatpush2.bf16.msra.mxu0 0
    %2209 = vmatprep.subr.bf16.mxu0 0
    %2210 = vmatpush2.bf16.msra.mxu0 0
    %2211 = vmatprep.mubr.bf16.mxu0 0
    %2212 = vmatmul.mubr.bf16.gmra.mxu0 %v2177
    %v2213 = vpop.f32.mrf.mxu0
    %v2214 = vadd.f32 %v1328, %v2213
    %v2215 = vpop.f32.mrf.mxu0
    %v2216 = vadd.f32 %v1332, %v2215
    %v2217 = vpop.f32.mrf.mxu0
    %v2218 = vpop.f32.mrf.mxu0
    %2219 = vdwg.mxu0
    %2220 = vmatprep.subr.bf16.mxu0 0
    %2221 = vmatpush1.bf16.msra.mxu0 0
    %2222 = vmatprep.subr.bf16.mxu0 0
    %2223 = vmatpush1.bf16.msra.mxu0 0
    %2224 = vmatprep.subr.bf16.mxu0 0
    %2225 = vmatpush1.bf16.msra.mxu0 0
    %2226 = vmatprep.subr.bf16.mxu0 0
    %2227 = vmatpush1.bf16.msra.mxu0 0
    %2228 = vmatprep.subr.bf16.mxu0 %v2008
    %2229 = vmatpush1.bf16.msra.mxu0 %v2007
    %2230 = vmatprep.subr.bf16.mxu0 %v1974
    %2231 = vmatpush1.bf16.msra.mxu0 %v1973
    %2232 = vmatprep.subr.bf16.mxu0 %v1940
    %2233 = vmatpush1.bf16.msra.mxu0 %v1939
    %2234 = vmatprep.subr.bf16.mxu0 %v1906
    %2235 = vmatpush1.bf16.msra.mxu0 %v1905
    %2236 = vmatprep.subr.bf16.mxu0 0
    %2237 = vmatpush2.bf16.msra.mxu0 0
    %2238 = vmatprep.subr.bf16.mxu0 0
    %2239 = vmatpush2.bf16.msra.mxu0 0
    %2240 = vmatprep.subr.bf16.mxu0 0
    %2241 = vmatpush2.bf16.msra.mxu0 0
    %2242 = vmatprep.subr.bf16.mxu0 0
    %2243 = vmatpush2.bf16.msra.mxu0 0
    %2244 = vmatprep.subr.bf16.mxu0 0
    %2245 = vmatpush2.bf16.msra.mxu0 0
    %2246 = vmatprep.subr.bf16.mxu0 0
    %2247 = vmatpush2.bf16.msra.mxu0 0
    %2248 = vmatprep.subr.bf16.mxu0 0
    %2249 = vmatpush2.bf16.msra.mxu0 0
    %2250 = vmatprep.subr.bf16.mxu0 0
    %2251 = vmatpush2.bf16.msra.mxu0 0
    %2252 = vmatprep.mubr.bf16.mxu0 0
    %2253 = vmatmul.mubr.bf16.gmra.mxu0 %v2177
    %v2254 = vpop.f32.mrf.mxu0
    %v2255 = vadd.f32 %v1336, %v2254
    %v2256 = vpop.f32.mrf.mxu0
    %v2257 = vadd.f32 %v1340, %v2256
    %v2258 = vpop.f32.mrf.mxu0
    %v2259 = vpop.f32.mrf.mxu0
    %2260 = vdwg.mxu0
    %2261 = vmatprep.subr.bf16.mxu0 0
    %2262 = vmatpush1.bf16.msra.mxu0 0
    %2263 = vmatprep.subr.bf16.mxu0 0
    %2264 = vmatpush1.bf16.msra.mxu0 0
    %2265 = vmatprep.subr.bf16.mxu0 0
    %2266 = vmatpush1.bf16.msra.mxu0 0
    %2267 = vmatprep.subr.bf16.mxu0 0
    %2268 = vmatpush1.bf16.msra.mxu0 0
    %2269 = vmatprep.subr.bf16.mxu0 %v2010
    %2270 = vmatpush1.bf16.msra.mxu0 %v2009
    %2271 = vmatprep.subr.bf16.mxu0 %v1976
    %2272 = vmatpush1.bf16.msra.mxu0 %v1975
    %2273 = vmatprep.subr.bf16.mxu0 %v1942
    %2274 = vmatpush1.bf16.msra.mxu0 %v1941
    %2275 = vmatprep.subr.bf16.mxu0 %v1908
    %2276 = vmatpush1.bf16.msra.mxu0 %v1907
    %2277 = vmatprep.subr.bf16.mxu0 0
    %2278 = vmatpush2.bf16.msra.mxu0 0
    %2279 = vmatprep.subr.bf16.mxu0 0
    %2280 = vmatpush2.bf16.msra.mxu0 0
    %2281 = vmatprep.subr.bf16.mxu0 0
    %2282 = vmatpush2.bf16.msra.mxu0 0
    %2283 = vmatprep.subr.bf16.mxu0 0
    %2284 = vmatpush2.bf16.msra.mxu0 0
    %2285 = vmatprep.subr.bf16.mxu0 0
    %2286 = vmatpush2.bf16.msra.mxu0 0
    %2287 = vmatprep.subr.bf16.mxu0 0
    %2288 = vmatpush2.bf16.msra.mxu0 0
    %2289 = vmatprep.subr.bf16.mxu0 0
    %2290 = vmatpush2.bf16.msra.mxu0 0
    %2291 = vmatprep.subr.bf16.mxu0 0
    %2292 = vmatpush2.bf16.msra.mxu0 0
    %2293 = vmatprep.mubr.bf16.mxu0 0
    %2294 = vmatmul.mubr.bf16.gmra.mxu0 %v2177
    %v2295 = vpop.f32.mrf.mxu0
    %v2296 = vadd.f32 %v1344, %v2295
    %v2297 = vpop.f32.mrf.mxu0
    %v2298 = vadd.f32 %v1348, %v2297
    %v2299 = vpop.f32.mrf.mxu0
    %v2300 = vpop.f32.mrf.mxu0
    %2301 = vdwg.mxu0
    %2302 = vmatprep.subr.bf16.mxu0 0
    %2303 = vmatpush1.bf16.msra.mxu0 0
    %2304 = vmatprep.subr.bf16.mxu0 0
    %2305 = vmatpush1.bf16.msra.mxu0 0
    %2306 = vmatprep.subr.bf16.mxu0 0
    %2307 = vmatpush1.bf16.msra.mxu0 0
    %2308 = vmatprep.subr.bf16.mxu0 0
    %2309 = vmatpush1.bf16.msra.mxu0 0
    %2310 = vmatprep.subr.bf16.mxu0 %v2012
    %2311 = vmatpush1.bf16.msra.mxu0 %v2011
    %2312 = vmatprep.subr.bf16.mxu0 %v1978
    %2313 = vmatpush1.bf16.msra.mxu0 %v1977
    %2314 = vmatprep.subr.bf16.mxu0 %v1944
    %2315 = vmatpush1.bf16.msra.mxu0 %v1943
    %2316 = vmatprep.subr.bf16.mxu0 %v1910
    %2317 = vmatpush1.bf16.msra.mxu0 %v1909
    %2318 = vmatprep.subr.bf16.mxu0 0
    %2319 = vmatpush2.bf16.msra.mxu0 0
    %2320 = vmatprep.subr.bf16.mxu0 0
    %2321 = vmatpush2.bf16.msra.mxu0 0
    %2322 = vmatprep.subr.bf16.mxu0 0
    %2323 = vmatpush2.bf16.msra.mxu0 0
    %2324 = vmatprep.subr.bf16.mxu0 0
    %2325 = vmatpush2.bf16.msra.mxu0 0
    %2326 = vmatprep.subr.bf16.mxu0 0
    %2327 = vmatpush2.bf16.msra.mxu0 0
    %2328 = vmatprep.subr.bf16.mxu0 0
    %2329 = vmatpush2.bf16.msra.mxu0 0
    %2330 = vmatprep.subr.bf16.mxu0 0
    %2331 = vmatpush2.bf16.msra.mxu0 0
    %2332 = vmatprep.subr.bf16.mxu0 0
    %2333 = vmatpush2.bf16.msra.mxu0 0
    %2334 = vmatprep.mubr.bf16.mxu0 0
    %2335 = vmatmul.mubr.bf16.gmra.mxu0 %v2177
    %v2336 = vpop.f32.mrf.mxu0
    %v2337 = vadd.f32 %v1352, %v2336
    %v2338 = vpop.f32.mrf.mxu0
    %v2339 = vadd.f32 %v1356, %v2338
    %v2340 = vpop.f32.mrf.mxu0
    %v2341 = vpop.f32.mrf.mxu0
    %2342 = vdwg.mxu0
    %2343 = vmatprep.subr.bf16.mxu0 0
    %2344 = vmatpush1.bf16.msra.mxu0 0
    %2345 = vmatprep.subr.bf16.mxu0 0
    %2346 = vmatpush1.bf16.msra.mxu0 0
    %2347 = vmatprep.subr.bf16.mxu0 0
    %2348 = vmatpush1.bf16.msra.mxu0 0
    %2349 = vmatprep.subr.bf16.mxu0 0
    %2350 = vmatpush1.bf16.msra.mxu0 0
    %2351 = vmatprep.subr.bf16.mxu0 %v2014
    %2352 = vmatpush1.bf16.msra.mxu0 %v2013
    %2353 = vmatprep.subr.bf16.mxu0 %v1980
    %2354 = vmatpush1.bf16.msra.mxu0 %v1979
    %2355 = vmatprep.subr.bf16.mxu0 %v1946
    %2356 = vmatpush1.bf16.msra.mxu0 %v1945
    %2357 = vmatprep.subr.bf16.mxu0 %v1912
    %2358 = vmatpush1.bf16.msra.mxu0 %v1911
    %2359 = vmatprep.subr.bf16.mxu0 0
    %2360 = vmatpush2.bf16.msra.mxu0 0
    %2361 = vmatprep.subr.bf16.mxu0 0
    %2362 = vmatpush2.bf16.msra.mxu0 0
    %2363 = vmatprep.subr.bf16.mxu0 0
    %2364 = vmatpush2.bf16.msra.mxu0 0
    %2365 = vmatprep.subr.bf16.mxu0 0
    %2366 = vmatpush2.bf16.msra.mxu0 0
    %2367 = vmatprep.subr.bf16.mxu0 0
    %2368 = vmatpush2.bf16.msra.mxu0 0
    %2369 = vmatprep.subr.bf16.mxu0 0
    %2370 = vmatpush2.bf16.msra.mxu0 0
    %2371 = vmatprep.subr.bf16.mxu0 0
    %2372 = vmatpush2.bf16.msra.mxu0 0
    %2373 = vmatprep.subr.bf16.mxu0 0
    %2374 = vmatpush2.bf16.msra.mxu0 0
    %2375 = vmatprep.mubr.bf16.mxu0 0
    %2376 = vmatmul.mubr.bf16.gmra.mxu0 %v2177
    %v2377 = vpop.f32.mrf.mxu0
    %v2378 = vadd.f32 %v1360, %v2377
    %v2379 = vpop.f32.mrf.mxu0
    %v2380 = vadd.f32 %v1364, %v2379
    %v2381 = vpop.f32.mrf.mxu0
    %v2382 = vpop.f32.mrf.mxu0
    %2383 = vdwg.mxu0
    %2384 = vmatprep.subr.bf16.mxu0 0
    %2385 = vmatpush1.bf16.msra.mxu0 0
    %2386 = vmatprep.subr.bf16.mxu0 0
    %2387 = vmatpush1.bf16.msra.mxu0 0
    %2388 = vmatprep.subr.bf16.mxu0 0
    %2389 = vmatpush1.bf16.msra.mxu0 0
    %2390 = vmatprep.subr.bf16.mxu0 0
    %2391 = vmatpush1.bf16.msra.mxu0 0
    %2392 = vmatprep.subr.bf16.mxu0 %v2016
    %2393 = vmatpush1.bf16.msra.mxu0 %v2015
    %2394 = vmatprep.subr.bf16.mxu0 %v1982
    %2395 = vmatpush1.bf16.msra.mxu0 %v1981
    %2396 = vmatprep.subr.bf16.mxu0 %v1948
    %2397 = vmatpush1.bf16.msra.mxu0 %v1947
    %2398 = vmatprep.subr.bf16.mxu0 %v1914
    %2399 = vmatpush1.bf16.msra.mxu0 %v1913
    %2400 = vmatprep.subr.bf16.mxu0 0
    %2401 = vmatpush2.bf16.msra.mxu0 0
    %2402 = vmatprep.subr.bf16.mxu0 0
    %2403 = vmatpush2.bf16.msra.mxu0 0
    %2404 = vmatprep.subr.bf16.mxu0 0
    %2405 = vmatpush2.bf16.msra.mxu0 0
    %2406 = vmatprep.subr.bf16.mxu0 0
    %2407 = vmatpush2.bf16.msra.mxu0 0
    %2408 = vmatprep.subr.bf16.mxu0 0
    %2409 = vmatpush2.bf16.msra.mxu0 0
    %2410 = vmatprep.subr.bf16.mxu0 0
    %2411 = vmatpush2.bf16.msra.mxu0 0
    %2412 = vmatprep.subr.bf16.mxu0 0
    %2413 = vmatpush2.bf16.msra.mxu0 0
    %2414 = vmatprep.subr.bf16.mxu0 0
    %2415 = vmatpush2.bf16.msra.mxu0 0
    %2416 = vmatprep.mubr.bf16.mxu0 0
    %2417 = vmatmul.mubr.bf16.gmra.mxu0 %v2177
    %v2418 = vpop.f32.mrf.mxu0
    %v2419 = vadd.f32 %v1368, %v2418
    %v2420 = vpop.f32.mrf.mxu0
    %v2421 = vadd.f32 %v1372, %v2420
    %v2422 = vpop.f32.mrf.mxu0
    %v2423 = vpop.f32.mrf.mxu0
    %2424 = vdwg.mxu0
    %2425 = vmatprep.subr.bf16.mxu0 0
    %2426 = vmatpush1.bf16.msra.mxu0 0
    %2427 = vmatprep.subr.bf16.mxu0 0
    %2428 = vmatpush1.bf16.msra.mxu0 0
    %2429 = vmatprep.subr.bf16.mxu0 0
    %2430 = vmatpush1.bf16.msra.mxu0 0
    %2431 = vmatprep.subr.bf16.mxu0 0
    %2432 = vmatpush1.bf16.msra.mxu0 0
    %2433 = vmatprep.subr.bf16.mxu0 %v2018
    %2434 = vmatpush1.bf16.msra.mxu0 %v2017
    %2435 = vmatprep.subr.bf16.mxu0 %v1984
    %2436 = vmatpush1.bf16.msra.mxu0 %v1983
    %2437 = vmatprep.subr.bf16.mxu0 %v1950
    %2438 = vmatpush1.bf16.msra.mxu0 %v1949
    %2439 = vmatprep.subr.bf16.mxu0 %v1916
    %2440 = vmatpush1.bf16.msra.mxu0 %v1915
    %2441 = vmatprep.subr.bf16.mxu0 0
    %2442 = vmatpush2.bf16.msra.mxu0 0
    %2443 = vmatprep.subr.bf16.mxu0 0
    %2444 = vmatpush2.bf16.msra.mxu0 0
    %2445 = vmatprep.subr.bf16.mxu0 0
    %2446 = vmatpush2.bf16.msra.mxu0 0
    %2447 = vmatprep.subr.bf16.mxu0 0
    %2448 = vmatpush2.bf16.msra.mxu0 0
    %2449 = vmatprep.subr.bf16.mxu0 0
    %2450 = vmatpush2.bf16.msra.mxu0 0
    %2451 = vmatprep.subr.bf16.mxu0 0
    %2452 = vmatpush2.bf16.msra.mxu0 0
    %2453 = vmatprep.subr.bf16.mxu0 0
    %2454 = vmatpush2.bf16.msra.mxu0 0
    %2455 = vmatprep.subr.bf16.mxu0 0
    %2456 = vmatpush2.bf16.msra.mxu0 0
    %2457 = vmatprep.mubr.bf16.mxu0 0
    %2458 = vmatmul.mubr.bf16.gmra.mxu0 %v2177
    %v2459 = vpop.f32.mrf.mxu0
    %v2460 = vadd.f32 %v1376, %v2459
    %v2461 = vpop.f32.mrf.mxu0
    %v2462 = vadd.f32 %v1380, %v2461
    %v2463 = vpop.f32.mrf.mxu0
    %v2464 = vpop.f32.mrf.mxu0
    %2465 = vdwg.mxu0
    %2466 = vmatprep.subr.bf16.mxu0 0
    %2467 = vmatpush1.bf16.msra.mxu0 0
    %2468 = vmatprep.subr.bf16.mxu0 0
    %2469 = vmatpush1.bf16.msra.mxu0 0
    %2470 = vmatprep.subr.bf16.mxu0 0
    %2471 = vmatpush1.bf16.msra.mxu0 0
    %2472 = vmatprep.subr.bf16.mxu0 0
    %2473 = vmatpush1.bf16.msra.mxu0 0
    %2474 = vmatprep.subr.bf16.mxu0 %v2020
    %2475 = vmatpush1.bf16.msra.mxu0 %v2019
    %2476 = vmatprep.subr.bf16.mxu0 %v1986
    %2477 = vmatpush1.bf16.msra.mxu0 %v1985
    %2478 = vmatprep.subr.bf16.mxu0 %v1952
    %2479 = vmatpush1.bf16.msra.mxu0 %v1951
    %2480 = vmatprep.subr.bf16.mxu0 %v1918
    %2481 = vmatpush1.bf16.msra.mxu0 %v1917
    %2482 = vmatprep.subr.bf16.mxu0 0
    %2483 = vmatpush2.bf16.msra.mxu0 0
    %2484 = vmatprep.subr.bf16.mxu0 0
    %2485 = vmatpush2.bf16.msra.mxu0 0
    %2486 = vmatprep.subr.bf16.mxu0 0
    %2487 = vmatpush2.bf16.msra.mxu0 0
    %2488 = vmatprep.subr.bf16.mxu0 0
    %2489 = vmatpush2.bf16.msra.mxu0 0
    %2490 = vmatprep.subr.bf16.mxu0 0
    %2491 = vmatpush2.bf16.msra.mxu0 0
    %2492 = vmatprep.subr.bf16.mxu0 0
    %2493 = vmatpush2.bf16.msra.mxu0 0
    %2494 = vmatprep.subr.bf16.mxu0 0
    %2495 = vmatpush2.bf16.msra.mxu0 0
    %2496 = vmatprep.subr.bf16.mxu0 0
    %2497 = vmatpush2.bf16.msra.mxu0 0
    %2498 = vmatprep.mubr.bf16.mxu0 0
    %2499 = vmatmul.mubr.bf16.gmra.mxu0 %v2177
    %v2500 = vpop.f32.mrf.mxu0
    %v2501 = vadd.f32 %v1384, %v2500
    %v2502 = vpop.f32.mrf.mxu0
    %v2503 = vadd.f32 %v1388, %v2502
    %v2504 = vpop.f32.mrf.mxu0
    %v2505 = vpop.f32.mrf.mxu0
    %2506 = vdwg.mxu0
    %2507 = vmatprep.subr.bf16.mxu0 0
    %2508 = vmatpush1.bf16.msra.mxu0 0
    %2509 = vmatprep.subr.bf16.mxu0 0
    %2510 = vmatpush1.bf16.msra.mxu0 0
    %2511 = vmatprep.subr.bf16.mxu0 0
    %2512 = vmatpush1.bf16.msra.mxu0 0
    %2513 = vmatprep.subr.bf16.mxu0 0
    %2514 = vmatpush1.bf16.msra.mxu0 0
    %2515 = vmatprep.subr.bf16.mxu0 %v2022
    %2516 = vmatpush1.bf16.msra.mxu0 %v2021
    %2517 = vmatprep.subr.bf16.mxu0 %v1988
    %2518 = vmatpush1.bf16.msra.mxu0 %v1987
    %2519 = vmatprep.subr.bf16.mxu0 %v1954
    %2520 = vmatpush1.bf16.msra.mxu0 %v1953
    %2521 = vmatprep.subr.bf16.mxu0 %v1920
    %2522 = vmatpush1.bf16.msra.mxu0 %v1919
    %2523 = vmatprep.subr.bf16.mxu0 0
    %2524 = vmatpush2.bf16.msra.mxu0 0
    %2525 = vmatprep.subr.bf16.mxu0 0
    %2526 = vmatpush2.bf16.msra.mxu0 0
    %2527 = vmatprep.subr.bf16.mxu0 0
    %2528 = vmatpush2.bf16.msra.mxu0 0
    %2529 = vmatprep.subr.bf16.mxu0 0
    %2530 = vmatpush2.bf16.msra.mxu0 0
    %2531 = vmatprep.subr.bf16.mxu0 0
    %2532 = vmatpush2.bf16.msra.mxu0 0
    %2533 = vmatprep.subr.bf16.mxu0 0
    %2534 = vmatpush2.bf16.msra.mxu0 0
    %2535 = vmatprep.subr.bf16.mxu0 0
    %2536 = vmatpush2.bf16.msra.mxu0 0
    %2537 = vmatprep.subr.bf16.mxu0 0
    %2538 = vmatpush2.bf16.msra.mxu0 0
    %2539 = vmatprep.mubr.bf16.mxu0 0
    %2540 = vmatmul.mubr.bf16.gmra.mxu0 %v2177
    %v2541 = vpop.f32.mrf.mxu0
    %v2542 = vadd.f32 %v1392, %v2541
    %v2543 = vpop.f32.mrf.mxu0
    %v2544 = vadd.f32 %v1396, %v2543
    %v2545 = vpop.f32.mrf.mxu0
    %v2546 = vpop.f32.mrf.mxu0
    %2547 = vdwg.mxu0
    %2548 = vmatprep.subr.bf16.mxu0 0
    %2549 = vmatpush1.bf16.msra.mxu0 0
    %2550 = vmatprep.subr.bf16.mxu0 0
    %2551 = vmatpush1.bf16.msra.mxu0 0
    %2552 = vmatprep.subr.bf16.mxu0 0
    %2553 = vmatpush1.bf16.msra.mxu0 0
    %2554 = vmatprep.subr.bf16.mxu0 0
    %2555 = vmatpush1.bf16.msra.mxu0 0
    %2556 = vmatprep.subr.bf16.mxu0 %v2024
    %2557 = vmatpush1.bf16.msra.mxu0 %v2023
    %2558 = vmatprep.subr.bf16.mxu0 %v1990
    %2559 = vmatpush1.bf16.msra.mxu0 %v1989
    %2560 = vmatprep.subr.bf16.mxu0 %v1956
    %2561 = vmatpush1.bf16.msra.mxu0 %v1955
    %2562 = vmatprep.subr.bf16.mxu0 %v1922
    %2563 = vmatpush1.bf16.msra.mxu0 %v1921
    %2564 = vmatprep.subr.bf16.mxu0 0
    %2565 = vmatpush2.bf16.msra.mxu0 0
    %2566 = vmatprep.subr.bf16.mxu0 0
    %2567 = vmatpush2.bf16.msra.mxu0 0
    %2568 = vmatprep.subr.bf16.mxu0 0
    %2569 = vmatpush2.bf16.msra.mxu0 0
    %2570 = vmatprep.subr.bf16.mxu0 0
    %2571 = vmatpush2.bf16.msra.mxu0 0
    %2572 = vmatprep.subr.bf16.mxu0 0
    %2573 = vmatpush2.bf16.msra.mxu0 0
    %2574 = vmatprep.subr.bf16.mxu0 0
    %2575 = vmatpush2.bf16.msra.mxu0 0
    %2576 = vmatprep.subr.bf16.mxu0 0
    %2577 = vmatpush2.bf16.msra.mxu0 0
    %2578 = vmatprep.subr.bf16.mxu0 0
    %2579 = vmatpush2.bf16.msra.mxu0 0
    %2580 = vmatprep.mubr.bf16.mxu0 0
    %2581 = vmatmul.mubr.bf16.gmra.mxu0 %v2177
    %v2582 = vpop.f32.mrf.mxu0
    %v2583 = vadd.f32 %v1400, %v2582
    %v2584 = vpop.f32.mrf.mxu0
    %v2585 = vadd.f32 %v1404, %v2584
    %v2586 = vpop.f32.mrf.mxu0
    %v2587 = vpop.f32.mrf.mxu0
    %2588 = vdwg.mxu0
    %2589 = vmatprep.subr.bf16.mxu0 0
    %2590 = vmatpush1.bf16.msra.mxu0 0
    %2591 = vmatprep.subr.bf16.mxu0 0
    %2592 = vmatpush1.bf16.msra.mxu0 0
    %2593 = vmatprep.subr.bf16.mxu0 0
    %2594 = vmatpush1.bf16.msra.mxu0 0
    %2595 = vmatprep.subr.bf16.mxu0 0
    %2596 = vmatpush1.bf16.msra.mxu0 0
    %2597 = vmatprep.subr.bf16.mxu0 %v2026
    %2598 = vmatpush1.bf16.msra.mxu0 %v2025
    %2599 = vmatprep.subr.bf16.mxu0 %v1992
    %2600 = vmatpush1.bf16.msra.mxu0 %v1991
    %2601 = vmatprep.subr.bf16.mxu0 %v1958
    %2602 = vmatpush1.bf16.msra.mxu0 %v1957
    %2603 = vmatprep.subr.bf16.mxu0 %v1924
    %2604 = vmatpush1.bf16.msra.mxu0 %v1923
    %2605 = vmatprep.subr.bf16.mxu0 0
    %2606 = vmatpush2.bf16.msra.mxu0 0
    %2607 = vmatprep.subr.bf16.mxu0 0
    %2608 = vmatpush2.bf16.msra.mxu0 0
    %2609 = vmatprep.subr.bf16.mxu0 0
    %2610 = vmatpush2.bf16.msra.mxu0 0
    %2611 = vmatprep.subr.bf16.mxu0 0
    %2612 = vmatpush2.bf16.msra.mxu0 0
    %2613 = vmatprep.subr.bf16.mxu0 0
    %2614 = vmatpush2.bf16.msra.mxu0 0
    %2615 = vmatprep.subr.bf16.mxu0 0
    %2616 = vmatpush2.bf16.msra.mxu0 0
    %2617 = vmatprep.subr.bf16.mxu0 0
    %2618 = vmatpush2.bf16.msra.mxu0 0
    %2619 = vmatprep.subr.bf16.mxu0 0
    %2620 = vmatpush2.bf16.msra.mxu0 0
    %2621 = vmatprep.mubr.bf16.mxu0 0
    %2622 = vmatmul.mubr.bf16.gmra.mxu0 %v2177
    %v2623 = vpop.f32.mrf.mxu0
    %v2624 = vadd.f32 %v1408, %v2623
    %v2625 = vpop.f32.mrf.mxu0
    %v2626 = vadd.f32 %v1412, %v2625
    %v2627 = vpop.f32.mrf.mxu0
    %v2628 = vpop.f32.mrf.mxu0
    %2629 = vdwg.mxu0
    %2630 = vmatprep.subr.bf16.mxu0 0
    %2631 = vmatpush1.bf16.msra.mxu0 0
    %2632 = vmatprep.subr.bf16.mxu0 0
    %2633 = vmatpush1.bf16.msra.mxu0 0
    %2634 = vmatprep.subr.bf16.mxu0 0
    %2635 = vmatpush1.bf16.msra.mxu0 0
    %2636 = vmatprep.subr.bf16.mxu0 0
    %2637 = vmatpush1.bf16.msra.mxu0 0
    %2638 = vmatprep.subr.bf16.mxu0 %v2028
    %2639 = vmatpush1.bf16.msra.mxu0 %v2027
    %2640 = vmatprep.subr.bf16.mxu0 %v1994
    %2641 = vmatpush1.bf16.msra.mxu0 %v1993
    %2642 = vmatprep.subr.bf16.mxu0 %v1960
    %2643 = vmatpush1.bf16.msra.mxu0 %v1959
    %2644 = vmatprep.subr.bf16.mxu0 %v1926
    %2645 = vmatpush1.bf16.msra.mxu0 %v1925
    %2646 = vmatprep.subr.bf16.mxu0 0
    %2647 = vmatpush2.bf16.msra.mxu0 0
    %2648 = vmatprep.subr.bf16.mxu0 0
    %2649 = vmatpush2.bf16.msra.mxu0 0
    %2650 = vmatprep.subr.bf16.mxu0 0
    %2651 = vmatpush2.bf16.msra.mxu0 0
    %2652 = vmatprep.subr.bf16.mxu0 0
    %2653 = vmatpush2.bf16.msra.mxu0 0
    %2654 = vmatprep.subr.bf16.mxu0 0
    %2655 = vmatpush2.bf16.msra.mxu0 0
    %2656 = vmatprep.subr.bf16.mxu0 0
    %2657 = vmatpush2.bf16.msra.mxu0 0
    %2658 = vmatprep.subr.bf16.mxu0 0
    %2659 = vmatpush2.bf16.msra.mxu0 0
    %2660 = vmatprep.subr.bf16.mxu0 0
    %2661 = vmatpush2.bf16.msra.mxu0 0
    %2662 = vmatprep.mubr.bf16.mxu0 0
    %2663 = vmatmul.mubr.bf16.gmra.mxu0 %v2177
    %v2664 = vpop.f32.mrf.mxu0
    %v2665 = vadd.f32 %v1416, %v2664
    %v2666 = vpop.f32.mrf.mxu0
    %v2667 = vadd.f32 %v1420, %v2666
    %v2668 = vpop.f32.mrf.mxu0
    %v2669 = vpop.f32.mrf.mxu0
    %2670 = vdwg.mxu0
    %2671 = vmatprep.subr.bf16.mxu0 0
    %2672 = vmatpush1.bf16.msra.mxu0 0
    %2673 = vmatprep.subr.bf16.mxu0 0
    %2674 = vmatpush1.bf16.msra.mxu0 0
    %2675 = vmatprep.subr.bf16.mxu0 0
    %2676 = vmatpush1.bf16.msra.mxu0 0
    %2677 = vmatprep.subr.bf16.mxu0 0
    %2678 = vmatpush1.bf16.msra.mxu0 0
    %2679 = vmatprep.subr.bf16.mxu0 %v2030
    %2680 = vmatpush1.bf16.msra.mxu0 %v2029
    %2681 = vmatprep.subr.bf16.mxu0 %v1996
    %2682 = vmatpush1.bf16.msra.mxu0 %v1995
    %2683 = vmatprep.subr.bf16.mxu0 %v1962
    %2684 = vmatpush1.bf16.msra.mxu0 %v1961
    %2685 = vmatprep.subr.bf16.mxu0 %v1928
    %2686 = vmatpush1.bf16.msra.mxu0 %v1927
    %2687 = vmatprep.subr.bf16.mxu0 0
    %2688 = vmatpush2.bf16.msra.mxu0 0
    %2689 = vmatprep.subr.bf16.mxu0 0
    %2690 = vmatpush2.bf16.msra.mxu0 0
    %2691 = vmatprep.subr.bf16.mxu0 0
    %2692 = vmatpush2.bf16.msra.mxu0 0
    %2693 = vmatprep.subr.bf16.mxu0 0
    %2694 = vmatpush2.bf16.msra.mxu0 0
    %2695 = vmatprep.subr.bf16.mxu0 0
    %2696 = vmatpush2.bf16.msra.mxu0 0
    %2697 = vmatprep.subr.bf16.mxu0 0
    %2698 = vmatpush2.bf16.msra.mxu0 0
    %2699 = vmatprep.subr.bf16.mxu0 0
    %2700 = vmatpush2.bf16.msra.mxu0 0
    %2701 = vmatprep.subr.bf16.mxu0 0
    %2702 = vmatpush2.bf16.msra.mxu0 0
    %2703 = vmatprep.mubr.bf16.mxu0 0
    %2704 = vmatmul.mubr.bf16.gmra.mxu0 %v2177
    %v2705 = vpop.f32.mrf.mxu0
    %v2706 = vadd.f32 %v1424, %v2705
    %v2707 = vpop.f32.mrf.mxu0
    %v2708 = vadd.f32 %v1428, %v2707
    %v2709 = vpop.f32.mrf.mxu0
    %v2710 = vpop.f32.mrf.mxu0
    %2711 = vdwg.mxu0
    %2712 = vmatprep.subr.bf16.mxu0 0
    %2713 = vmatpush1.bf16.msra.mxu0 0
    %2714 = vmatprep.subr.bf16.mxu0 0
    %2715 = vmatpush1.bf16.msra.mxu0 0
    %2716 = vmatprep.subr.bf16.mxu0 0
    %2717 = vmatpush1.bf16.msra.mxu0 0
    %2718 = vmatprep.subr.bf16.mxu0 0
    %2719 = vmatpush1.bf16.msra.mxu0 0
    %2720 = vmatprep.subr.bf16.mxu0 %v2032
    %2721 = vmatpush1.bf16.msra.mxu0 %v2031
    %2722 = vmatprep.subr.bf16.mxu0 %v1998
    %2723 = vmatpush1.bf16.msra.mxu0 %v1997
    %2724 = vmatprep.subr.bf16.mxu0 %v1964
    %2725 = vmatpush1.bf16.msra.mxu0 %v1963
    %2726 = vmatprep.subr.bf16.mxu0 %v1930
    %2727 = vmatpush1.bf16.msra.mxu0 %v1929
    %2728 = vmatprep.subr.bf16.mxu0 0
    %2729 = vmatpush2.bf16.msra.mxu0 0
    %2730 = vmatprep.subr.bf16.mxu0 0
    %2731 = vmatpush2.bf16.msra.mxu0 0
    %2732 = vmatprep.subr.bf16.mxu0 0
    %2733 = vmatpush2.bf16.msra.mxu0 0
    %2734 = vmatprep.subr.bf16.mxu0 0
    %2735 = vmatpush2.bf16.msra.mxu0 0
    %2736 = vmatprep.subr.bf16.mxu0 0
    %2737 = vmatpush2.bf16.msra.mxu0 0
    %2738 = vmatprep.subr.bf16.mxu0 0
    %2739 = vmatpush2.bf16.msra.mxu0 0
    %2740 = vmatprep.subr.bf16.mxu0 0
    %2741 = vmatpush2.bf16.msra.mxu0 0
    %2742 = vmatprep.subr.bf16.mxu0 0
    %2743 = vmatpush2.bf16.msra.mxu0 0
    %2744 = vmatprep.mubr.bf16.mxu0 0
    %2745 = vmatmul.mubr.bf16.gmra.mxu0 %v2177
    %v2746 = vpop.f32.mrf.mxu0
    %v2747 = vadd.f32 %v1432, %v2746
    %v2748 = vpop.f32.mrf.mxu0
    %v2749 = vadd.f32 %v1436, %v2748
    %v2750 = vpop.f32.mrf.mxu0
    %v2751 = vpop.f32.mrf.mxu0
    %2752 = vdwg.mxu0
    %2753 = vmatprep.subr.bf16.mxu0 0
    %2754 = vmatpush1.bf16.msra.mxu0 0
    %2755 = vmatprep.subr.bf16.mxu0 0
    %2756 = vmatpush1.bf16.msra.mxu0 0
    %2757 = vmatprep.subr.bf16.mxu0 0
    %2758 = vmatpush1.bf16.msra.mxu0 0
    %2759 = vmatprep.subr.bf16.mxu0 0
    %2760 = vmatpush1.bf16.msra.mxu0 0
    %2761 = vmatprep.subr.bf16.mxu0 %v2034
    %2762 = vmatpush1.bf16.msra.mxu0 %v2033
    %2763 = vmatprep.subr.bf16.mxu0 %v2000
    %2764 = vmatpush1.bf16.msra.mxu0 %v1999
    %2765 = vmatprep.subr.bf16.mxu0 %v1966
    %2766 = vmatpush1.bf16.msra.mxu0 %v1965
    %2767 = vmatprep.subr.bf16.mxu0 %v1932
    %2768 = vmatpush1.bf16.msra.mxu0 %v1931
    %2769 = vmatprep.subr.bf16.mxu0 0
    %2770 = vmatpush2.bf16.msra.mxu0 0
    %2771 = vmatprep.subr.bf16.mxu0 0
    %2772 = vmatpush2.bf16.msra.mxu0 0
    %2773 = vmatprep.subr.bf16.mxu0 0
    %2774 = vmatpush2.bf16.msra.mxu0 0
    %2775 = vmatprep.subr.bf16.mxu0 0
    %2776 = vmatpush2.bf16.msra.mxu0 0
    %2777 = vmatprep.subr.bf16.mxu0 0
    %2778 = vmatpush2.bf16.msra.mxu0 0
    %2779 = vmatprep.subr.bf16.mxu0 0
    %2780 = vmatpush2.bf16.msra.mxu0 0
    %2781 = vmatprep.subr.bf16.mxu0 0
    %2782 = vmatpush2.bf16.msra.mxu0 0
    %2783 = vmatprep.subr.bf16.mxu0 0
    %2784 = vmatpush2.bf16.msra.mxu0 0
    %2785 = vmatprep.mubr.bf16.mxu0 0
    %2786 = vmatmul.mubr.bf16.gmra.mxu0 %v2177
    %v2787 = vpop.f32.mrf.mxu0
    %v2788 = vadd.f32 %v1440, %v2787
    %v2789 = vpop.f32.mrf.mxu0
    %v2790 = vadd.f32 %v1444, %v2789
    %v2791 = vpop.f32.mrf.mxu0
    %v2792 = vpop.f32.mrf.mxu0
    %2793 = vdwg.mxu0
    %2794 = vmatprep.subr.bf16.mxu0 0
    %2795 = vmatpush1.bf16.msra.mxu0 0
    %2796 = vmatprep.subr.bf16.mxu0 0
    %2797 = vmatpush1.bf16.msra.mxu0 0
    %2798 = vmatprep.subr.bf16.mxu0 0
    %2799 = vmatpush1.bf16.msra.mxu0 0
    %2800 = vmatprep.subr.bf16.mxu0 0
    %2801 = vmatpush1.bf16.msra.mxu0 0
    %2802 = vmatprep.subr.bf16.mxu0 %v2036
    %2803 = vmatpush1.bf16.msra.mxu0 %v2035
    %2804 = vmatprep.subr.bf16.mxu0 %v2002
    %2805 = vmatpush1.bf16.msra.mxu0 %v2001
    %2806 = vmatprep.subr.bf16.mxu0 %v1968
    %2807 = vmatpush1.bf16.msra.mxu0 %v1967
    %2808 = vmatprep.subr.bf16.mxu0 %v1934
    %2809 = vmatpush1.bf16.msra.mxu0 %v1933
    %2810 = vmatprep.subr.bf16.mxu0 0
    %2811 = vmatpush2.bf16.msra.mxu0 0
    %2812 = vmatprep.subr.bf16.mxu0 0
    %2813 = vmatpush2.bf16.msra.mxu0 0
    %2814 = vmatprep.subr.bf16.mxu0 0
    %2815 = vmatpush2.bf16.msra.mxu0 0
    %2816 = vmatprep.subr.bf16.mxu0 0
    %2817 = vmatpush2.bf16.msra.mxu0 0
    %2818 = vmatprep.subr.bf16.mxu0 0
    %2819 = vmatpush2.bf16.msra.mxu0 0
    %2820 = vmatprep.subr.bf16.mxu0 0
    %2821 = vmatpush2.bf16.msra.mxu0 0
    %2822 = vmatprep.subr.bf16.mxu0 0
    %2823 = vmatpush2.bf16.msra.mxu0 0
    %2824 = vmatprep.subr.bf16.mxu0 0
    %2825 = vmatpush2.bf16.msra.mxu0 0
    %2826 = vmatprep.mubr.bf16.mxu0 0
    %2827 = vmatmul.mubr.bf16.gmra.mxu0 %v2177
    %v2828 = vpop.f32.mrf.mxu0
    %v2829 = vadd.f32 %v1448, %v2828
    %v2830 = vpop.f32.mrf.mxu0
    %v2831 = vadd.f32 %v1452, %v2830
    %v2832 = vpop.f32.mrf.mxu0
    %v2833 = vpop.f32.mrf.mxu0
    %2834 = vdwg.mxu0
    %2835 = vmatprep.subr.bf16.mxu0 0
    %2836 = vmatpush1.bf16.msra.mxu0 0
    %2837 = vmatprep.subr.bf16.mxu0 0
    %2838 = vmatpush1.bf16.msra.mxu0 0
    %2839 = vmatprep.subr.bf16.mxu0 0
    %2840 = vmatpush1.bf16.msra.mxu0 0
    %2841 = vmatprep.subr.bf16.mxu0 0
    %2842 = vmatpush1.bf16.msra.mxu0 0
    %2843 = vmatprep.subr.bf16.mxu0 %v2038
    %2844 = vmatpush1.bf16.msra.mxu0 %v2037
    %2845 = vmatprep.subr.bf16.mxu0 %v2004
    %2846 = vmatpush1.bf16.msra.mxu0 %v2003
    %2847 = vmatprep.subr.bf16.mxu0 %v1970
    %2848 = vmatpush1.bf16.msra.mxu0 %v1969
    %2849 = vmatprep.subr.bf16.mxu0 %v1936
    %2850 = vmatpush1.bf16.msra.mxu0 %v1935
    %2851 = vmatprep.subr.bf16.mxu0 0
    %2852 = vmatpush2.bf16.msra.mxu0 0
    %2853 = vmatprep.subr.bf16.mxu0 0
    %2854 = vmatpush2.bf16.msra.mxu0 0
    %2855 = vmatprep.subr.bf16.mxu0 0
    %2856 = vmatpush2.bf16.msra.mxu0 0
    %2857 = vmatprep.subr.bf16.mxu0 0
    %2858 = vmatpush2.bf16.msra.mxu0 0
    %2859 = vmatprep.subr.bf16.mxu0 0
    %2860 = vmatpush2.bf16.msra.mxu0 0
    %2861 = vmatprep.subr.bf16.mxu0 0
    %2862 = vmatpush2.bf16.msra.mxu0 0
    %2863 = vmatprep.subr.bf16.mxu0 0
    %2864 = vmatpush2.bf16.msra.mxu0 0
    %2865 = vmatprep.subr.bf16.mxu0 0
    %2866 = vmatpush2.bf16.msra.mxu0 0
    %2867 = vmatprep.mubr.bf16.mxu0 0
    %2868 = vmatmul.mubr.bf16.gmra.mxu0 %v2177
    %v2869 = vpop.f32.mrf.mxu0
    %v2870 = vadd.f32 %v1456, %v2869
    %v2871 = vpop.f32.mrf.mxu0
    %v2872 = vadd.f32 %v1460, %v2871
    %v2873 = vpop.f32.mrf.mxu0
    %v2874 = vpop.f32.mrf.mxu0
    %2875 = vdwg.mxu0
    %v2910 = vcombine.low %v2214, %v2216
    %v2911 = vcombine.low %v2255, %v2257
    %v2913 = vunpack.c.l.s4 1983009808
    %v2914 = vunpack.c.0.s8 %v2913
    %v2915 = vlaneseq
    %v2916 = vshrl.u32 %v2915, 7
    %v2917 = vsub.s32 %v2914, %v2916
    %v2918 = vrot.slane %v2910, %v2917
    %v2920 = vunpack.c.l.s4 1983009808
    %v2921 = vunpack.c.0.s8 %v2920
    %v2922 = vlaneseq
    %v2923 = vshrl.u32 %v2922, 7
    %v2924 = vsub.s32 %v2921, %v2923
    %v2925 = vrot.slane %v2911, %v2924
    %v2926 = vcombine.low %v2918, %v2925
    %v2927 = vcombine.low %v2296, %v2298
    %v2928 = vcombine.low %v2337, %v2339
    %v2930 = vunpack.c.l.s4 1983009808
    %v2931 = vunpack.c.0.s8 %v2930
    %v2932 = vlaneseq
    %v2933 = vshrl.u32 %v2932, 7
    %v2934 = vsub.s32 %v2931, %v2933
    %v2935 = vrot.slane %v2927, %v2934
    %v2937 = vunpack.c.l.s4 1983009808
    %v2938 = vunpack.c.0.s8 %v2937
    %v2939 = vlaneseq
    %v2940 = vshrl.u32 %v2939, 7
    %v2941 = vsub.s32 %v2938, %v2940
    %v2942 = vrot.slane %v2928, %v2941
    %v2943 = vcombine.low %v2935, %v2942
    %v2944 = vcombine.low %v2378, %v2380
    %v2945 = vcombine.low %v2419, %v2421
    %v2947 = vunpack.c.l.s4 1983009808
    %v2948 = vunpack.c.0.s8 %v2947
    %v2949 = vlaneseq
    %v2950 = vshrl.u32 %v2949, 7
    %v2951 = vsub.s32 %v2948, %v2950
    %v2952 = vrot.slane %v2944, %v2951
    %v2954 = vunpack.c.l.s4 1983009808
    %v2955 = vunpack.c.0.s8 %v2954
    %v2956 = vlaneseq
    %v2957 = vshrl.u32 %v2956, 7
    %v2958 = vsub.s32 %v2955, %v2957
    %v2959 = vrot.slane %v2945, %v2958
    %v2960 = vcombine.low %v2952, %v2959
    %v2961 = vcombine.low %v2460, %v2462
    %v2962 = vcombine.low %v2501, %v2503
    %v2964 = vunpack.c.l.s4 1983009808
    %v2965 = vunpack.c.0.s8 %v2964
    %v2966 = vlaneseq
    %v2967 = vshrl.u32 %v2966, 7
    %v2968 = vsub.s32 %v2965, %v2967
    %v2969 = vrot.slane %v2961, %v2968
    %v2971 = vunpack.c.l.s4 1983009808
    %v2972 = vunpack.c.0.s8 %v2971
    %v2973 = vlaneseq
    %v2974 = vshrl.u32 %v2973, 7
    %v2975 = vsub.s32 %v2972, %v2974
    %v2976 = vrot.slane %v2962, %v2975
    %v2977 = vcombine.low %v2969, %v2976
    %v2978 = vcombine.low %v2542, %v2544
    %v2979 = vcombine.low %v2583, %v2585
    %v2981 = vunpack.c.l.s4 1983009808
    %v2982 = vunpack.c.0.s8 %v2981
    %v2983 = vlaneseq
    %v2984 = vshrl.u32 %v2983, 7
    %v2985 = vsub.s32 %v2982, %v2984
    %v2986 = vrot.slane %v2978, %v2985
    %v2988 = vunpack.c.l.s4 1983009808
    %v2989 = vunpack.c.0.s8 %v2988
    %v2990 = vlaneseq
    %v2991 = vshrl.u32 %v2990, 7
    %v2992 = vsub.s32 %v2989, %v2991
    %v2993 = vrot.slane %v2979, %v2992
    %v2994 = vcombine.low %v2986, %v2993
    %v2995 = vcombine.low %v2624, %v2626
    %v2996 = vcombine.low %v2665, %v2667
    %v2998 = vunpack.c.l.s4 1983009808
    %v2999 = vunpack.c.0.s8 %v2998
    %v3000 = vlaneseq
    %v3001 = vshrl.u32 %v3000, 7
    %v3002 = vsub.s32 %v2999, %v3001
    %v3003 = vrot.slane %v2995, %v3002
    %v3005 = vunpack.c.l.s4 1983009808
    %v3006 = vunpack.c.0.s8 %v3005
    %v3007 = vlaneseq
    %v3008 = vshrl.u32 %v3007, 7
    %v3009 = vsub.s32 %v3006, %v3008
    %v3010 = vrot.slane %v2996, %v3009
    %v3011 = vcombine.low %v3003, %v3010
    %v3012 = vcombine.low %v2706, %v2708
    %v3013 = vcombine.low %v2747, %v2749
    %v3015 = vunpack.c.l.s4 1983009808
    %v3016 = vunpack.c.0.s8 %v3015
    %v3017 = vlaneseq
    %v3018 = vshrl.u32 %v3017, 7
    %v3019 = vsub.s32 %v3016, %v3018
    %v3020 = vrot.slane %v3012, %v3019
    %v3022 = vunpack.c.l.s4 1983009808
    %v3023 = vunpack.c.0.s8 %v3022
    %v3024 = vlaneseq
    %v3025 = vshrl.u32 %v3024, 7
    %v3026 = vsub.s32 %v3023, %v3025
    %v3027 = vrot.slane %v3013, %v3026
    %v3028 = vcombine.low %v3020, %v3027
    %v3029 = vcombine.low %v2788, %v2790
    %v3030 = vcombine.low %v2829, %v2831
    %v3032 = vunpack.c.l.s4 1983009808
    %v3033 = vunpack.c.0.s8 %v3032
    %v3034 = vlaneseq
    %v3035 = vshrl.u32 %v3034, 7
    %v3036 = vsub.s32 %v3033, %v3035
    %v3037 = vrot.slane %v3029, %v3036
    %v3039 = vunpack.c.l.s4 1983009808
    %v3040 = vunpack.c.0.s8 %v3039
    %v3041 = vlaneseq
    %v3042 = vshrl.u32 %v3041, 7
    %v3043 = vsub.s32 %v3040, %v3042
    %v3044 = vrot.slane %v3030, %v3043
    %v3045 = vcombine.low %v3037, %v3044
    %v3046 = vcombine.low %v2870, %v2872
    %v3048 = vunpack.c.l.s4 1983009808
    %v3049 = vunpack.c.0.s8 %v3048
    %v3050 = vlaneseq
    %v3051 = vshrl.u32 %v3050, 7
    %v3052 = vsub.s32 %v3049, %v3051
    %v3053 = vrot.slane %v3046, %v3052
    %3063 = vst [vmem:[#allocation13] sm:$0xff] %v2926
    %3064 = vst [vmem:[#allocation13 + $0x8] sm:$0xff] %v2943
    %3065 = vst [vmem:[#allocation13 + $0x10] sm:$0xff] %v2960
    %3066 = vst [vmem:[#allocation13 + $0x18] sm:$0xff] %v2977
    %3067 = vst [vmem:[#allocation13 + $0x20] sm:$0xff] %v2994
    %3068 = vst [vmem:[#allocation13 + $0x28] sm:$0xff] %v3011
    %3069 = vst [vmem:[#allocation13 + $0x30] sm:$0xff] %v3028
    %3070 = vst [vmem:[#allocation13 + $0x38] sm:$0xff] %v3045
    %3071 = vst [vmem:[#allocation13 + $0x40] sm:$0xf] %v3053
    // Predicated region
    $region107: #{gnn_mg_fo_forward.1} parent=1 // pred_check
      _
    $region108: #{gnn_mg_fo_forward.1} parent=1 // pred_check_branch
      %3073 = sbr.rel (0) target = $region110
    $region109: #{gnn_mg_fo_forward.1} parent=1 // pred_region
      %s3075 = ssub.s32 1088, 1088
      %3076 = vsyncadd [#allocation7], %s3075
      %s3078 = sshll.u32 [#allocation13], 4
      %s3079 = int_to_ptr.vmem [resolvable:$true] %s3078
      %3081 = dma.vmem_to_hbm [thread:$0]  %s3079, 1088, %s14, [#allocation7]
    $region110: #{gnn_mg_fo_forward.1} parent=1 // pred_fallthru
      _
    // Predicated region
    $region111: #{gnn_mg_fo_forward.1} parent=1 // pred_check
      _
    $region112: #{gnn_mg_fo_forward.1} parent=1 // pred_check_branch
      %3083 = sbr.rel (0) target = $region114
    $region113: #{gnn_mg_fo_forward.1} parent=1 // pred_region
      %3084 = dma.done [#allocation7], 1088
    $region114: #{gnn_mg_fo_forward.1} parent=1 // pred_fallthru
      _
    %3085 = vsyncpa [#allocation6], 1
    %3086 = vsyncpa [#allocation9], 1
    %3087 = vsyncpa [#allocation12], 1
    %3088 = vsyncpa [#allocation7], 1
  %3089 = vsyncmov [#allocation4]
  %s3090 = vpop.sfrf %3089
  %p3091 = scmp.eq.s32.totalorder %s3090, 0
  %p3092 = pneg %p3091
  %3094 = shalt.err (%p3092)
  %s3095 = scalar_lea.sflag [#allocation4], 1
  %3096 = vsyncmov %s3095
  %s3097 = vpop.sfrf %3096
  %p3098 = scmp.eq.s32.totalorder %s3097, 0
  %p3099 = pneg %p3098
  %3101 = shalt.err (%p3099)

</llo_original>
